<compile_context>
chip_gen: v7x
topology: tpu7x:2x2x1
jax: 0.10.0
libtpu: 0.0.40
codegen_flags: <defaults>
</compile_context>

<pallas_src>
import numpy as np
import jax
import jax.numpy as jnp
from jax import lax
from jax.experimental import pallas as pl
from jax.experimental.pallas import tpu as pltpu


def lstm_net_kernel(x2_ref, len_ref,
                    wih0_ref, b0_ref, whh0_ref,
                    wih1_ref, b1_ref, whh1_ref,
                    fc1_w_ref, fc1_b_ref, fc2_w_ref, fc2_b_ref,
                    out_ref,
                    z_scr, seqf_scr, seqb_scr):
    TB, _E = x2_ref.shape
    B = len_ref.shape[0]
    T = TB // B
    G2 = wih0_ref.shape[1]           # 8H (both directions' gates)
    G = G2 // 2                      # 4H
    H = G // 4

    lens = len_ref[...]              # (B, 1) int32, loaded once

    def fused_bilstm(whh, store_seq):
        """One serial loop running fwd (t=i) and bwd (t=T-1-i) together.

        whh: (2H, 8H) = block_diag(W_hh_fwd, W_hh_bwd), loaded once (hoisted).
        z_scr: (T*B, 8H) precomputed x @ W_ih + b; cols [0:4H]=fwd, [4H:8H]=bwd.
        """
        def step(i, carry):
            h_cat, c_f, c_b = carry                     # (B,2H), (B,H), (B,H)
            t_f = i
            t_b = T - 1 - i
            row_f = pl.multiple_of(t_f * B, B)          # B is a multiple of 8
            row_b = pl.multiple_of(t_b * B, B)

            # single fused gate matmul per step: (B, 2H) @ (2H, 8H)
            zh = jnp.dot(h_cat, whh, preferred_element_type=jnp.float32)
            z_f = zh[:, :G] + z_scr[pl.ds(row_f, B), :G]   # (B, 4H) fwd gates
            z_b = zh[:, G:] + z_scr[pl.ds(row_b, B), G:]   # (B, 4H) bwd gates

            def cell(z, c):
                ig = jax.nn.sigmoid(z[:, 0 * H:1 * H])
                fg = jax.nn.sigmoid(z[:, 1 * H:2 * H])
                gg = jnp.tanh(z[:, 2 * H:3 * H])
                og = jax.nn.sigmoid(z[:, 3 * H:4 * H])
                c_new = fg * c + ig * gg
                h_new = og * jnp.tanh(c_new)
                return h_new, c_new

            h_f_new, c_f_new = cell(z_f, c_f)
            h_b_new, c_b_new = cell(z_b, c_b)

            # packed-sequence semantics: freeze state once t >= length[b]
            m_f = t_f < lens                            # (B, 1) bool
            m_b = t_b < lens
            h_f = jnp.where(m_f, h_f_new, h_cat[:, :H])
            c_f = jnp.where(m_f, c_f_new, c_f)
            h_b = jnp.where(m_b, h_b_new, h_cat[:, H:])
            c_b = jnp.where(m_b, c_b_new, c_b)

            if store_seq:
                seqf_scr[pl.ds(row_f, B), :] = h_f
                seqb_scr[pl.ds(row_b, B), :] = h_b

            return (jnp.concatenate([h_f, h_b], axis=-1), c_f, c_b)

        init = (jnp.zeros((B, 2 * H), jnp.float32),
                jnp.zeros((B, H), jnp.float32),
                jnp.zeros((B, H), jnp.float32))
        h_cat, _, _ = lax.fori_loop(0, T, step, init, unroll=True)
        return h_cat

    # ---- layer 0: one wide batched input projection (hoisted) --------------
    x2 = x2_ref[...]                                             # (T*B, E)
    z_scr[...] = (jnp.dot(x2, wih0_ref[...],
                          preferred_element_type=jnp.float32) + b0_ref[...])

    fused_bilstm(whh0_ref[...], store_seq=True)

    # ---- layer 1: batched projection from layer-0 outputs ------------------
    # concat(seq_f, seq_b) @ W == seq_f @ W[:H] + seq_b @ W[H:]   (no concat)
    # (inter-layer dropout is identity in eval mode)
    z_scr[...] = (jnp.dot(seqf_scr[...], wih1_ref[:H, :],
                          preferred_element_type=jnp.float32)
                  + jnp.dot(seqb_scr[...], wih1_ref[H:, :],
                            preferred_element_type=jnp.float32)
                  + b1_ref[...])

    hidden = fused_bilstm(whh1_ref[...], store_seq=False)       # (B, 2H)

    # hidden = dropout(cat(hidden[-2], hidden[-1]))  (dropout = identity, eval)
    out1 = (jnp.dot(hidden, fc1_w_ref[...],
                    preferred_element_type=jnp.float32) + fc1_b_ref[...])
    out2 = (jnp.dot(out1, fc2_w_ref[...],
                    preferred_element_type=jnp.float32) + fc2_b_ref[...])
    out_ref[...] = out2


def lstm_net_forward(text, text_lengths, params):
    """text: (T, B) int32 tokens, text_lengths: (B,) int32 (descending)."""
    emb_table = params["embedding"]
    T, B = text.shape
    H = params["whh_f0"].shape[0]
    E = emb_table.shape[1]
    G = 4 * H

    B_pad = max(8, -(-B // 8) * 8)   # pad batch to the 8-row sublane tile

    # glue: embedding gather + batch padding + flatten to (T*B_pad, E)
    embedded = jnp.take(emb_table, text, axis=0).astype(jnp.float32)  # (T,B,E)
    embedded = jnp.pad(embedded, ((0, 0), (0, B_pad - B), (0, 0)))
    x2 = embedded.reshape(T * B_pad, E)

    lens2 = jnp.pad(text_lengths.astype(jnp.int32),
                    (0, B_pad - B)).reshape(B_pad, 1)   # pad rows -> length 0

    def block_diag(a, b):
        z = jnp.zeros_like(a)
        top = jnp.concatenate([a, z], axis=1)
        bot = jnp.concatenate([z, b], axis=1)
        return jnp.concatenate([top, bot], axis=0)      # (2H, 8H)

    # fuse both directions' input projections / biases column-wise
    wih0 = jnp.concatenate([params["wih_f0"], params["wih_b0"]], axis=1)  # (E, 8H)
    b0 = jnp.concatenate([params["b_f0"], params["b_b0"]], axis=1)        # (1, 8H)
    whh0 = block_diag(params["whh_f0"], params["whh_b0"])                 # (2H, 8H)
    wih1 = jnp.concatenate([params["wih_f1"], params["wih_b1"]], axis=1)  # (2H, 8H)
    b1 = jnp.concatenate([params["b_f1"], params["b_b1"]], axis=1)        # (1, 8H)
    whh1 = block_diag(params["whh_f1"], params["whh_b1"])                 # (2H, 8H)

    weight_args = [
        wih0, b0, whh0,
        wih1, b1, whh1,
        params["fc1_w"], params["fc1_b"], params["fc2_w"], params["fc2_b"],
    ]

    vmem = pl.BlockSpec(memory_space=pltpu.MemorySpace.VMEM)
    n_in = 2 + len(weight_args)
    out_pad = pl.pallas_call(
        lstm_net_kernel,
        out_shape=jax.ShapeDtypeStruct((B_pad, 8), jnp.float32),
        in_specs=[vmem] * n_in,
        out_specs=vmem,
        scratch_shapes=[
            pltpu.VMEM((T * B_pad, 2 * G), jnp.float32),  # z_pre both dirs (reused L0/L1)
            pltpu.VMEM((T * B_pad, H), jnp.float32),      # layer-0 fwd outputs
            pltpu.VMEM((T * B_pad, H), jnp.float32),      # layer-0 bwd outputs
        ],
    )(x2, lens2, *weight_args)
    return out_pad[:B]


def init_params(key, vocab_size, E, H, pad_idx):
    ks = jax.random.split(key, 20)
    kscale = 1.0 / np.sqrt(H)

    def u(k, shape):
        return jax.random.uniform(k, shape, jnp.float32, -kscale, kscale)

    emb = jax.random.normal(ks[0], (vocab_size, E), jnp.float32) * 0.1
    emb = emb.at[pad_idx].set(0.0)                       # padding_idx row is zero
    p = {"embedding": emb}
    in_sizes = {"0": E, "1": 2 * H}
    i = 1
    for layer in ("0", "1"):
        for d in ("f", "b"):
            # stored pre-transposed: (in, 4H) / (H, 4H); b = b_ih + b_hh fused
            p[f"wih_{d}{layer}"] = u(ks[i], (in_sizes[layer], 4 * H)); i += 1
            p[f"whh_{d}{layer}"] = u(ks[i], (H, 4 * H)); i += 1
            p[f"b_{d}{layer}"] = u(ks[i], (1, 4 * H)); i += 1
    p["fc1_w"] = u(ks[i], (2 * H, H)); i += 1
    p["fc1_b"] = u(ks[i], (1, H)); i += 1
    p["fc2_w"] = u(ks[i], (H, 8)); i += 1
    p["fc2_b"] = u(ks[i], (1, 8)); i += 1
    return p


def reference_forward(text, lengths, p):
    """Pure-JAX replica of the same math (packed bi-LSTM, 2 layers, fc1, fc2)."""
    emb = jnp.take(p["embedding"], text, axis=0).astype(jnp.float32)
    T, B, _ = emb.shape
    H = p["whh_f0"].shape[0]
    mask = (jnp.arange(T)[:, None] < lengths[None, :]).astype(jnp.float32)

    def run(xs, wih, whh, b, reverse):
        h = jnp.zeros((B, H), jnp.float32)
        c = jnp.zeros((B, H), jnp.float32)
        outs = [None] * T
        order = range(T - 1, -1, -1) if reverse else range(T)
        for t in order:
            z = xs[t] @ wih + h @ whh + b
            i = jax.nn.sigmoid(z[:, :H]); f = jax.nn.sigmoid(z[:, H:2 * H])
            g = jnp.tanh(z[:, 2 * H:3 * H]); o = jax.nn.sigmoid(z[:, 3 * H:])
            c_new = f * c + i * g
            h_new = o * jnp.tanh(c_new)
            m = mask[t][:, None]
            h = m * h_new + (1 - m) * h
            c = m * c_new + (1 - m) * c
            outs[t] = h
        return h, jnp.stack(outs)

    _, sf0 = run(emb, p["wih_f0"], p["whh_f0"], p["b_f0"], False)
    _, sb0 = run(emb, p["wih_b0"], p["whh_b0"], p["b_b0"], True)
    x1 = jnp.concatenate([sf0, sb0], axis=-1)
    hf1, _ = run(x1, p["wih_f1"], p["whh_f1"], p["b_f1"], False)
    hb1, _ = run(x1, p["wih_b1"], p["whh_b1"], p["b_b1"], True)
    hidden = jnp.concatenate([hf1, hb1], axis=-1)
    out = hidden @ p["fc1_w"] + p["fc1_b"]
    return out @ p["fc2_w"] + p["fc2_b"]


if __name__ == "__main__":
    vocab_size, E, H, pad_idx = 50, 16, 32, 0
    T, B = 8, 2

    key = jax.random.PRNGKey(0)
    tok_key, param_key = jax.random.split(key)

    lengths = jnp.array([8, 5], dtype=jnp.int32)          # descending (packed req.)
    tokens = jax.random.randint(tok_key, (T, B), 1, vocab_size)
    valid = jnp.arange(T)[:, None] < lengths[None, :]
    text = jnp.where(valid, tokens, pad_idx).astype(jnp.int32)

    params = init_params(param_key, vocab_size, E, H, pad_idx)

    out = lstm_net_forward(text, lengths, params)
    out = jax.block_until_ready(out)

    ref = jax.block_until_ready(reference_forward(text, lengths, params))
    np.testing.assert_allclose(np.asarray(out), np.asarray(ref),
                               rtol=2e-4, atol=2e-4)
    assert out.shape == (B, 8)
    print("KERNEL_OK")
</pallas_src>

<mosaic_0001>
module attributes {stable_mosaic.version = 11 : i64} {
  func.func @lstm_net_kernel(%arg0: memref<64x16xf32, #tpu.memory_space<vmem>>, %arg1: memref<8x1xi32, #tpu.memory_space<vmem>>, %arg2: memref<16x256xf32, #tpu.memory_space<vmem>>, %arg3: memref<1x256xf32, #tpu.memory_space<vmem>>, %arg4: memref<64x256xf32, #tpu.memory_space<vmem>>, %arg5: memref<64x256xf32, #tpu.memory_space<vmem>>, %arg6: memref<1x256xf32, #tpu.memory_space<vmem>>, %arg7: memref<64x256xf32, #tpu.memory_space<vmem>>, %arg8: memref<64x32xf32, #tpu.memory_space<vmem>>, %arg9: memref<1x32xf32, #tpu.memory_space<vmem>>, %arg10: memref<32x8xf32, #tpu.memory_space<vmem>>, %arg11: memref<1x8xf32, #tpu.memory_space<vmem>>, %arg12: memref<8x8xf32, #tpu.memory_space<vmem>>, %arg13: memref<64x256xf32, #tpu.memory_space<vmem>>, %arg14: memref<64x32xf32, #tpu.memory_space<vmem>>, %arg15: memref<64x32xf32, #tpu.memory_space<vmem>>) attributes {dimension_semantics = [], scalar_prefetch = 0 : i64, scratch_operands = 3 : i64, tpu.core_type = #tpu.core_type<tc>} {
    %c0 = arith.constant 0 : index
    %c0_0 = arith.constant 0 : index
    %0 = vector.load %arg1[%c0, %c0_0] : memref<8x1xi32, #tpu.memory_space<vmem>>, vector<8x1xi32>
    %c0_1 = arith.constant 0 : index
    %c0_2 = arith.constant 0 : index
    %1 = vector.load %arg0[%c0_1, %c0_2] : memref<64x16xf32, #tpu.memory_space<vmem>>, vector<64x16xf32>
    %c0_3 = arith.constant 0 : index
    %c0_4 = arith.constant 0 : index
    %2 = vector.load %arg2[%c0_3, %c0_4] : memref<16x256xf32, #tpu.memory_space<vmem>>, vector<16x256xf32>
    %cst = arith.constant dense<0.000000e+00> : vector<64x256xf32>
    %3 = tpu.matmul %1, %2, %cst {dimension_numbers = #tpu.dot_dimension_numbers<[1], [0], [0], [1], [0, 0, 1, 1], [], []>} : vector<64x16xf32>, vector<16x256xf32>, vector<64x256xf32> -> vector<64x256xf32>
    %c0_5 = arith.constant 0 : index
    %c0_6 = arith.constant 0 : index
    %4 = vector.load %arg3[%c0_5, %c0_6] : memref<1x256xf32, #tpu.memory_space<vmem>>, vector<1x256xf32>
    %5 = vector.broadcast %4 : vector<1x256xf32> to vector<64x256xf32>
    %6 = arith.addf %3, %5 : vector<64x256xf32>
    %c0_7 = arith.constant 0 : index
    %c0_8 = arith.constant 0 : index
    %7 = vector.load %arg13[%c0_7, %c0_8] : memref<64x256xf32, #tpu.memory_space<vmem>>, vector<64x256xf32>
    tpu.vector_store %arg13[%c0_7, %c0_8], %6 {strides = array<i32>} : memref<64x256xf32, #tpu.memory_space<vmem>>, vector<64x256xf32>,
    %c0_9 = arith.constant 0 : index
    %c0_10 = arith.constant 0 : index
    %8 = vector.load %arg4[%c0_9, %c0_10] : memref<64x256xf32, #tpu.memory_space<vmem>>, vector<64x256xf32>
    %cst_11 = arith.constant 0.000000e+00 : f32
    %9 = vector.broadcast %cst_11 : f32 to vector<8x64xf32>
    %cst_12 = arith.constant 0.000000e+00 : f32
    %10 = vector.broadcast %cst_12 : f32 to vector<8x32xf32>
    %cst_13 = arith.constant 0.000000e+00 : f32
    %11 = vector.broadcast %cst_13 : f32 to vector<8x32xf32>
    %c0_i32 = arith.constant 0 : i32
    %c7_i32 = arith.constant 7 : i32
    %12 = arith.subi %c7_i32, %c0_i32 : i32
    %c8_i32 = arith.constant 8 : i32
    %13 = arith.muli %c0_i32, %c8_i32 : i32
    %14 = tpu.assume_multiple %13, 8 : i32
    %c8_i32_14 = arith.constant 8 : i32
    %15 = arith.muli %12, %c8_i32_14 : i32
    %16 = tpu.assume_multiple %15, 8 : i32
    %cst_15 = arith.constant dense<0.000000e+00> : vector<8x256xf32>
    %17 = tpu.matmul %9, %8, %cst_15 {dimension_numbers = #tpu.dot_dimension_numbers<[1], [0], [0], [1], [0, 0, 1, 1], [], []>} : vector<8x64xf32>, vector<64x256xf32>, vector<8x256xf32> -> vector<8x256xf32>
    %18 = vector.extract_strided_slice %17 {offsets = [0, 0], sizes = [8, 128], strides = [1, 1]} : vector<8x256xf32> to vector<8x128xf32>
    %19 = arith.index_cast %14 : i32 to index
    %c0_16 = arith.constant 0 : index
    %20 = vector.load %arg13[%19, %c0_16] : memref<64x256xf32, #tpu.memory_space<vmem>>, vector<8x128xf32>
    %21 = arith.addf %18, %20 : vector<8x128xf32>
    %22 = vector.extract_strided_slice %17 {offsets = [0, 128], sizes = [8, 128], strides = [1, 1]} : vector<8x256xf32> to vector<8x128xf32>
    %23 = arith.index_cast %16 : i32 to index
    %c128 = arith.constant 128 : index
    %24 = vector.load %arg13[%23, %c128] : memref<64x256xf32, #tpu.memory_space<vmem>>, vector<8x128xf32>
    %25 = arith.addf %22, %24 : vector<8x128xf32>
    %26 = vector.extract_strided_slice %21 {offsets = [0, 0], sizes = [8, 32], strides = [1, 1]} : vector<8x128xf32> to vector<8x32xf32>
    %27 = arith.negf %26 : vector<8x32xf32>
    %28 = math.exp %27 : vector<8x32xf32>
    %cst_17 = arith.constant 1.000000e+00 : f32
    %29 = vector.broadcast %cst_17 : f32 to vector<8x32xf32>
    %30 = arith.addf %29, %28 : vector<8x32xf32>
    %31 = arith.divf %29, %30 : vector<8x32xf32>
    %32 = vector.extract_strided_slice %21 {offsets = [0, 32], sizes = [8, 32], strides = [1, 1]} : vector<8x128xf32> to vector<8x32xf32>
    %33 = arith.negf %32 : vector<8x32xf32>
    %34 = math.exp %33 : vector<8x32xf32>
    %cst_18 = arith.constant 1.000000e+00 : f32
    %35 = vector.broadcast %cst_18 : f32 to vector<8x32xf32>
    %36 = arith.addf %35, %34 : vector<8x32xf32>
    %37 = arith.divf %35, %36 : vector<8x32xf32>
    %38 = vector.extract_strided_slice %21 {offsets = [0, 64], sizes = [8, 32], strides = [1, 1]} : vector<8x128xf32> to vector<8x32xf32>
    %39 = math.tanh %38 : vector<8x32xf32>
    %40 = vector.extract_strided_slice %21 {offsets = [0, 96], sizes = [8, 32], strides = [1, 1]} : vector<8x128xf32> to vector<8x32xf32>
    %41 = arith.negf %40 : vector<8x32xf32>
    %42 = math.exp %41 : vector<8x32xf32>
    %cst_19 = arith.constant 1.000000e+00 : f32
    %43 = vector.broadcast %cst_19 : f32 to vector<8x32xf32>
    %44 = arith.addf %43, %42 : vector<8x32xf32>
    %45 = arith.divf %43, %44 : vector<8x32xf32>
    %46 = arith.mulf %37, %10 : vector<8x32xf32>
    %47 = arith.mulf %31, %39 : vector<8x32xf32>
    %48 = arith.addf %46, %47 : vector<8x32xf32>
    %49 = math.tanh %48 : vector<8x32xf32>
    %50 = arith.mulf %45, %49 : vector<8x32xf32>
    %51 = vector.extract_strided_slice %25 {offsets = [0, 0], sizes = [8, 32], strides = [1, 1]} : vector<8x128xf32> to vector<8x32xf32>
    %52 = arith.negf %51 : vector<8x32xf32>
    %53 = math.exp %52 : vector<8x32xf32>
    %cst_20 = arith.constant 1.000000e+00 : f32
    %54 = vector.broadcast %cst_20 : f32 to vector<8x32xf32>
    %55 = arith.addf %54, %53 : vector<8x32xf32>
    %56 = arith.divf %54, %55 : vector<8x32xf32>
    %57 = vector.extract_strided_slice %25 {offsets = [0, 32], sizes = [8, 32], strides = [1, 1]} : vector<8x128xf32> to vector<8x32xf32>
    %58 = arith.negf %57 : vector<8x32xf32>
    %59 = math.exp %58 : vector<8x32xf32>
    %cst_21 = arith.constant 1.000000e+00 : f32
    %60 = vector.broadcast %cst_21 : f32 to vector<8x32xf32>
    %61 = arith.addf %60, %59 : vector<8x32xf32>
    %62 = arith.divf %60, %61 : vector<8x32xf32>
    %63 = vector.extract_strided_slice %25 {offsets = [0, 64], sizes = [8, 32], strides = [1, 1]} : vector<8x128xf32> to vector<8x32xf32>
    %64 = math.tanh %63 : vector<8x32xf32>
    %65 = vector.extract_strided_slice %25 {offsets = [0, 96], sizes = [8, 32], strides = [1, 1]} : vector<8x128xf32> to vector<8x32xf32>
    %66 = arith.negf %65 : vector<8x32xf32>
    %67 = math.exp %66 : vector<8x32xf32>
    %cst_22 = arith.constant 1.000000e+00 : f32
    %68 = vector.broadcast %cst_22 : f32 to vector<8x32xf32>
    %69 = arith.addf %68, %67 : vector<8x32xf32>
    %70 = arith.divf %68, %69 : vector<8x32xf32>
    %71 = arith.mulf %62, %11 : vector<8x32xf32>
    %72 = arith.mulf %56, %64 : vector<8x32xf32>
    %73 = arith.addf %71, %72 : vector<8x32xf32>
    %74 = math.tanh %73 : vector<8x32xf32>
    %75 = arith.mulf %70, %74 : vector<8x32xf32>
    %76 = vector.broadcast %c0_i32 : i32 to vector<8x1xi32>
    %77 = arith.cmpi slt, %76, %0 : vector<8x1xi32>
    %78 = vector.broadcast %12 : i32 to vector<8x1xi32>
    %79 = arith.cmpi slt, %78, %0 : vector<8x1xi32>
    %80 = vector.extract_strided_slice %9 {offsets = [0, 0], sizes = [8, 32], strides = [1, 1]} : vector<8x64xf32> to vector<8x32xf32>
    %81 = vector.shape_cast %77 : vector<8x1xi1> to vector<8x1xi1>
    %82 = vector.broadcast %81 : vector<8x1xi1> to vector<8x32xi1>
    %83 = arith.select %82, %50, %80 : vector<8x32xi1>, vector<8x32xf32>
    %84 = vector.shape_cast %77 : vector<8x1xi1> to vector<8x1xi1>
    %85 = vector.broadcast %84 : vector<8x1xi1> to vector<8x32xi1>
    %86 = arith.select %85, %48, %10 : vector<8x32xi1>, vector<8x32xf32>
    %87 = vector.extract_strided_slice %9 {offsets = [0, 32], sizes = [8, 32], strides = [1, 1]} : vector<8x64xf32> to vector<8x32xf32>
    %88 = vector.shape_cast %79 : vector<8x1xi1> to vector<8x1xi1>
    %89 = vector.broadcast %88 : vector<8x1xi1> to vector<8x32xi1>
    %90 = arith.select %89, %75, %87 : vector<8x32xi1>, vector<8x32xf32>
    %91 = vector.shape_cast %79 : vector<8x1xi1> to vector<8x1xi1>
    %92 = vector.broadcast %91 : vector<8x1xi1> to vector<8x32xi1>
    %93 = arith.select %92, %73, %11 : vector<8x32xi1>, vector<8x32xf32>
    %94 = arith.index_cast %14 : i32 to index
    %c0_23 = arith.constant 0 : index
    %95 = vector.load %arg14[%94, %c0_23] : memref<64x32xf32, #tpu.memory_space<vmem>>, vector<8x32xf32>
    tpu.vector_store %arg14[%94, %c0_23], %83 {strides = array<i32>} : memref<64x32xf32, #tpu.memory_space<vmem>>, vector<8x32xf32>,
    %96 = arith.index_cast %16 : i32 to index
    %c0_24 = arith.constant 0 : index
    %97 = vector.load %arg15[%96, %c0_24] : memref<64x32xf32, #tpu.memory_space<vmem>>, vector<8x32xf32>
    tpu.vector_store %arg15[%96, %c0_24], %90 {strides = array<i32>} : memref<64x32xf32, #tpu.memory_space<vmem>>, vector<8x32xf32>,
    %98 = tpu.concatenate %83, %90 in 1 : vector<8x32xf32>, vector<8x32xf32> -> vector<8x64xf32>
    %c1_i32 = arith.constant 1 : i32
    %c7_i32_25 = arith.constant 7 : i32
    %99 = arith.subi %c7_i32_25, %c1_i32 : i32
    %c8_i32_26 = arith.constant 8 : i32
    %100 = arith.muli %c1_i32, %c8_i32_26 : i32
    %101 = tpu.assume_multiple %100, 8 : i32
    %c8_i32_27 = arith.constant 8 : i32
    %102 = arith.muli %99, %c8_i32_27 : i32
    %103 = tpu.assume_multiple %102, 8 : i32
    %cst_28 = arith.constant dense<0.000000e+00> : vector<8x256xf32>
    %104 = tpu.matmul %98, %8, %cst_28 {dimension_numbers = #tpu.dot_dimension_numbers<[1], [0], [0], [1], [0, 0, 1, 1], [], []>} : vector<8x64xf32>, vector<64x256xf32>, vector<8x256xf32> -> vector<8x256xf32>
    %105 = vector.extract_strided_slice %104 {offsets = [0, 0], sizes = [8, 128], strides = [1, 1]} : vector<8x256xf32> to vector<8x128xf32>
    %106 = arith.index_cast %101 : i32 to index
    %c0_29 = arith.constant 0 : index
    %107 = vector.load %arg13[%106, %c0_29] : memref<64x256xf32, #tpu.memory_space<vmem>>, vector<8x128xf32>
    %108 = arith.addf %105, %107 : vector<8x128xf32>
    %109 = vector.extract_strided_slice %104 {offsets = [0, 128], sizes = [8, 128], strides = [1, 1]} : vector<8x256xf32> to vector<8x128xf32>
    %110 = arith.index_cast %103 : i32 to index
    %c128_30 = arith.constant 128 : index
    %111 = vector.load %arg13[%110, %c128_30] : memref<64x256xf32, #tpu.memory_space<vmem>>, vector<8x128xf32>
    %112 = arith.addf %109, %111 : vector<8x128xf32>
    %113 = vector.extract_strided_slice %108 {offsets = [0, 0], sizes = [8, 32], strides = [1, 1]} : vector<8x128xf32> to vector<8x32xf32>
    %114 = arith.negf %113 : vector<8x32xf32>
    %115 = math.exp %114 : vector<8x32xf32>
    %cst_31 = arith.constant 1.000000e+00 : f32
    %116 = vector.broadcast %cst_31 : f32 to vector<8x32xf32>
    %117 = arith.addf %116, %115 : vector<8x32xf32>
    %118 = arith.divf %116, %117 : vector<8x32xf32>
    %119 = vector.extract_strided_slice %108 {offsets = [0, 32], sizes = [8, 32], strides = [1, 1]} : vector<8x128xf32> to vector<8x32xf32>
    %120 = arith.negf %119 : vector<8x32xf32>
    %121 = math.exp %120 : vector<8x32xf32>
    %cst_32 = arith.constant 1.000000e+00 : f32
    %122 = vector.broadcast %cst_32 : f32 to vector<8x32xf32>
    %123 = arith.addf %122, %121 : vector<8x32xf32>
    %124 = arith.divf %122, %123 : vector<8x32xf32>
    %125 = vector.extract_strided_slice %108 {offsets = [0, 64], sizes = [8, 32], strides = [1, 1]} : vector<8x128xf32> to vector<8x32xf32>
    %126 = math.tanh %125 : vector<8x32xf32>
    %127 = vector.extract_strided_slice %108 {offsets = [0, 96], sizes = [8, 32], strides = [1, 1]} : vector<8x128xf32> to vector<8x32xf32>
    %128 = arith.negf %127 : vector<8x32xf32>
    %129 = math.exp %128 : vector<8x32xf32>
    %cst_33 = arith.constant 1.000000e+00 : f32
    %130 = vector.broadcast %cst_33 : f32 to vector<8x32xf32>
    %131 = arith.addf %130, %129 : vector<8x32xf32>
    %132 = arith.divf %130, %131 : vector<8x32xf32>
    %133 = arith.mulf %124, %86 : vector<8x32xf32>
    %134 = arith.mulf %118, %126 : vector<8x32xf32>
    %135 = arith.addf %133, %134 : vector<8x32xf32>
    %136 = math.tanh %135 : vector<8x32xf32>
    %137 = arith.mulf %132, %136 : vector<8x32xf32>
    %138 = vector.extract_strided_slice %112 {offsets = [0, 0], sizes = [8, 32], strides = [1, 1]} : vector<8x128xf32> to vector<8x32xf32>
    %139 = arith.negf %138 : vector<8x32xf32>
    %140 = math.exp %139 : vector<8x32xf32>
    %cst_34 = arith.constant 1.000000e+00 : f32
    %141 = vector.broadcast %cst_34 : f32 to vector<8x32xf32>
    %142 = arith.addf %141, %140 : vector<8x32xf32>
    %143 = arith.divf %141, %142 : vector<8x32xf32>
    %144 = vector.extract_strided_slice %112 {offsets = [0, 32], sizes = [8, 32], strides = [1, 1]} : vector<8x128xf32> to vector<8x32xf32>
    %145 = arith.negf %144 : vector<8x32xf32>
    %146 = math.exp %145 : vector<8x32xf32>
    %cst_35 = arith.constant 1.000000e+00 : f32
    %147 = vector.broadcast %cst_35 : f32 to vector<8x32xf32>
    %148 = arith.addf %147, %146 : vector<8x32xf32>
    %149 = arith.divf %147, %148 : vector<8x32xf32>
    %150 = vector.extract_strided_slice %112 {offsets = [0, 64], sizes = [8, 32], strides = [1, 1]} : vector<8x128xf32> to vector<8x32xf32>
    %151 = math.tanh %150 : vector<8x32xf32>
    %152 = vector.extract_strided_slice %112 {offsets = [0, 96], sizes = [8, 32], strides = [1, 1]} : vector<8x128xf32> to vector<8x32xf32>
    %153 = arith.negf %152 : vector<8x32xf32>
    %154 = math.exp %153 : vector<8x32xf32>
    %cst_36 = arith.constant 1.000000e+00 : f32
    %155 = vector.broadcast %cst_36 : f32 to vector<8x32xf32>
    %156 = arith.addf %155, %154 : vector<8x32xf32>
    %157 = arith.divf %155, %156 : vector<8x32xf32>
    %158 = arith.mulf %149, %93 : vector<8x32xf32>
    %159 = arith.mulf %143, %151 : vector<8x32xf32>
    %160 = arith.addf %158, %159 : vector<8x32xf32>
    %161 = math.tanh %160 : vector<8x32xf32>
    %162 = arith.mulf %157, %161 : vector<8x32xf32>
    %163 = vector.broadcast %c1_i32 : i32 to vector<8x1xi32>
    %164 = arith.cmpi slt, %163, %0 : vector<8x1xi32>
    %165 = vector.broadcast %99 : i32 to vector<8x1xi32>
    %166 = arith.cmpi slt, %165, %0 : vector<8x1xi32>
    %167 = vector.extract_strided_slice %98 {offsets = [0, 0], sizes = [8, 32], strides = [1, 1]} : vector<8x64xf32> to vector<8x32xf32>
    %168 = vector.shape_cast %164 : vector<8x1xi1> to vector<8x1xi1>
    %169 = vector.broadcast %168 : vector<8x1xi1> to vector<8x32xi1>
    %170 = arith.select %169, %137, %167 : vector<8x32xi1>, vector<8x32xf32>
    %171 = vector.shape_cast %164 : vector<8x1xi1> to vector<8x1xi1>
    %172 = vector.broadcast %171 : vector<8x1xi1> to vector<8x32xi1>
    %173 = arith.select %172, %135, %86 : vector<8x32xi1>, vector<8x32xf32>
    %174 = vector.extract_strided_slice %98 {offsets = [0, 32], sizes = [8, 32], strides = [1, 1]} : vector<8x64xf32> to vector<8x32xf32>
    %175 = vector.shape_cast %166 : vector<8x1xi1> to vector<8x1xi1>
    %176 = vector.broadcast %175 : vector<8x1xi1> to vector<8x32xi1>
    %177 = arith.select %176, %162, %174 : vector<8x32xi1>, vector<8x32xf32>
    %178 = vector.shape_cast %166 : vector<8x1xi1> to vector<8x1xi1>
    %179 = vector.broadcast %178 : vector<8x1xi1> to vector<8x32xi1>
    %180 = arith.select %179, %160, %93 : vector<8x32xi1>, vector<8x32xf32>
    %181 = arith.index_cast %101 : i32 to index
    %c0_37 = arith.constant 0 : index
    %182 = vector.load %arg14[%181, %c0_37] : memref<64x32xf32, #tpu.memory_space<vmem>>, vector<8x32xf32>
    tpu.vector_store %arg14[%181, %c0_37], %170 {strides = array<i32>} : memref<64x32xf32, #tpu.memory_space<vmem>>, vector<8x32xf32>,
    %183 = arith.index_cast %103 : i32 to index
    %c0_38 = arith.constant 0 : index
    %184 = vector.load %arg15[%183, %c0_38] : memref<64x32xf32, #tpu.memory_space<vmem>>, vector<8x32xf32>
    tpu.vector_store %arg15[%183, %c0_38], %177 {strides = array<i32>} : memref<64x32xf32, #tpu.memory_space<vmem>>, vector<8x32xf32>,
    %185 = tpu.concatenate %170, %177 in 1 : vector<8x32xf32>, vector<8x32xf32> -> vector<8x64xf32>
    %c2_i32 = arith.constant 2 : i32
    %c7_i32_39 = arith.constant 7 : i32
    %186 = arith.subi %c7_i32_39, %c2_i32 : i32
    %c8_i32_40 = arith.constant 8 : i32
    %187 = arith.muli %c2_i32, %c8_i32_40 : i32
    %188 = tpu.assume_multiple %187, 8 : i32
    %c8_i32_41 = arith.constant 8 : i32
    %189 = arith.muli %186, %c8_i32_41 : i32
    %190 = tpu.assume_multiple %189, 8 : i32
    %cst_42 = arith.constant dense<0.000000e+00> : vector<8x256xf32>
    %191 = tpu.matmul %185, %8, %cst_42 {dimension_numbers = #tpu.dot_dimension_numbers<[1], [0], [0], [1], [0, 0, 1, 1], [], []>} : vector<8x64xf32>, vector<64x256xf32>, vector<8x256xf32> -> vector<8x256xf32>
    %192 = vector.extract_strided_slice %191 {offsets = [0, 0], sizes = [8, 128], strides = [1, 1]} : vector<8x256xf32> to vector<8x128xf32>
    %193 = arith.index_cast %188 : i32 to index
    %c0_43 = arith.constant 0 : index
    %194 = vector.load %arg13[%193, %c0_43] : memref<64x256xf32, #tpu.memory_space<vmem>>, vector<8x128xf32>
    %195 = arith.addf %192, %194 : vector<8x128xf32>
    %196 = vector.extract_strided_slice %191 {offsets = [0, 128], sizes = [8, 128], strides = [1, 1]} : vector<8x256xf32> to vector<8x128xf32>
    %197 = arith.index_cast %190 : i32 to index
    %c128_44 = arith.constant 128 : index
    %198 = vector.load %arg13[%197, %c128_44] : memref<64x256xf32, #tpu.memory_space<vmem>>, vector<8x128xf32>
    %199 = arith.addf %196, %198 : vector<8x128xf32>
    %200 = vector.extract_strided_slice %195 {offsets = [0, 0], sizes = [8, 32], strides = [1, 1]} : vector<8x128xf32> to vector<8x32xf32>
    %201 = arith.negf %200 : vector<8x32xf32>
    %202 = math.exp %201 : vector<8x32xf32>
    %cst_45 = arith.constant 1.000000e+00 : f32
    %203 = vector.broadcast %cst_45 : f32 to vector<8x32xf32>
    %204 = arith.addf %203, %202 : vector<8x32xf32>
    %205 = arith.divf %203, %204 : vector<8x32xf32>
    %206 = vector.extract_strided_slice %195 {offsets = [0, 32], sizes = [8, 32], strides = [1, 1]} : vector<8x128xf32> to vector<8x32xf32>
    %207 = arith.negf %206 : vector<8x32xf32>
    %208 = math.exp %207 : vector<8x32xf32>
    %cst_46 = arith.constant 1.000000e+00 : f32
    %209 = vector.broadcast %cst_46 : f32 to vector<8x32xf32>
    %210 = arith.addf %209, %208 : vector<8x32xf32>
    %211 = arith.divf %209, %210 : vector<8x32xf32>
    %212 = vector.extract_strided_slice %195 {offsets = [0, 64], sizes = [8, 32], strides = [1, 1]} : vector<8x128xf32> to vector<8x32xf32>
    %213 = math.tanh %212 : vector<8x32xf32>
    %214 = vector.extract_strided_slice %195 {offsets = [0, 96], sizes = [8, 32], strides = [1, 1]} : vector<8x128xf32> to vector<8x32xf32>
    %215 = arith.negf %214 : vector<8x32xf32>
    %216 = math.exp %215 : vector<8x32xf32>
    %cst_47 = arith.constant 1.000000e+00 : f32
    %217 = vector.broadcast %cst_47 : f32 to vector<8x32xf32>
    %218 = arith.addf %217, %216 : vector<8x32xf32>
    %219 = arith.divf %217, %218 : vector<8x32xf32>
    %220 = arith.mulf %211, %173 : vector<8x32xf32>
    %221 = arith.mulf %205, %213 : vector<8x32xf32>
    %222 = arith.addf %220, %221 : vector<8x32xf32>
    %223 = math.tanh %222 : vector<8x32xf32>
    %224 = arith.mulf %219, %223 : vector<8x32xf32>
    %225 = vector.extract_strided_slice %199 {offsets = [0, 0], sizes = [8, 32], strides = [1, 1]} : vector<8x128xf32> to vector<8x32xf32>
    %226 = arith.negf %225 : vector<8x32xf32>
    %227 = math.exp %226 : vector<8x32xf32>
    %cst_48 = arith.constant 1.000000e+00 : f32
    %228 = vector.broadcast %cst_48 : f32 to vector<8x32xf32>
    %229 = arith.addf %228, %227 : vector<8x32xf32>
    %230 = arith.divf %228, %229 : vector<8x32xf32>
    %231 = vector.extract_strided_slice %199 {offsets = [0, 32], sizes = [8, 32], strides = [1, 1]} : vector<8x128xf32> to vector<8x32xf32>
    %232 = arith.negf %231 : vector<8x32xf32>
    %233 = math.exp %232 : vector<8x32xf32>
    %cst_49 = arith.constant 1.000000e+00 : f32
    %234 = vector.broadcast %cst_49 : f32 to vector<8x32xf32>
    %235 = arith.addf %234, %233 : vector<8x32xf32>
    %236 = arith.divf %234, %235 : vector<8x32xf32>
    %237 = vector.extract_strided_slice %199 {offsets = [0, 64], sizes = [8, 32], strides = [1, 1]} : vector<8x128xf32> to vector<8x32xf32>
    %238 = math.tanh %237 : vector<8x32xf32>
    %239 = vector.extract_strided_slice %199 {offsets = [0, 96], sizes = [8, 32], strides = [1, 1]} : vector<8x128xf32> to vector<8x32xf32>
    %240 = arith.negf %239 : vector<8x32xf32>
    %241 = math.exp %240 : vector<8x32xf32>
    %cst_50 = arith.constant 1.000000e+00 : f32
    %242 = vector.broadcast %cst_50 : f32 to vector<8x32xf32>
    %243 = arith.addf %242, %241 : vector<8x32xf32>
    %244 = arith.divf %242, %243 : vector<8x32xf32>
    %245 = arith.mulf %236, %180 : vector<8x32xf32>
    %246 = arith.mulf %230, %238 : vector<8x32xf32>
    %247 = arith.addf %245, %246 : vector<8x32xf32>
    %248 = math.tanh %247 : vector<8x32xf32>
    %249 = arith.mulf %244, %248 : vector<8x32xf32>
    %250 = vector.broadcast %c2_i32 : i32 to vector<8x1xi32>
    %251 = arith.cmpi slt, %250, %0 : vector<8x1xi32>
    %252 = vector.broadcast %186 : i32 to vector<8x1xi32>
    %253 = arith.cmpi slt, %252, %0 : vector<8x1xi32>
    %254 = vector.extract_strided_slice %185 {offsets = [0, 0], sizes = [8, 32], strides = [1, 1]} : vector<8x64xf32> to vector<8x32xf32>
    %255 = vector.shape_cast %251 : vector<8x1xi1> to vector<8x1xi1>
    %256 = vector.broadcast %255 : vector<8x1xi1> to vector<8x32xi1>
    %257 = arith.select %256, %224, %254 : vector<8x32xi1>, vector<8x32xf32>
    %258 = vector.shape_cast %251 : vector<8x1xi1> to vector<8x1xi1>
    %259 = vector.broadcast %258 : vector<8x1xi1> to vector<8x32xi1>
    %260 = arith.select %259, %222, %173 : vector<8x32xi1>, vector<8x32xf32>
    %261 = vector.extract_strided_slice %185 {offsets = [0, 32], sizes = [8, 32], strides = [1, 1]} : vector<8x64xf32> to vector<8x32xf32>
    %262 = vector.shape_cast %253 : vector<8x1xi1> to vector<8x1xi1>
    %263 = vector.broadcast %262 : vector<8x1xi1> to vector<8x32xi1>
    %264 = arith.select %263, %249, %261 : vector<8x32xi1>, vector<8x32xf32>
    %265 = vector.shape_cast %253 : vector<8x1xi1> to vector<8x1xi1>
    %266 = vector.broadcast %265 : vector<8x1xi1> to vector<8x32xi1>
    %267 = arith.select %266, %247, %180 : vector<8x32xi1>, vector<8x32xf32>
    %268 = arith.index_cast %188 : i32 to index
    %c0_51 = arith.constant 0 : index
    %269 = vector.load %arg14[%268, %c0_51] : memref<64x32xf32, #tpu.memory_space<vmem>>, vector<8x32xf32>
    tpu.vector_store %arg14[%268, %c0_51], %257 {strides = array<i32>} : memref<64x32xf32, #tpu.memory_space<vmem>>, vector<8x32xf32>,
    %270 = arith.index_cast %190 : i32 to index
    %c0_52 = arith.constant 0 : index
    %271 = vector.load %arg15[%270, %c0_52] : memref<64x32xf32, #tpu.memory_space<vmem>>, vector<8x32xf32>
    tpu.vector_store %arg15[%270, %c0_52], %264 {strides = array<i32>} : memref<64x32xf32, #tpu.memory_space<vmem>>, vector<8x32xf32>,
    %272 = tpu.concatenate %257, %264 in 1 : vector<8x32xf32>, vector<8x32xf32> -> vector<8x64xf32>
    %c3_i32 = arith.constant 3 : i32
    %c7_i32_53 = arith.constant 7 : i32
    %273 = arith.subi %c7_i32_53, %c3_i32 : i32
    %c8_i32_54 = arith.constant 8 : i32
    %274 = arith.muli %c3_i32, %c8_i32_54 : i32
    %275 = tpu.assume_multiple %274, 8 : i32
    %c8_i32_55 = arith.constant 8 : i32
    %276 = arith.muli %273, %c8_i32_55 : i32
    %277 = tpu.assume_multiple %276, 8 : i32
    %cst_56 = arith.constant dense<0.000000e+00> : vector<8x256xf32>
    %278 = tpu.matmul %272, %8, %cst_56 {dimension_numbers = #tpu.dot_dimension_numbers<[1], [0], [0], [1], [0, 0, 1, 1], [], []>} : vector<8x64xf32>, vector<64x256xf32>, vector<8x256xf32> -> vector<8x256xf32>
    %279 = vector.extract_strided_slice %278 {offsets = [0, 0], sizes = [8, 128], strides = [1, 1]} : vector<8x256xf32> to vector<8x128xf32>
    %280 = arith.index_cast %275 : i32 to index
    %c0_57 = arith.constant 0 : index
    %281 = vector.load %arg13[%280, %c0_57] : memref<64x256xf32, #tpu.memory_space<vmem>>, vector<8x128xf32>
    %282 = arith.addf %279, %281 : vector<8x128xf32>
    %283 = vector.extract_strided_slice %278 {offsets = [0, 128], sizes = [8, 128], strides = [1, 1]} : vector<8x256xf32> to vector<8x128xf32>
    %284 = arith.index_cast %277 : i32 to index
    %c128_58 = arith.constant 128 : index
    %285 = vector.load %arg13[%284, %c128_58] : memref<64x256xf32, #tpu.memory_space<vmem>>, vector<8x128xf32>
    %286 = arith.addf %283, %285 : vector<8x128xf32>
    %287 = vector.extract_strided_slice %282 {offsets = [0, 0], sizes = [8, 32], strides = [1, 1]} : vector<8x128xf32> to vector<8x32xf32>
    %288 = arith.negf %287 : vector<8x32xf32>
    %289 = math.exp %288 : vector<8x32xf32>
    %cst_59 = arith.constant 1.000000e+00 : f32
    %290 = vector.broadcast %cst_59 : f32 to vector<8x32xf32>
    %291 = arith.addf %290, %289 : vector<8x32xf32>
    %292 = arith.divf %290, %291 : vector<8x32xf32>
    %293 = vector.extract_strided_slice %282 {offsets = [0, 32], sizes = [8, 32], strides = [1, 1]} : vector<8x128xf32> to vector<8x32xf32>
    %294 = arith.negf %293 : vector<8x32xf32>
    %295 = math.exp %294 : vector<8x32xf32>
    %cst_60 = arith.constant 1.000000e+00 : f32
    %296 = vector.broadcast %cst_60 : f32 to vector<8x32xf32>
    %297 = arith.addf %296, %295 : vector<8x32xf32>
    %298 = arith.divf %296, %297 : vector<8x32xf32>
    %299 = vector.extract_strided_slice %282 {offsets = [0, 64], sizes = [8, 32], strides = [1, 1]} : vector<8x128xf32> to vector<8x32xf32>
    %300 = math.tanh %299 : vector<8x32xf32>
    %301 = vector.extract_strided_slice %282 {offsets = [0, 96], sizes = [8, 32], strides = [1, 1]} : vector<8x128xf32> to vector<8x32xf32>
    %302 = arith.negf %301 : vector<8x32xf32>
    %303 = math.exp %302 : vector<8x32xf32>
    %cst_61 = arith.constant 1.000000e+00 : f32
    %304 = vector.broadcast %cst_61 : f32 to vector<8x32xf32>
    %305 = arith.addf %304, %303 : vector<8x32xf32>
    %306 = arith.divf %304, %305 : vector<8x32xf32>
    %307 = arith.mulf %298, %260 : vector<8x32xf32>
    %308 = arith.mulf %292, %300 : vector<8x32xf32>
    %309 = arith.addf %307, %308 : vector<8x32xf32>
    %310 = math.tanh %309 : vector<8x32xf32>
    %311 = arith.mulf %306, %310 : vector<8x32xf32>
    %312 = vector.extract_strided_slice %286 {offsets = [0, 0], sizes = [8, 32], strides = [1, 1]} : vector<8x128xf32> to vector<8x32xf32>
    %313 = arith.negf %312 : vector<8x32xf32>
    %314 = math.exp %313 : vector<8x32xf32>
    %cst_62 = arith.constant 1.000000e+00 : f32
    %315 = vector.broadcast %cst_62 : f32 to vector<8x32xf32>
    %316 = arith.addf %315, %314 : vector<8x32xf32>
    %317 = arith.divf %315, %316 : vector<8x32xf32>
    %318 = vector.extract_strided_slice %286 {offsets = [0, 32], sizes = [8, 32], strides = [1, 1]} : vector<8x128xf32> to vector<8x32xf32>
    %319 = arith.negf %318 : vector<8x32xf32>
    %320 = math.exp %319 : vector<8x32xf32>
    %cst_63 = arith.constant 1.000000e+00 : f32
    %321 = vector.broadcast %cst_63 : f32 to vector<8x32xf32>
    %322 = arith.addf %321, %320 : vector<8x32xf32>
    %323 = arith.divf %321, %322 : vector<8x32xf32>
    %324 = vector.extract_strided_slice %286 {offsets = [0, 64], sizes = [8, 32], strides = [1, 1]} : vector<8x128xf32> to vector<8x32xf32>
    %325 = math.tanh %324 : vector<8x32xf32>
    %326 = vector.extract_strided_slice %286 {offsets = [0, 96], sizes = [8, 32], strides = [1, 1]} : vector<8x128xf32> to vector<8x32xf32>
    %327 = arith.negf %326 : vector<8x32xf32>
    %328 = math.exp %327 : vector<8x32xf32>
    %cst_64 = arith.constant 1.000000e+00 : f32
    %329 = vector.broadcast %cst_64 : f32 to vector<8x32xf32>
    %330 = arith.addf %329, %328 : vector<8x32xf32>
    %331 = arith.divf %329, %330 : vector<8x32xf32>
    %332 = arith.mulf %323, %267 : vector<8x32xf32>
    %333 = arith.mulf %317, %325 : vector<8x32xf32>
    %334 = arith.addf %332, %333 : vector<8x32xf32>
    %335 = math.tanh %334 : vector<8x32xf32>
    %336 = arith.mulf %331, %335 : vector<8x32xf32>
    %337 = vector.broadcast %c3_i32 : i32 to vector<8x1xi32>
    %338 = arith.cmpi slt, %337, %0 : vector<8x1xi32>
    %339 = vector.broadcast %273 : i32 to vector<8x1xi32>
    %340 = arith.cmpi slt, %339, %0 : vector<8x1xi32>
    %341 = vector.extract_strided_slice %272 {offsets = [0, 0], sizes = [8, 32], strides = [1, 1]} : vector<8x64xf32> to vector<8x32xf32>
    %342 = vector.shape_cast %338 : vector<8x1xi1> to vector<8x1xi1>
    %343 = vector.broadcast %342 : vector<8x1xi1> to vector<8x32xi1>
    %344 = arith.select %343, %311, %341 : vector<8x32xi1>, vector<8x32xf32>
    %345 = vector.shape_cast %338 : vector<8x1xi1> to vector<8x1xi1>
    %346 = vector.broadcast %345 : vector<8x1xi1> to vector<8x32xi1>
    %347 = arith.select %346, %309, %260 : vector<8x32xi1>, vector<8x32xf32>
    %348 = vector.extract_strided_slice %272 {offsets = [0, 32], sizes = [8, 32], strides = [1, 1]} : vector<8x64xf32> to vector<8x32xf32>
    %349 = vector.shape_cast %340 : vector<8x1xi1> to vector<8x1xi1>
    %350 = vector.broadcast %349 : vector<8x1xi1> to vector<8x32xi1>
    %351 = arith.select %350, %336, %348 : vector<8x32xi1>, vector<8x32xf32>
    %352 = vector.shape_cast %340 : vector<8x1xi1> to vector<8x1xi1>
    %353 = vector.broadcast %352 : vector<8x1xi1> to vector<8x32xi1>
    %354 = arith.select %353, %334, %267 : vector<8x32xi1>, vector<8x32xf32>
    %355 = arith.index_cast %275 : i32 to index
    %c0_65 = arith.constant 0 : index
    %356 = vector.load %arg14[%355, %c0_65] : memref<64x32xf32, #tpu.memory_space<vmem>>, vector<8x32xf32>
    tpu.vector_store %arg14[%355, %c0_65], %344 {strides = array<i32>} : memref<64x32xf32, #tpu.memory_space<vmem>>, vector<8x32xf32>,
    %357 = arith.index_cast %277 : i32 to index
    %c0_66 = arith.constant 0 : index
    %358 = vector.load %arg15[%357, %c0_66] : memref<64x32xf32, #tpu.memory_space<vmem>>, vector<8x32xf32>
    tpu.vector_store %arg15[%357, %c0_66], %351 {strides = array<i32>} : memref<64x32xf32, #tpu.memory_space<vmem>>, vector<8x32xf32>,
    %359 = tpu.concatenate %344, %351 in 1 : vector<8x32xf32>, vector<8x32xf32> -> vector<8x64xf32>
    %c4_i32 = arith.constant 4 : i32
    %c7_i32_67 = arith.constant 7 : i32
    %360 = arith.subi %c7_i32_67, %c4_i32 : i32
    %c8_i32_68 = arith.constant 8 : i32
    %361 = arith.muli %c4_i32, %c8_i32_68 : i32
    %362 = tpu.assume_multiple %361, 8 : i32
    %c8_i32_69 = arith.constant 8 : i32
    %363 = arith.muli %360, %c8_i32_69 : i32
    %364 = tpu.assume_multiple %363, 8 : i32
    %cst_70 = arith.constant dense<0.000000e+00> : vector<8x256xf32>
    %365 = tpu.matmul %359, %8, %cst_70 {dimension_numbers = #tpu.dot_dimension_numbers<[1], [0], [0], [1], [0, 0, 1, 1], [], []>} : vector<8x64xf32>, vector<64x256xf32>, vector<8x256xf32> -> vector<8x256xf32>
    %366 = vector.extract_strided_slice %365 {offsets = [0, 0], sizes = [8, 128], strides = [1, 1]} : vector<8x256xf32> to vector<8x128xf32>
    %367 = arith.index_cast %362 : i32 to index
    %c0_71 = arith.constant 0 : index
    %368 = vector.load %arg13[%367, %c0_71] : memref<64x256xf32, #tpu.memory_space<vmem>>, vector<8x128xf32>
    %369 = arith.addf %366, %368 : vector<8x128xf32>
    %370 = vector.extract_strided_slice %365 {offsets = [0, 128], sizes = [8, 128], strides = [1, 1]} : vector<8x256xf32> to vector<8x128xf32>
    %371 = arith.index_cast %364 : i32 to index
    %c128_72 = arith.constant 128 : index
    %372 = vector.load %arg13[%371, %c128_72] : memref<64x256xf32, #tpu.memory_space<vmem>>, vector<8x128xf32>
    %373 = arith.addf %370, %372 : vector<8x128xf32>
    %374 = vector.extract_strided_slice %369 {offsets = [0, 0], sizes = [8, 32], strides = [1, 1]} : vector<8x128xf32> to vector<8x32xf32>
    %375 = arith.negf %374 : vector<8x32xf32>
    %376 = math.exp %375 : vector<8x32xf32>
    %cst_73 = arith.constant 1.000000e+00 : f32
    %377 = vector.broadcast %cst_73 : f32 to vector<8x32xf32>
    %378 = arith.addf %377, %376 : vector<8x32xf32>
    %379 = arith.divf %377, %378 : vector<8x32xf32>
    %380 = vector.extract_strided_slice %369 {offsets = [0, 32], sizes = [8, 32], strides = [1, 1]} : vector<8x128xf32> to vector<8x32xf32>
    %381 = arith.negf %380 : vector<8x32xf32>
    %382 = math.exp %381 : vector<8x32xf32>
    %cst_74 = arith.constant 1.000000e+00 : f32
    %383 = vector.broadcast %cst_74 : f32 to vector<8x32xf32>
    %384 = arith.addf %383, %382 : vector<8x32xf32>
    %385 = arith.divf %383, %384 : vector<8x32xf32>
    %386 = vector.extract_strided_slice %369 {offsets = [0, 64], sizes = [8, 32], strides = [1, 1]} : vector<8x128xf32> to vector<8x32xf32>
    %387 = math.tanh %386 : vector<8x32xf32>
    %388 = vector.extract_strided_slice %369 {offsets = [0, 96], sizes = [8, 32], strides = [1, 1]} : vector<8x128xf32> to vector<8x32xf32>
    %389 = arith.negf %388 : vector<8x32xf32>
    %390 = math.exp %389 : vector<8x32xf32>
    %cst_75 = arith.constant 1.000000e+00 : f32
    %391 = vector.broadcast %cst_75 : f32 to vector<8x32xf32>
    %392 = arith.addf %391, %390 : vector<8x32xf32>
    %393 = arith.divf %391, %392 : vector<8x32xf32>
    %394 = arith.mulf %385, %347 : vector<8x32xf32>
    %395 = arith.mulf %379, %387 : vector<8x32xf32>
    %396 = arith.addf %394, %395 : vector<8x32xf32>
    %397 = math.tanh %396 : vector<8x32xf32>
    %398 = arith.mulf %393, %397 : vector<8x32xf32>
    %399 = vector.extract_strided_slice %373 {offsets = [0, 0], sizes = [8, 32], strides = [1, 1]} : vector<8x128xf32> to vector<8x32xf32>
    %400 = arith.negf %399 : vector<8x32xf32>
    %401 = math.exp %400 : vector<8x32xf32>
    %cst_76 = arith.constant 1.000000e+00 : f32
    %402 = vector.broadcast %cst_76 : f32 to vector<8x32xf32>
    %403 = arith.addf %402, %401 : vector<8x32xf32>
    %404 = arith.divf %402, %403 : vector<8x32xf32>
    %405 = vector.extract_strided_slice %373 {offsets = [0, 32], sizes = [8, 32], strides = [1, 1]} : vector<8x128xf32> to vector<8x32xf32>
    %406 = arith.negf %405 : vector<8x32xf32>
    %407 = math.exp %406 : vector<8x32xf32>
    %cst_77 = arith.constant 1.000000e+00 : f32
    %408 = vector.broadcast %cst_77 : f32 to vector<8x32xf32>
    %409 = arith.addf %408, %407 : vector<8x32xf32>
    %410 = arith.divf %408, %409 : vector<8x32xf32>
    %411 = vector.extract_strided_slice %373 {offsets = [0, 64], sizes = [8, 32], strides = [1, 1]} : vector<8x128xf32> to vector<8x32xf32>
    %412 = math.tanh %411 : vector<8x32xf32>
    %413 = vector.extract_strided_slice %373 {offsets = [0, 96], sizes = [8, 32], strides = [1, 1]} : vector<8x128xf32> to vector<8x32xf32>
    %414 = arith.negf %413 : vector<8x32xf32>
    %415 = math.exp %414 : vector<8x32xf32>
    %cst_78 = arith.constant 1.000000e+00 : f32
    %416 = vector.broadcast %cst_78 : f32 to vector<8x32xf32>
    %417 = arith.addf %416, %415 : vector<8x32xf32>
    %418 = arith.divf %416, %417 : vector<8x32xf32>
    %419 = arith.mulf %410, %354 : vector<8x32xf32>
    %420 = arith.mulf %404, %412 : vector<8x32xf32>
    %421 = arith.addf %419, %420 : vector<8x32xf32>
    %422 = math.tanh %421 : vector<8x32xf32>
    %423 = arith.mulf %418, %422 : vector<8x32xf32>
    %424 = vector.broadcast %c4_i32 : i32 to vector<8x1xi32>
    %425 = arith.cmpi slt, %424, %0 : vector<8x1xi32>
    %426 = vector.broadcast %360 : i32 to vector<8x1xi32>
    %427 = arith.cmpi slt, %426, %0 : vector<8x1xi32>
    %428 = vector.extract_strided_slice %359 {offsets = [0, 0], sizes = [8, 32], strides = [1, 1]} : vector<8x64xf32> to vector<8x32xf32>
    %429 = vector.shape_cast %425 : vector<8x1xi1> to vector<8x1xi1>
    %430 = vector.broadcast %429 : vector<8x1xi1> to vector<8x32xi1>
    %431 = arith.select %430, %398, %428 : vector<8x32xi1>, vector<8x32xf32>
    %432 = vector.shape_cast %425 : vector<8x1xi1> to vector<8x1xi1>
    %433 = vector.broadcast %432 : vector<8x1xi1> to vector<8x32xi1>
    %434 = arith.select %433, %396, %347 : vector<8x32xi1>, vector<8x32xf32>
    %435 = vector.extract_strided_slice %359 {offsets = [0, 32], sizes = [8, 32], strides = [1, 1]} : vector<8x64xf32> to vector<8x32xf32>
    %436 = vector.shape_cast %427 : vector<8x1xi1> to vector<8x1xi1>
    %437 = vector.broadcast %436 : vector<8x1xi1> to vector<8x32xi1>
    %438 = arith.select %437, %423, %435 : vector<8x32xi1>, vector<8x32xf32>
    %439 = vector.shape_cast %427 : vector<8x1xi1> to vector<8x1xi1>
    %440 = vector.broadcast %439 : vector<8x1xi1> to vector<8x32xi1>
    %441 = arith.select %440, %421, %354 : vector<8x32xi1>, vector<8x32xf32>
    %442 = arith.index_cast %362 : i32 to index
    %c0_79 = arith.constant 0 : index
    %443 = vector.load %arg14[%442, %c0_79] : memref<64x32xf32, #tpu.memory_space<vmem>>, vector<8x32xf32>
    tpu.vector_store %arg14[%442, %c0_79], %431 {strides = array<i32>} : memref<64x32xf32, #tpu.memory_space<vmem>>, vector<8x32xf32>,
    %444 = arith.index_cast %364 : i32 to index
    %c0_80 = arith.constant 0 : index
    %445 = vector.load %arg15[%444, %c0_80] : memref<64x32xf32, #tpu.memory_space<vmem>>, vector<8x32xf32>
    tpu.vector_store %arg15[%444, %c0_80], %438 {strides = array<i32>} : memref<64x32xf32, #tpu.memory_space<vmem>>, vector<8x32xf32>,
    %446 = tpu.concatenate %431, %438 in 1 : vector<8x32xf32>, vector<8x32xf32> -> vector<8x64xf32>
    %c5_i32 = arith.constant 5 : i32
    %c7_i32_81 = arith.constant 7 : i32
    %447 = arith.subi %c7_i32_81, %c5_i32 : i32
    %c8_i32_82 = arith.constant 8 : i32
    %448 = arith.muli %c5_i32, %c8_i32_82 : i32
    %449 = tpu.assume_multiple %448, 8 : i32
    %c8_i32_83 = arith.constant 8 : i32
    %450 = arith.muli %447, %c8_i32_83 : i32
    %451 = tpu.assume_multiple %450, 8 : i32
    %cst_84 = arith.constant dense<0.000000e+00> : vector<8x256xf32>
    %452 = tpu.matmul %446, %8, %cst_84 {dimension_numbers = #tpu.dot_dimension_numbers<[1], [0], [0], [1], [0, 0, 1, 1], [], []>} : vector<8x64xf32>, vector<64x256xf32>, vector<8x256xf32> -> vector<8x256xf32>
    %453 = vector.extract_strided_slice %452 {offsets = [0, 0], sizes = [8, 128], strides = [1, 1]} : vector<8x256xf32> to vector<8x128xf32>
    %454 = arith.index_cast %449 : i32 to index
    %c0_85 = arith.constant 0 : index
    %455 = vector.load %arg13[%454, %c0_85] : memref<64x256xf32, #tpu.memory_space<vmem>>, vector<8x128xf32>
    %456 = arith.addf %453, %455 : vector<8x128xf32>
    %457 = vector.extract_strided_slice %452 {offsets = [0, 128], sizes = [8, 128], strides = [1, 1]} : vector<8x256xf32> to vector<8x128xf32>
    %458 = arith.index_cast %451 : i32 to index
    %c128_86 = arith.constant 128 : index
    %459 = vector.load %arg13[%458, %c128_86] : memref<64x256xf32, #tpu.memory_space<vmem>>, vector<8x128xf32>
    %460 = arith.addf %457, %459 : vector<8x128xf32>
    %461 = vector.extract_strided_slice %456 {offsets = [0, 0], sizes = [8, 32], strides = [1, 1]} : vector<8x128xf32> to vector<8x32xf32>
    %462 = arith.negf %461 : vector<8x32xf32>
    %463 = math.exp %462 : vector<8x32xf32>
    %cst_87 = arith.constant 1.000000e+00 : f32
    %464 = vector.broadcast %cst_87 : f32 to vector<8x32xf32>
    %465 = arith.addf %464, %463 : vector<8x32xf32>
    %466 = arith.divf %464, %465 : vector<8x32xf32>
    %467 = vector.extract_strided_slice %456 {offsets = [0, 32], sizes = [8, 32], strides = [1, 1]} : vector<8x128xf32> to vector<8x32xf32>
    %468 = arith.negf %467 : vector<8x32xf32>
    %469 = math.exp %468 : vector<8x32xf32>
    %cst_88 = arith.constant 1.000000e+00 : f32
    %470 = vector.broadcast %cst_88 : f32 to vector<8x32xf32>
    %471 = arith.addf %470, %469 : vector<8x32xf32>
    %472 = arith.divf %470, %471 : vector<8x32xf32>
    %473 = vector.extract_strided_slice %456 {offsets = [0, 64], sizes = [8, 32], strides = [1, 1]} : vector<8x128xf32> to vector<8x32xf32>
    %474 = math.tanh %473 : vector<8x32xf32>
    %475 = vector.extract_strided_slice %456 {offsets = [0, 96], sizes = [8, 32], strides = [1, 1]} : vector<8x128xf32> to vector<8x32xf32>
    %476 = arith.negf %475 : vector<8x32xf32>
    %477 = math.exp %476 : vector<8x32xf32>
    %cst_89 = arith.constant 1.000000e+00 : f32
    %478 = vector.broadcast %cst_89 : f32 to vector<8x32xf32>
    %479 = arith.addf %478, %477 : vector<8x32xf32>
    %480 = arith.divf %478, %479 : vector<8x32xf32>
    %481 = arith.mulf %472, %434 : vector<8x32xf32>
    %482 = arith.mulf %466, %474 : vector<8x32xf32>
    %483 = arith.addf %481, %482 : vector<8x32xf32>
    %484 = math.tanh %483 : vector<8x32xf32>
    %485 = arith.mulf %480, %484 : vector<8x32xf32>
    %486 = vector.extract_strided_slice %460 {offsets = [0, 0], sizes = [8, 32], strides = [1, 1]} : vector<8x128xf32> to vector<8x32xf32>
    %487 = arith.negf %486 : vector<8x32xf32>
    %488 = math.exp %487 : vector<8x32xf32>
    %cst_90 = arith.constant 1.000000e+00 : f32
    %489 = vector.broadcast %cst_90 : f32 to vector<8x32xf32>
    %490 = arith.addf %489, %488 : vector<8x32xf32>
    %491 = arith.divf %489, %490 : vector<8x32xf32>
    %492 = vector.extract_strided_slice %460 {offsets = [0, 32], sizes = [8, 32], strides = [1, 1]} : vector<8x128xf32> to vector<8x32xf32>
    %493 = arith.negf %492 : vector<8x32xf32>
    %494 = math.exp %493 : vector<8x32xf32>
    %cst_91 = arith.constant 1.000000e+00 : f32
    %495 = vector.broadcast %cst_91 : f32 to vector<8x32xf32>
    %496 = arith.addf %495, %494 : vector<8x32xf32>
    %497 = arith.divf %495, %496 : vector<8x32xf32>
    %498 = vector.extract_strided_slice %460 {offsets = [0, 64], sizes = [8, 32], strides = [1, 1]} : vector<8x128xf32> to vector<8x32xf32>
    %499 = math.tanh %498 : vector<8x32xf32>
    %500 = vector.extract_strided_slice %460 {offsets = [0, 96], sizes = [8, 32], strides = [1, 1]} : vector<8x128xf32> to vector<8x32xf32>
    %501 = arith.negf %500 : vector<8x32xf32>
    %502 = math.exp %501 : vector<8x32xf32>
    %cst_92 = arith.constant 1.000000e+00 : f32
    %503 = vector.broadcast %cst_92 : f32 to vector<8x32xf32>
    %504 = arith.addf %503, %502 : vector<8x32xf32>
    %505 = arith.divf %503, %504 : vector<8x32xf32>
    %506 = arith.mulf %497, %441 : vector<8x32xf32>
    %507 = arith.mulf %491, %499 : vector<8x32xf32>
    %508 = arith.addf %506, %507 : vector<8x32xf32>
    %509 = math.tanh %508 : vector<8x32xf32>
    %510 = arith.mulf %505, %509 : vector<8x32xf32>
    %511 = vector.broadcast %c5_i32 : i32 to vector<8x1xi32>
    %512 = arith.cmpi slt, %511, %0 : vector<8x1xi32>
    %513 = vector.broadcast %447 : i32 to vector<8x1xi32>
    %514 = arith.cmpi slt, %513, %0 : vector<8x1xi32>
    %515 = vector.extract_strided_slice %446 {offsets = [0, 0], sizes = [8, 32], strides = [1, 1]} : vector<8x64xf32> to vector<8x32xf32>
    %516 = vector.shape_cast %512 : vector<8x1xi1> to vector<8x1xi1>
    %517 = vector.broadcast %516 : vector<8x1xi1> to vector<8x32xi1>
    %518 = arith.select %517, %485, %515 : vector<8x32xi1>, vector<8x32xf32>
    %519 = vector.shape_cast %512 : vector<8x1xi1> to vector<8x1xi1>
    %520 = vector.broadcast %519 : vector<8x1xi1> to vector<8x32xi1>
    %521 = arith.select %520, %483, %434 : vector<8x32xi1>, vector<8x32xf32>
    %522 = vector.extract_strided_slice %446 {offsets = [0, 32], sizes = [8, 32], strides = [1, 1]} : vector<8x64xf32> to vector<8x32xf32>
    %523 = vector.shape_cast %514 : vector<8x1xi1> to vector<8x1xi1>
    %524 = vector.broadcast %523 : vector<8x1xi1> to vector<8x32xi1>
    %525 = arith.select %524, %510, %522 : vector<8x32xi1>, vector<8x32xf32>
    %526 = vector.shape_cast %514 : vector<8x1xi1> to vector<8x1xi1>
    %527 = vector.broadcast %526 : vector<8x1xi1> to vector<8x32xi1>
    %528 = arith.select %527, %508, %441 : vector<8x32xi1>, vector<8x32xf32>
    %529 = arith.index_cast %449 : i32 to index
    %c0_93 = arith.constant 0 : index
    %530 = vector.load %arg14[%529, %c0_93] : memref<64x32xf32, #tpu.memory_space<vmem>>, vector<8x32xf32>
    tpu.vector_store %arg14[%529, %c0_93], %518 {strides = array<i32>} : memref<64x32xf32, #tpu.memory_space<vmem>>, vector<8x32xf32>,
    %531 = arith.index_cast %451 : i32 to index
    %c0_94 = arith.constant 0 : index
    %532 = vector.load %arg15[%531, %c0_94] : memref<64x32xf32, #tpu.memory_space<vmem>>, vector<8x32xf32>
    tpu.vector_store %arg15[%531, %c0_94], %525 {strides = array<i32>} : memref<64x32xf32, #tpu.memory_space<vmem>>, vector<8x32xf32>,
    %533 = tpu.concatenate %518, %525 in 1 : vector<8x32xf32>, vector<8x32xf32> -> vector<8x64xf32>
    %c6_i32 = arith.constant 6 : i32
    %c7_i32_95 = arith.constant 7 : i32
    %534 = arith.subi %c7_i32_95, %c6_i32 : i32
    %c8_i32_96 = arith.constant 8 : i32
    %535 = arith.muli %c6_i32, %c8_i32_96 : i32
    %536 = tpu.assume_multiple %535, 8 : i32
    %c8_i32_97 = arith.constant 8 : i32
    %537 = arith.muli %534, %c8_i32_97 : i32
    %538 = tpu.assume_multiple %537, 8 : i32
    %cst_98 = arith.constant dense<0.000000e+00> : vector<8x256xf32>
    %539 = tpu.matmul %533, %8, %cst_98 {dimension_numbers = #tpu.dot_dimension_numbers<[1], [0], [0], [1], [0, 0, 1, 1], [], []>} : vector<8x64xf32>, vector<64x256xf32>, vector<8x256xf32> -> vector<8x256xf32>
    %540 = vector.extract_strided_slice %539 {offsets = [0, 0], sizes = [8, 128], strides = [1, 1]} : vector<8x256xf32> to vector<8x128xf32>
    %541 = arith.index_cast %536 : i32 to index
    %c0_99 = arith.constant 0 : index
    %542 = vector.load %arg13[%541, %c0_99] : memref<64x256xf32, #tpu.memory_space<vmem>>, vector<8x128xf32>
    %543 = arith.addf %540, %542 : vector<8x128xf32>
    %544 = vector.extract_strided_slice %539 {offsets = [0, 128], sizes = [8, 128], strides = [1, 1]} : vector<8x256xf32> to vector<8x128xf32>
    %545 = arith.index_cast %538 : i32 to index
    %c128_100 = arith.constant 128 : index
    %546 = vector.load %arg13[%545, %c128_100] : memref<64x256xf32, #tpu.memory_space<vmem>>, vector<8x128xf32>
    %547 = arith.addf %544, %546 : vector<8x128xf32>
    %548 = vector.extract_strided_slice %543 {offsets = [0, 0], sizes = [8, 32], strides = [1, 1]} : vector<8x128xf32> to vector<8x32xf32>
    %549 = arith.negf %548 : vector<8x32xf32>
    %550 = math.exp %549 : vector<8x32xf32>
    %cst_101 = arith.constant 1.000000e+00 : f32
    %551 = vector.broadcast %cst_101 : f32 to vector<8x32xf32>
    %552 = arith.addf %551, %550 : vector<8x32xf32>
    %553 = arith.divf %551, %552 : vector<8x32xf32>
    %554 = vector.extract_strided_slice %543 {offsets = [0, 32], sizes = [8, 32], strides = [1, 1]} : vector<8x128xf32> to vector<8x32xf32>
    %555 = arith.negf %554 : vector<8x32xf32>
    %556 = math.exp %555 : vector<8x32xf32>
    %cst_102 = arith.constant 1.000000e+00 : f32
    %557 = vector.broadcast %cst_102 : f32 to vector<8x32xf32>
    %558 = arith.addf %557, %556 : vector<8x32xf32>
    %559 = arith.divf %557, %558 : vector<8x32xf32>
    %560 = vector.extract_strided_slice %543 {offsets = [0, 64], sizes = [8, 32], strides = [1, 1]} : vector<8x128xf32> to vector<8x32xf32>
    %561 = math.tanh %560 : vector<8x32xf32>
    %562 = vector.extract_strided_slice %543 {offsets = [0, 96], sizes = [8, 32], strides = [1, 1]} : vector<8x128xf32> to vector<8x32xf32>
    %563 = arith.negf %562 : vector<8x32xf32>
    %564 = math.exp %563 : vector<8x32xf32>
    %cst_103 = arith.constant 1.000000e+00 : f32
    %565 = vector.broadcast %cst_103 : f32 to vector<8x32xf32>
    %566 = arith.addf %565, %564 : vector<8x32xf32>
    %567 = arith.divf %565, %566 : vector<8x32xf32>
    %568 = arith.mulf %559, %521 : vector<8x32xf32>
    %569 = arith.mulf %553, %561 : vector<8x32xf32>
    %570 = arith.addf %568, %569 : vector<8x32xf32>
    %571 = math.tanh %570 : vector<8x32xf32>
    %572 = arith.mulf %567, %571 : vector<8x32xf32>
    %573 = vector.extract_strided_slice %547 {offsets = [0, 0], sizes = [8, 32], strides = [1, 1]} : vector<8x128xf32> to vector<8x32xf32>
    %574 = arith.negf %573 : vector<8x32xf32>
    %575 = math.exp %574 : vector<8x32xf32>
    %cst_104 = arith.constant 1.000000e+00 : f32
    %576 = vector.broadcast %cst_104 : f32 to vector<8x32xf32>
    %577 = arith.addf %576, %575 : vector<8x32xf32>
    %578 = arith.divf %576, %577 : vector<8x32xf32>
    %579 = vector.extract_strided_slice %547 {offsets = [0, 32], sizes = [8, 32], strides = [1, 1]} : vector<8x128xf32> to vector<8x32xf32>
    %580 = arith.negf %579 : vector<8x32xf32>
    %581 = math.exp %580 : vector<8x32xf32>
    %cst_105 = arith.constant 1.000000e+00 : f32
    %582 = vector.broadcast %cst_105 : f32 to vector<8x32xf32>
    %583 = arith.addf %582, %581 : vector<8x32xf32>
    %584 = arith.divf %582, %583 : vector<8x32xf32>
    %585 = vector.extract_strided_slice %547 {offsets = [0, 64], sizes = [8, 32], strides = [1, 1]} : vector<8x128xf32> to vector<8x32xf32>
    %586 = math.tanh %585 : vector<8x32xf32>
    %587 = vector.extract_strided_slice %547 {offsets = [0, 96], sizes = [8, 32], strides = [1, 1]} : vector<8x128xf32> to vector<8x32xf32>
    %588 = arith.negf %587 : vector<8x32xf32>
    %589 = math.exp %588 : vector<8x32xf32>
    %cst_106 = arith.constant 1.000000e+00 : f32
    %590 = vector.broadcast %cst_106 : f32 to vector<8x32xf32>
    %591 = arith.addf %590, %589 : vector<8x32xf32>
    %592 = arith.divf %590, %591 : vector<8x32xf32>
    %593 = arith.mulf %584, %528 : vector<8x32xf32>
    %594 = arith.mulf %578, %586 : vector<8x32xf32>
    %595 = arith.addf %593, %594 : vector<8x32xf32>
    %596 = math.tanh %595 : vector<8x32xf32>
    %597 = arith.mulf %592, %596 : vector<8x32xf32>
    %598 = vector.broadcast %c6_i32 : i32 to vector<8x1xi32>
    %599 = arith.cmpi slt, %598, %0 : vector<8x1xi32>
    %600 = vector.broadcast %534 : i32 to vector<8x1xi32>
    %601 = arith.cmpi slt, %600, %0 : vector<8x1xi32>
    %602 = vector.extract_strided_slice %533 {offsets = [0, 0], sizes = [8, 32], strides = [1, 1]} : vector<8x64xf32> to vector<8x32xf32>
    %603 = vector.shape_cast %599 : vector<8x1xi1> to vector<8x1xi1>
    %604 = vector.broadcast %603 : vector<8x1xi1> to vector<8x32xi1>
    %605 = arith.select %604, %572, %602 : vector<8x32xi1>, vector<8x32xf32>
    %606 = vector.shape_cast %599 : vector<8x1xi1> to vector<8x1xi1>
    %607 = vector.broadcast %606 : vector<8x1xi1> to vector<8x32xi1>
    %608 = arith.select %607, %570, %521 : vector<8x32xi1>, vector<8x32xf32>
    %609 = vector.extract_strided_slice %533 {offsets = [0, 32], sizes = [8, 32], strides = [1, 1]} : vector<8x64xf32> to vector<8x32xf32>
    %610 = vector.shape_cast %601 : vector<8x1xi1> to vector<8x1xi1>
    %611 = vector.broadcast %610 : vector<8x1xi1> to vector<8x32xi1>
    %612 = arith.select %611, %597, %609 : vector<8x32xi1>, vector<8x32xf32>
    %613 = vector.shape_cast %601 : vector<8x1xi1> to vector<8x1xi1>
    %614 = vector.broadcast %613 : vector<8x1xi1> to vector<8x32xi1>
    %615 = arith.select %614, %595, %528 : vector<8x32xi1>, vector<8x32xf32>
    %616 = arith.index_cast %536 : i32 to index
    %c0_107 = arith.constant 0 : index
    %617 = vector.load %arg14[%616, %c0_107] : memref<64x32xf32, #tpu.memory_space<vmem>>, vector<8x32xf32>
    tpu.vector_store %arg14[%616, %c0_107], %605 {strides = array<i32>} : memref<64x32xf32, #tpu.memory_space<vmem>>, vector<8x32xf32>,
    %618 = arith.index_cast %538 : i32 to index
    %c0_108 = arith.constant 0 : index
    %619 = vector.load %arg15[%618, %c0_108] : memref<64x32xf32, #tpu.memory_space<vmem>>, vector<8x32xf32>
    tpu.vector_store %arg15[%618, %c0_108], %612 {strides = array<i32>} : memref<64x32xf32, #tpu.memory_space<vmem>>, vector<8x32xf32>,
    %620 = tpu.concatenate %605, %612 in 1 : vector<8x32xf32>, vector<8x32xf32> -> vector<8x64xf32>
    %c7_i32_109 = arith.constant 7 : i32
    %c7_i32_110 = arith.constant 7 : i32
    %621 = arith.subi %c7_i32_110, %c7_i32_109 : i32
    %c8_i32_111 = arith.constant 8 : i32
    %622 = arith.muli %c7_i32_109, %c8_i32_111 : i32
    %623 = tpu.assume_multiple %622, 8 : i32
    %c8_i32_112 = arith.constant 8 : i32
    %624 = arith.muli %621, %c8_i32_112 : i32
    %625 = tpu.assume_multiple %624, 8 : i32
    %cst_113 = arith.constant dense<0.000000e+00> : vector<8x256xf32>
    %626 = tpu.matmul %620, %8, %cst_113 {dimension_numbers = #tpu.dot_dimension_numbers<[1], [0], [0], [1], [0, 0, 1, 1], [], []>} : vector<8x64xf32>, vector<64x256xf32>, vector<8x256xf32> -> vector<8x256xf32>
    %627 = vector.extract_strided_slice %626 {offsets = [0, 0], sizes = [8, 128], strides = [1, 1]} : vector<8x256xf32> to vector<8x128xf32>
    %628 = arith.index_cast %623 : i32 to index
    %c0_114 = arith.constant 0 : index
    %629 = vector.load %arg13[%628, %c0_114] : memref<64x256xf32, #tpu.memory_space<vmem>>, vector<8x128xf32>
    %630 = arith.addf %627, %629 : vector<8x128xf32>
    %631 = vector.extract_strided_slice %626 {offsets = [0, 128], sizes = [8, 128], strides = [1, 1]} : vector<8x256xf32> to vector<8x128xf32>
    %632 = arith.index_cast %625 : i32 to index
    %c128_115 = arith.constant 128 : index
    %633 = vector.load %arg13[%632, %c128_115] : memref<64x256xf32, #tpu.memory_space<vmem>>, vector<8x128xf32>
    %634 = arith.addf %631, %633 : vector<8x128xf32>
    %635 = vector.extract_strided_slice %630 {offsets = [0, 0], sizes = [8, 32], strides = [1, 1]} : vector<8x128xf32> to vector<8x32xf32>
    %636 = arith.negf %635 : vector<8x32xf32>
    %637 = math.exp %636 : vector<8x32xf32>
    %cst_116 = arith.constant 1.000000e+00 : f32
    %638 = vector.broadcast %cst_116 : f32 to vector<8x32xf32>
    %639 = arith.addf %638, %637 : vector<8x32xf32>
    %640 = arith.divf %638, %639 : vector<8x32xf32>
    %641 = vector.extract_strided_slice %630 {offsets = [0, 32], sizes = [8, 32], strides = [1, 1]} : vector<8x128xf32> to vector<8x32xf32>
    %642 = arith.negf %641 : vector<8x32xf32>
    %643 = math.exp %642 : vector<8x32xf32>
    %cst_117 = arith.constant 1.000000e+00 : f32
    %644 = vector.broadcast %cst_117 : f32 to vector<8x32xf32>
    %645 = arith.addf %644, %643 : vector<8x32xf32>
    %646 = arith.divf %644, %645 : vector<8x32xf32>
    %647 = vector.extract_strided_slice %630 {offsets = [0, 64], sizes = [8, 32], strides = [1, 1]} : vector<8x128xf32> to vector<8x32xf32>
    %648 = math.tanh %647 : vector<8x32xf32>
    %649 = vector.extract_strided_slice %630 {offsets = [0, 96], sizes = [8, 32], strides = [1, 1]} : vector<8x128xf32> to vector<8x32xf32>
    %650 = arith.negf %649 : vector<8x32xf32>
    %651 = math.exp %650 : vector<8x32xf32>
    %cst_118 = arith.constant 1.000000e+00 : f32
    %652 = vector.broadcast %cst_118 : f32 to vector<8x32xf32>
    %653 = arith.addf %652, %651 : vector<8x32xf32>
    %654 = arith.divf %652, %653 : vector<8x32xf32>
    %655 = arith.mulf %646, %608 : vector<8x32xf32>
    %656 = arith.mulf %640, %648 : vector<8x32xf32>
    %657 = arith.addf %655, %656 : vector<8x32xf32>
    %658 = math.tanh %657 : vector<8x32xf32>
    %659 = arith.mulf %654, %658 : vector<8x32xf32>
    %660 = vector.extract_strided_slice %634 {offsets = [0, 0], sizes = [8, 32], strides = [1, 1]} : vector<8x128xf32> to vector<8x32xf32>
    %661 = arith.negf %660 : vector<8x32xf32>
    %662 = math.exp %661 : vector<8x32xf32>
    %cst_119 = arith.constant 1.000000e+00 : f32
    %663 = vector.broadcast %cst_119 : f32 to vector<8x32xf32>
    %664 = arith.addf %663, %662 : vector<8x32xf32>
    %665 = arith.divf %663, %664 : vector<8x32xf32>
    %666 = vector.extract_strided_slice %634 {offsets = [0, 32], sizes = [8, 32], strides = [1, 1]} : vector<8x128xf32> to vector<8x32xf32>
    %667 = arith.negf %666 : vector<8x32xf32>
    %668 = math.exp %667 : vector<8x32xf32>
    %cst_120 = arith.constant 1.000000e+00 : f32
    %669 = vector.broadcast %cst_120 : f32 to vector<8x32xf32>
    %670 = arith.addf %669, %668 : vector<8x32xf32>
    %671 = arith.divf %669, %670 : vector<8x32xf32>
    %672 = vector.extract_strided_slice %634 {offsets = [0, 64], sizes = [8, 32], strides = [1, 1]} : vector<8x128xf32> to vector<8x32xf32>
    %673 = math.tanh %672 : vector<8x32xf32>
    %674 = vector.extract_strided_slice %634 {offsets = [0, 96], sizes = [8, 32], strides = [1, 1]} : vector<8x128xf32> to vector<8x32xf32>
    %675 = arith.negf %674 : vector<8x32xf32>
    %676 = math.exp %675 : vector<8x32xf32>
    %cst_121 = arith.constant 1.000000e+00 : f32
    %677 = vector.broadcast %cst_121 : f32 to vector<8x32xf32>
    %678 = arith.addf %677, %676 : vector<8x32xf32>
    %679 = arith.divf %677, %678 : vector<8x32xf32>
    %680 = arith.mulf %671, %615 : vector<8x32xf32>
    %681 = arith.mulf %665, %673 : vector<8x32xf32>
    %682 = arith.addf %680, %681 : vector<8x32xf32>
    %683 = math.tanh %682 : vector<8x32xf32>
    %684 = arith.mulf %679, %683 : vector<8x32xf32>
    %685 = vector.broadcast %c7_i32_109 : i32 to vector<8x1xi32>
    %686 = arith.cmpi slt, %685, %0 : vector<8x1xi32>
    %687 = vector.broadcast %621 : i32 to vector<8x1xi32>
    %688 = arith.cmpi slt, %687, %0 : vector<8x1xi32>
    %689 = vector.extract_strided_slice %620 {offsets = [0, 0], sizes = [8, 32], strides = [1, 1]} : vector<8x64xf32> to vector<8x32xf32>
    %690 = vector.shape_cast %686 : vector<8x1xi1> to vector<8x1xi1>
    %691 = vector.broadcast %690 : vector<8x1xi1> to vector<8x32xi1>
    %692 = arith.select %691, %659, %689 : vector<8x32xi1>, vector<8x32xf32>
    %693 = vector.shape_cast %686 : vector<8x1xi1> to vector<8x1xi1>
    %694 = vector.broadcast %693 : vector<8x1xi1> to vector<8x32xi1>
    %695 = arith.select %694, %657, %608 : vector<8x32xi1>, vector<8x32xf32>
    %696 = vector.extract_strided_slice %620 {offsets = [0, 32], sizes = [8, 32], strides = [1, 1]} : vector<8x64xf32> to vector<8x32xf32>
    %697 = vector.shape_cast %688 : vector<8x1xi1> to vector<8x1xi1>
    %698 = vector.broadcast %697 : vector<8x1xi1> to vector<8x32xi1>
    %699 = arith.select %698, %684, %696 : vector<8x32xi1>, vector<8x32xf32>
    %700 = vector.shape_cast %688 : vector<8x1xi1> to vector<8x1xi1>
    %701 = vector.broadcast %700 : vector<8x1xi1> to vector<8x32xi1>
    %702 = arith.select %701, %682, %615 : vector<8x32xi1>, vector<8x32xf32>
    %703 = arith.index_cast %623 : i32 to index
    %c0_122 = arith.constant 0 : index
    %704 = vector.load %arg14[%703, %c0_122] : memref<64x32xf32, #tpu.memory_space<vmem>>, vector<8x32xf32>
    tpu.vector_store %arg14[%703, %c0_122], %692 {strides = array<i32>} : memref<64x32xf32, #tpu.memory_space<vmem>>, vector<8x32xf32>,
    %705 = arith.index_cast %625 : i32 to index
    %c0_123 = arith.constant 0 : index
    %706 = vector.load %arg15[%705, %c0_123] : memref<64x32xf32, #tpu.memory_space<vmem>>, vector<8x32xf32>
    tpu.vector_store %arg15[%705, %c0_123], %699 {strides = array<i32>} : memref<64x32xf32, #tpu.memory_space<vmem>>, vector<8x32xf32>,
    %707 = tpu.concatenate %692, %699 in 1 : vector<8x32xf32>, vector<8x32xf32> -> vector<8x64xf32>
    %c8_i32_124 = arith.constant 8 : i32
    %c0_125 = arith.constant 0 : index
    %c0_126 = arith.constant 0 : index
    %708 = vector.load %arg14[%c0_125, %c0_126] : memref<64x32xf32, #tpu.memory_space<vmem>>, vector<64x32xf32>
    %c0_127 = arith.constant 0 : index
    %c0_128 = arith.constant 0 : index
    %709 = vector.load %arg5[%c0_127, %c0_128] : memref<64x256xf32, #tpu.memory_space<vmem>>, vector<32x256xf32>
    %cst_129 = arith.constant dense<0.000000e+00> : vector<64x256xf32>
    %710 = tpu.matmul %708, %709, %cst_129 {dimension_numbers = #tpu.dot_dimension_numbers<[1], [0], [0], [1], [0, 0, 1, 1], [], []>} : vector<64x32xf32>, vector<32x256xf32>, vector<64x256xf32> -> vector<64x256xf32>
    %c0_130 = arith.constant 0 : index
    %c0_131 = arith.constant 0 : index
    %711 = vector.load %arg15[%c0_130, %c0_131] : memref<64x32xf32, #tpu.memory_space<vmem>>, vector<64x32xf32>
    %c32 = arith.constant 32 : index
    %c0_132 = arith.constant 0 : index
    %712 = vector.load %arg5[%c32, %c0_132] : memref<64x256xf32, #tpu.memory_space<vmem>>, vector<32x256xf32>
    %cst_133 = arith.constant dense<0.000000e+00> : vector<64x256xf32>
    %713 = tpu.matmul %711, %712, %cst_133 {dimension_numbers = #tpu.dot_dimension_numbers<[1], [0], [0], [1], [0, 0, 1, 1], [], []>} : vector<64x32xf32>, vector<32x256xf32>, vector<64x256xf32> -> vector<64x256xf32>
    %714 = arith.addf %710, %713 : vector<64x256xf32>
    %c0_134 = arith.constant 0 : index
    %c0_135 = arith.constant 0 : index
    %715 = vector.load %arg6[%c0_134, %c0_135] : memref<1x256xf32, #tpu.memory_space<vmem>>, vector<1x256xf32>
    %716 = vector.broadcast %715 : vector<1x256xf32> to vector<64x256xf32>
    %717 = arith.addf %714, %716 : vector<64x256xf32>
    %c0_136 = arith.constant 0 : index
    %c0_137 = arith.constant 0 : index
    %718 = vector.load %arg13[%c0_136, %c0_137] : memref<64x256xf32, #tpu.memory_space<vmem>>, vector<64x256xf32>
    tpu.vector_store %arg13[%c0_136, %c0_137], %717 {strides = array<i32>} : memref<64x256xf32, #tpu.memory_space<vmem>>, vector<64x256xf32>,
    %c0_138 = arith.constant 0 : index
    %c0_139 = arith.constant 0 : index
    %719 = vector.load %arg7[%c0_138, %c0_139] : memref<64x256xf32, #tpu.memory_space<vmem>>, vector<64x256xf32>
    %cst_140 = arith.constant 0.000000e+00 : f32
    %720 = vector.broadcast %cst_140 : f32 to vector<8x64xf32>
    %cst_141 = arith.constant 0.000000e+00 : f32
    %721 = vector.broadcast %cst_141 : f32 to vector<8x32xf32>
    %cst_142 = arith.constant 0.000000e+00 : f32
    %722 = vector.broadcast %cst_142 : f32 to vector<8x32xf32>
    %c0_i32_143 = arith.constant 0 : i32
    %c7_i32_144 = arith.constant 7 : i32
    %723 = arith.subi %c7_i32_144, %c0_i32_143 : i32
    %c8_i32_145 = arith.constant 8 : i32
    %724 = arith.muli %c0_i32_143, %c8_i32_145 : i32
    %725 = tpu.assume_multiple %724, 8 : i32
    %c8_i32_146 = arith.constant 8 : i32
    %726 = arith.muli %723, %c8_i32_146 : i32
    %727 = tpu.assume_multiple %726, 8 : i32
    %cst_147 = arith.constant dense<0.000000e+00> : vector<8x256xf32>
    %728 = tpu.matmul %720, %719, %cst_147 {dimension_numbers = #tpu.dot_dimension_numbers<[1], [0], [0], [1], [0, 0, 1, 1], [], []>} : vector<8x64xf32>, vector<64x256xf32>, vector<8x256xf32> -> vector<8x256xf32>
    %729 = vector.extract_strided_slice %728 {offsets = [0, 0], sizes = [8, 128], strides = [1, 1]} : vector<8x256xf32> to vector<8x128xf32>
    %730 = arith.index_cast %725 : i32 to index
    %c0_148 = arith.constant 0 : index
    %731 = vector.load %arg13[%730, %c0_148] : memref<64x256xf32, #tpu.memory_space<vmem>>, vector<8x128xf32>
    %732 = arith.addf %729, %731 : vector<8x128xf32>
    %733 = vector.extract_strided_slice %728 {offsets = [0, 128], sizes = [8, 128], strides = [1, 1]} : vector<8x256xf32> to vector<8x128xf32>
    %734 = arith.index_cast %727 : i32 to index
    %c128_149 = arith.constant 128 : index
    %735 = vector.load %arg13[%734, %c128_149] : memref<64x256xf32, #tpu.memory_space<vmem>>, vector<8x128xf32>
    %736 = arith.addf %733, %735 : vector<8x128xf32>
    %737 = vector.extract_strided_slice %732 {offsets = [0, 0], sizes = [8, 32], strides = [1, 1]} : vector<8x128xf32> to vector<8x32xf32>
    %738 = arith.negf %737 : vector<8x32xf32>
    %739 = math.exp %738 : vector<8x32xf32>
    %cst_150 = arith.constant 1.000000e+00 : f32
    %740 = vector.broadcast %cst_150 : f32 to vector<8x32xf32>
    %741 = arith.addf %740, %739 : vector<8x32xf32>
    %742 = arith.divf %740, %741 : vector<8x32xf32>
    %743 = vector.extract_strided_slice %732 {offsets = [0, 32], sizes = [8, 32], strides = [1, 1]} : vector<8x128xf32> to vector<8x32xf32>
    %744 = arith.negf %743 : vector<8x32xf32>
    %745 = math.exp %744 : vector<8x32xf32>
    %cst_151 = arith.constant 1.000000e+00 : f32
    %746 = vector.broadcast %cst_151 : f32 to vector<8x32xf32>
    %747 = arith.addf %746, %745 : vector<8x32xf32>
    %748 = arith.divf %746, %747 : vector<8x32xf32>
    %749 = vector.extract_strided_slice %732 {offsets = [0, 64], sizes = [8, 32], strides = [1, 1]} : vector<8x128xf32> to vector<8x32xf32>
    %750 = math.tanh %749 : vector<8x32xf32>
    %751 = vector.extract_strided_slice %732 {offsets = [0, 96], sizes = [8, 32], strides = [1, 1]} : vector<8x128xf32> to vector<8x32xf32>
    %752 = arith.negf %751 : vector<8x32xf32>
    %753 = math.exp %752 : vector<8x32xf32>
    %cst_152 = arith.constant 1.000000e+00 : f32
    %754 = vector.broadcast %cst_152 : f32 to vector<8x32xf32>
    %755 = arith.addf %754, %753 : vector<8x32xf32>
    %756 = arith.divf %754, %755 : vector<8x32xf32>
    %757 = arith.mulf %748, %721 : vector<8x32xf32>
    %758 = arith.mulf %742, %750 : vector<8x32xf32>
    %759 = arith.addf %757, %758 : vector<8x32xf32>
    %760 = math.tanh %759 : vector<8x32xf32>
    %761 = arith.mulf %756, %760 : vector<8x32xf32>
    %762 = vector.extract_strided_slice %736 {offsets = [0, 0], sizes = [8, 32], strides = [1, 1]} : vector<8x128xf32> to vector<8x32xf32>
    %763 = arith.negf %762 : vector<8x32xf32>
    %764 = math.exp %763 : vector<8x32xf32>
    %cst_153 = arith.constant 1.000000e+00 : f32
    %765 = vector.broadcast %cst_153 : f32 to vector<8x32xf32>
    %766 = arith.addf %765, %764 : vector<8x32xf32>
    %767 = arith.divf %765, %766 : vector<8x32xf32>
    %768 = vector.extract_strided_slice %736 {offsets = [0, 32], sizes = [8, 32], strides = [1, 1]} : vector<8x128xf32> to vector<8x32xf32>
    %769 = arith.negf %768 : vector<8x32xf32>
    %770 = math.exp %769 : vector<8x32xf32>
    %cst_154 = arith.constant 1.000000e+00 : f32
    %771 = vector.broadcast %cst_154 : f32 to vector<8x32xf32>
    %772 = arith.addf %771, %770 : vector<8x32xf32>
    %773 = arith.divf %771, %772 : vector<8x32xf32>
    %774 = vector.extract_strided_slice %736 {offsets = [0, 64], sizes = [8, 32], strides = [1, 1]} : vector<8x128xf32> to vector<8x32xf32>
    %775 = math.tanh %774 : vector<8x32xf32>
    %776 = vector.extract_strided_slice %736 {offsets = [0, 96], sizes = [8, 32], strides = [1, 1]} : vector<8x128xf32> to vector<8x32xf32>
    %777 = arith.negf %776 : vector<8x32xf32>
    %778 = math.exp %777 : vector<8x32xf32>
    %cst_155 = arith.constant 1.000000e+00 : f32
    %779 = vector.broadcast %cst_155 : f32 to vector<8x32xf32>
    %780 = arith.addf %779, %778 : vector<8x32xf32>
    %781 = arith.divf %779, %780 : vector<8x32xf32>
    %782 = arith.mulf %773, %722 : vector<8x32xf32>
    %783 = arith.mulf %767, %775 : vector<8x32xf32>
    %784 = arith.addf %782, %783 : vector<8x32xf32>
    %785 = math.tanh %784 : vector<8x32xf32>
    %786 = arith.mulf %781, %785 : vector<8x32xf32>
    %787 = vector.broadcast %c0_i32_143 : i32 to vector<8x1xi32>
    %788 = arith.cmpi slt, %787, %0 : vector<8x1xi32>
    %789 = vector.broadcast %723 : i32 to vector<8x1xi32>
    %790 = arith.cmpi slt, %789, %0 : vector<8x1xi32>
    %791 = vector.extract_strided_slice %720 {offsets = [0, 0], sizes = [8, 32], strides = [1, 1]} : vector<8x64xf32> to vector<8x32xf32>
    %792 = vector.shape_cast %788 : vector<8x1xi1> to vector<8x1xi1>
    %793 = vector.broadcast %792 : vector<8x1xi1> to vector<8x32xi1>
    %794 = arith.select %793, %761, %791 : vector<8x32xi1>, vector<8x32xf32>
    %795 = vector.shape_cast %788 : vector<8x1xi1> to vector<8x1xi1>
    %796 = vector.broadcast %795 : vector<8x1xi1> to vector<8x32xi1>
    %797 = arith.select %796, %759, %721 : vector<8x32xi1>, vector<8x32xf32>
    %798 = vector.extract_strided_slice %720 {offsets = [0, 32], sizes = [8, 32], strides = [1, 1]} : vector<8x64xf32> to vector<8x32xf32>
    %799 = vector.shape_cast %790 : vector<8x1xi1> to vector<8x1xi1>
    %800 = vector.broadcast %799 : vector<8x1xi1> to vector<8x32xi1>
    %801 = arith.select %800, %786, %798 : vector<8x32xi1>, vector<8x32xf32>
    %802 = vector.shape_cast %790 : vector<8x1xi1> to vector<8x1xi1>
    %803 = vector.broadcast %802 : vector<8x1xi1> to vector<8x32xi1>
    %804 = arith.select %803, %784, %722 : vector<8x32xi1>, vector<8x32xf32>
    %805 = tpu.concatenate %794, %801 in 1 : vector<8x32xf32>, vector<8x32xf32> -> vector<8x64xf32>
    %c1_i32_156 = arith.constant 1 : i32
    %c7_i32_157 = arith.constant 7 : i32
    %806 = arith.subi %c7_i32_157, %c1_i32_156 : i32
    %c8_i32_158 = arith.constant 8 : i32
    %807 = arith.muli %c1_i32_156, %c8_i32_158 : i32
    %808 = tpu.assume_multiple %807, 8 : i32
    %c8_i32_159 = arith.constant 8 : i32
    %809 = arith.muli %806, %c8_i32_159 : i32
    %810 = tpu.assume_multiple %809, 8 : i32
    %cst_160 = arith.constant dense<0.000000e+00> : vector<8x256xf32>
    %811 = tpu.matmul %805, %719, %cst_160 {dimension_numbers = #tpu.dot_dimension_numbers<[1], [0], [0], [1], [0, 0, 1, 1], [], []>} : vector<8x64xf32>, vector<64x256xf32>, vector<8x256xf32> -> vector<8x256xf32>
    %812 = vector.extract_strided_slice %811 {offsets = [0, 0], sizes = [8, 128], strides = [1, 1]} : vector<8x256xf32> to vector<8x128xf32>
    %813 = arith.index_cast %808 : i32 to index
    %c0_161 = arith.constant 0 : index
    %814 = vector.load %arg13[%813, %c0_161] : memref<64x256xf32, #tpu.memory_space<vmem>>, vector<8x128xf32>
    %815 = arith.addf %812, %814 : vector<8x128xf32>
    %816 = vector.extract_strided_slice %811 {offsets = [0, 128], sizes = [8, 128], strides = [1, 1]} : vector<8x256xf32> to vector<8x128xf32>
    %817 = arith.index_cast %810 : i32 to index
    %c128_162 = arith.constant 128 : index
    %818 = vector.load %arg13[%817, %c128_162] : memref<64x256xf32, #tpu.memory_space<vmem>>, vector<8x128xf32>
    %819 = arith.addf %816, %818 : vector<8x128xf32>
    %820 = vector.extract_strided_slice %815 {offsets = [0, 0], sizes = [8, 32], strides = [1, 1]} : vector<8x128xf32> to vector<8x32xf32>
    %821 = arith.negf %820 : vector<8x32xf32>
    %822 = math.exp %821 : vector<8x32xf32>
    %cst_163 = arith.constant 1.000000e+00 : f32
    %823 = vector.broadcast %cst_163 : f32 to vector<8x32xf32>
    %824 = arith.addf %823, %822 : vector<8x32xf32>
    %825 = arith.divf %823, %824 : vector<8x32xf32>
    %826 = vector.extract_strided_slice %815 {offsets = [0, 32], sizes = [8, 32], strides = [1, 1]} : vector<8x128xf32> to vector<8x32xf32>
    %827 = arith.negf %826 : vector<8x32xf32>
    %828 = math.exp %827 : vector<8x32xf32>
    %cst_164 = arith.constant 1.000000e+00 : f32
    %829 = vector.broadcast %cst_164 : f32 to vector<8x32xf32>
    %830 = arith.addf %829, %828 : vector<8x32xf32>
    %831 = arith.divf %829, %830 : vector<8x32xf32>
    %832 = vector.extract_strided_slice %815 {offsets = [0, 64], sizes = [8, 32], strides = [1, 1]} : vector<8x128xf32> to vector<8x32xf32>
    %833 = math.tanh %832 : vector<8x32xf32>
    %834 = vector.extract_strided_slice %815 {offsets = [0, 96], sizes = [8, 32], strides = [1, 1]} : vector<8x128xf32> to vector<8x32xf32>
    %835 = arith.negf %834 : vector<8x32xf32>
    %836 = math.exp %835 : vector<8x32xf32>
    %cst_165 = arith.constant 1.000000e+00 : f32
    %837 = vector.broadcast %cst_165 : f32 to vector<8x32xf32>
    %838 = arith.addf %837, %836 : vector<8x32xf32>
    %839 = arith.divf %837, %838 : vector<8x32xf32>
    %840 = arith.mulf %831, %797 : vector<8x32xf32>
    %841 = arith.mulf %825, %833 : vector<8x32xf32>
    %842 = arith.addf %840, %841 : vector<8x32xf32>
    %843 = math.tanh %842 : vector<8x32xf32>
    %844 = arith.mulf %839, %843 : vector<8x32xf32>
    %845 = vector.extract_strided_slice %819 {offsets = [0, 0], sizes = [8, 32], strides = [1, 1]} : vector<8x128xf32> to vector<8x32xf32>
    %846 = arith.negf %845 : vector<8x32xf32>
    %847 = math.exp %846 : vector<8x32xf32>
    %cst_166 = arith.constant 1.000000e+00 : f32
    %848 = vector.broadcast %cst_166 : f32 to vector<8x32xf32>
    %849 = arith.addf %848, %847 : vector<8x32xf32>
    %850 = arith.divf %848, %849 : vector<8x32xf32>
    %851 = vector.extract_strided_slice %819 {offsets = [0, 32], sizes = [8, 32], strides = [1, 1]} : vector<8x128xf32> to vector<8x32xf32>
    %852 = arith.negf %851 : vector<8x32xf32>
    %853 = math.exp %852 : vector<8x32xf32>
    %cst_167 = arith.constant 1.000000e+00 : f32
    %854 = vector.broadcast %cst_167 : f32 to vector<8x32xf32>
    %855 = arith.addf %854, %853 : vector<8x32xf32>
    %856 = arith.divf %854, %855 : vector<8x32xf32>
    %857 = vector.extract_strided_slice %819 {offsets = [0, 64], sizes = [8, 32], strides = [1, 1]} : vector<8x128xf32> to vector<8x32xf32>
    %858 = math.tanh %857 : vector<8x32xf32>
    %859 = vector.extract_strided_slice %819 {offsets = [0, 96], sizes = [8, 32], strides = [1, 1]} : vector<8x128xf32> to vector<8x32xf32>
    %860 = arith.negf %859 : vector<8x32xf32>
    %861 = math.exp %860 : vector<8x32xf32>
    %cst_168 = arith.constant 1.000000e+00 : f32
    %862 = vector.broadcast %cst_168 : f32 to vector<8x32xf32>
    %863 = arith.addf %862, %861 : vector<8x32xf32>
    %864 = arith.divf %862, %863 : vector<8x32xf32>
    %865 = arith.mulf %856, %804 : vector<8x32xf32>
    %866 = arith.mulf %850, %858 : vector<8x32xf32>
    %867 = arith.addf %865, %866 : vector<8x32xf32>
    %868 = math.tanh %867 : vector<8x32xf32>
    %869 = arith.mulf %864, %868 : vector<8x32xf32>
    %870 = vector.broadcast %c1_i32_156 : i32 to vector<8x1xi32>
    %871 = arith.cmpi slt, %870, %0 : vector<8x1xi32>
    %872 = vector.broadcast %806 : i32 to vector<8x1xi32>
    %873 = arith.cmpi slt, %872, %0 : vector<8x1xi32>
    %874 = vector.extract_strided_slice %805 {offsets = [0, 0], sizes = [8, 32], strides = [1, 1]} : vector<8x64xf32> to vector<8x32xf32>
    %875 = vector.shape_cast %871 : vector<8x1xi1> to vector<8x1xi1>
    %876 = vector.broadcast %875 : vector<8x1xi1> to vector<8x32xi1>
    %877 = arith.select %876, %844, %874 : vector<8x32xi1>, vector<8x32xf32>
    %878 = vector.shape_cast %871 : vector<8x1xi1> to vector<8x1xi1>
    %879 = vector.broadcast %878 : vector<8x1xi1> to vector<8x32xi1>
    %880 = arith.select %879, %842, %797 : vector<8x32xi1>, vector<8x32xf32>
    %881 = vector.extract_strided_slice %805 {offsets = [0, 32], sizes = [8, 32], strides = [1, 1]} : vector<8x64xf32> to vector<8x32xf32>
    %882 = vector.shape_cast %873 : vector<8x1xi1> to vector<8x1xi1>
    %883 = vector.broadcast %882 : vector<8x1xi1> to vector<8x32xi1>
    %884 = arith.select %883, %869, %881 : vector<8x32xi1>, vector<8x32xf32>
    %885 = vector.shape_cast %873 : vector<8x1xi1> to vector<8x1xi1>
    %886 = vector.broadcast %885 : vector<8x1xi1> to vector<8x32xi1>
    %887 = arith.select %886, %867, %804 : vector<8x32xi1>, vector<8x32xf32>
    %888 = tpu.concatenate %877, %884 in 1 : vector<8x32xf32>, vector<8x32xf32> -> vector<8x64xf32>
    %c2_i32_169 = arith.constant 2 : i32
    %c7_i32_170 = arith.constant 7 : i32
    %889 = arith.subi %c7_i32_170, %c2_i32_169 : i32
    %c8_i32_171 = arith.constant 8 : i32
    %890 = arith.muli %c2_i32_169, %c8_i32_171 : i32
    %891 = tpu.assume_multiple %890, 8 : i32
    %c8_i32_172 = arith.constant 8 : i32
    %892 = arith.muli %889, %c8_i32_172 : i32
    %893 = tpu.assume_multiple %892, 8 : i32
    %cst_173 = arith.constant dense<0.000000e+00> : vector<8x256xf32>
    %894 = tpu.matmul %888, %719, %cst_173 {dimension_numbers = #tpu.dot_dimension_numbers<[1], [0], [0], [1], [0, 0, 1, 1], [], []>} : vector<8x64xf32>, vector<64x256xf32>, vector<8x256xf32> -> vector<8x256xf32>
    %895 = vector.extract_strided_slice %894 {offsets = [0, 0], sizes = [8, 128], strides = [1, 1]} : vector<8x256xf32> to vector<8x128xf32>
    %896 = arith.index_cast %891 : i32 to index
    %c0_174 = arith.constant 0 : index
    %897 = vector.load %arg13[%896, %c0_174] : memref<64x256xf32, #tpu.memory_space<vmem>>, vector<8x128xf32>
    %898 = arith.addf %895, %897 : vector<8x128xf32>
    %899 = vector.extract_strided_slice %894 {offsets = [0, 128], sizes = [8, 128], strides = [1, 1]} : vector<8x256xf32> to vector<8x128xf32>
    %900 = arith.index_cast %893 : i32 to index
    %c128_175 = arith.constant 128 : index
    %901 = vector.load %arg13[%900, %c128_175] : memref<64x256xf32, #tpu.memory_space<vmem>>, vector<8x128xf32>
    %902 = arith.addf %899, %901 : vector<8x128xf32>
    %903 = vector.extract_strided_slice %898 {offsets = [0, 0], sizes = [8, 32], strides = [1, 1]} : vector<8x128xf32> to vector<8x32xf32>
    %904 = arith.negf %903 : vector<8x32xf32>
    %905 = math.exp %904 : vector<8x32xf32>
    %cst_176 = arith.constant 1.000000e+00 : f32
    %906 = vector.broadcast %cst_176 : f32 to vector<8x32xf32>
    %907 = arith.addf %906, %905 : vector<8x32xf32>
    %908 = arith.divf %906, %907 : vector<8x32xf32>
    %909 = vector.extract_strided_slice %898 {offsets = [0, 32], sizes = [8, 32], strides = [1, 1]} : vector<8x128xf32> to vector<8x32xf32>
    %910 = arith.negf %909 : vector<8x32xf32>
    %911 = math.exp %910 : vector<8x32xf32>
    %cst_177 = arith.constant 1.000000e+00 : f32
    %912 = vector.broadcast %cst_177 : f32 to vector<8x32xf32>
    %913 = arith.addf %912, %911 : vector<8x32xf32>
    %914 = arith.divf %912, %913 : vector<8x32xf32>
    %915 = vector.extract_strided_slice %898 {offsets = [0, 64], sizes = [8, 32], strides = [1, 1]} : vector<8x128xf32> to vector<8x32xf32>
    %916 = math.tanh %915 : vector<8x32xf32>
    %917 = vector.extract_strided_slice %898 {offsets = [0, 96], sizes = [8, 32], strides = [1, 1]} : vector<8x128xf32> to vector<8x32xf32>
    %918 = arith.negf %917 : vector<8x32xf32>
    %919 = math.exp %918 : vector<8x32xf32>
    %cst_178 = arith.constant 1.000000e+00 : f32
    %920 = vector.broadcast %cst_178 : f32 to vector<8x32xf32>
    %921 = arith.addf %920, %919 : vector<8x32xf32>
    %922 = arith.divf %920, %921 : vector<8x32xf32>
    %923 = arith.mulf %914, %880 : vector<8x32xf32>
    %924 = arith.mulf %908, %916 : vector<8x32xf32>
    %925 = arith.addf %923, %924 : vector<8x32xf32>
    %926 = math.tanh %925 : vector<8x32xf32>
    %927 = arith.mulf %922, %926 : vector<8x32xf32>
    %928 = vector.extract_strided_slice %902 {offsets = [0, 0], sizes = [8, 32], strides = [1, 1]} : vector<8x128xf32> to vector<8x32xf32>
    %929 = arith.negf %928 : vector<8x32xf32>
    %930 = math.exp %929 : vector<8x32xf32>
    %cst_179 = arith.constant 1.000000e+00 : f32
    %931 = vector.broadcast %cst_179 : f32 to vector<8x32xf32>
    %932 = arith.addf %931, %930 : vector<8x32xf32>
    %933 = arith.divf %931, %932 : vector<8x32xf32>
    %934 = vector.extract_strided_slice %902 {offsets = [0, 32], sizes = [8, 32], strides = [1, 1]} : vector<8x128xf32> to vector<8x32xf32>
    %935 = arith.negf %934 : vector<8x32xf32>
    %936 = math.exp %935 : vector<8x32xf32>
    %cst_180 = arith.constant 1.000000e+00 : f32
    %937 = vector.broadcast %cst_180 : f32 to vector<8x32xf32>
    %938 = arith.addf %937, %936 : vector<8x32xf32>
    %939 = arith.divf %937, %938 : vector<8x32xf32>
    %940 = vector.extract_strided_slice %902 {offsets = [0, 64], sizes = [8, 32], strides = [1, 1]} : vector<8x128xf32> to vector<8x32xf32>
    %941 = math.tanh %940 : vector<8x32xf32>
    %942 = vector.extract_strided_slice %902 {offsets = [0, 96], sizes = [8, 32], strides = [1, 1]} : vector<8x128xf32> to vector<8x32xf32>
    %943 = arith.negf %942 : vector<8x32xf32>
    %944 = math.exp %943 : vector<8x32xf32>
    %cst_181 = arith.constant 1.000000e+00 : f32
    %945 = vector.broadcast %cst_181 : f32 to vector<8x32xf32>
    %946 = arith.addf %945, %944 : vector<8x32xf32>
    %947 = arith.divf %945, %946 : vector<8x32xf32>
    %948 = arith.mulf %939, %887 : vector<8x32xf32>
    %949 = arith.mulf %933, %941 : vector<8x32xf32>
    %950 = arith.addf %948, %949 : vector<8x32xf32>
    %951 = math.tanh %950 : vector<8x32xf32>
    %952 = arith.mulf %947, %951 : vector<8x32xf32>
    %953 = vector.broadcast %c2_i32_169 : i32 to vector<8x1xi32>
    %954 = arith.cmpi slt, %953, %0 : vector<8x1xi32>
    %955 = vector.broadcast %889 : i32 to vector<8x1xi32>
    %956 = arith.cmpi slt, %955, %0 : vector<8x1xi32>
    %957 = vector.extract_strided_slice %888 {offsets = [0, 0], sizes = [8, 32], strides = [1, 1]} : vector<8x64xf32> to vector<8x32xf32>
    %958 = vector.shape_cast %954 : vector<8x1xi1> to vector<8x1xi1>
    %959 = vector.broadcast %958 : vector<8x1xi1> to vector<8x32xi1>
    %960 = arith.select %959, %927, %957 : vector<8x32xi1>, vector<8x32xf32>
    %961 = vector.shape_cast %954 : vector<8x1xi1> to vector<8x1xi1>
    %962 = vector.broadcast %961 : vector<8x1xi1> to vector<8x32xi1>
    %963 = arith.select %962, %925, %880 : vector<8x32xi1>, vector<8x32xf32>
    %964 = vector.extract_strided_slice %888 {offsets = [0, 32], sizes = [8, 32], strides = [1, 1]} : vector<8x64xf32> to vector<8x32xf32>
    %965 = vector.shape_cast %956 : vector<8x1xi1> to vector<8x1xi1>
    %966 = vector.broadcast %965 : vector<8x1xi1> to vector<8x32xi1>
    %967 = arith.select %966, %952, %964 : vector<8x32xi1>, vector<8x32xf32>
    %968 = vector.shape_cast %956 : vector<8x1xi1> to vector<8x1xi1>
    %969 = vector.broadcast %968 : vector<8x1xi1> to vector<8x32xi1>
    %970 = arith.select %969, %950, %887 : vector<8x32xi1>, vector<8x32xf32>
    %971 = tpu.concatenate %960, %967 in 1 : vector<8x32xf32>, vector<8x32xf32> -> vector<8x64xf32>
    %c3_i32_182 = arith.constant 3 : i32
    %c7_i32_183 = arith.constant 7 : i32
    %972 = arith.subi %c7_i32_183, %c3_i32_182 : i32
    %c8_i32_184 = arith.constant 8 : i32
    %973 = arith.muli %c3_i32_182, %c8_i32_184 : i32
    %974 = tpu.assume_multiple %973, 8 : i32
    %c8_i32_185 = arith.constant 8 : i32
    %975 = arith.muli %972, %c8_i32_185 : i32
    %976 = tpu.assume_multiple %975, 8 : i32
    %cst_186 = arith.constant dense<0.000000e+00> : vector<8x256xf32>
    %977 = tpu.matmul %971, %719, %cst_186 {dimension_numbers = #tpu.dot_dimension_numbers<[1], [0], [0], [1], [0, 0, 1, 1], [], []>} : vector<8x64xf32>, vector<64x256xf32>, vector<8x256xf32> -> vector<8x256xf32>
    %978 = vector.extract_strided_slice %977 {offsets = [0, 0], sizes = [8, 128], strides = [1, 1]} : vector<8x256xf32> to vector<8x128xf32>
    %979 = arith.index_cast %974 : i32 to index
    %c0_187 = arith.constant 0 : index
    %980 = vector.load %arg13[%979, %c0_187] : memref<64x256xf32, #tpu.memory_space<vmem>>, vector<8x128xf32>
    %981 = arith.addf %978, %980 : vector<8x128xf32>
    %982 = vector.extract_strided_slice %977 {offsets = [0, 128], sizes = [8, 128], strides = [1, 1]} : vector<8x256xf32> to vector<8x128xf32>
    %983 = arith.index_cast %976 : i32 to index
    %c128_188 = arith.constant 128 : index
    %984 = vector.load %arg13[%983, %c128_188] : memref<64x256xf32, #tpu.memory_space<vmem>>, vector<8x128xf32>
    %985 = arith.addf %982, %984 : vector<8x128xf32>
    %986 = vector.extract_strided_slice %981 {offsets = [0, 0], sizes = [8, 32], strides = [1, 1]} : vector<8x128xf32> to vector<8x32xf32>
    %987 = arith.negf %986 : vector<8x32xf32>
    %988 = math.exp %987 : vector<8x32xf32>
    %cst_189 = arith.constant 1.000000e+00 : f32
    %989 = vector.broadcast %cst_189 : f32 to vector<8x32xf32>
    %990 = arith.addf %989, %988 : vector<8x32xf32>
    %991 = arith.divf %989, %990 : vector<8x32xf32>
    %992 = vector.extract_strided_slice %981 {offsets = [0, 32], sizes = [8, 32], strides = [1, 1]} : vector<8x128xf32> to vector<8x32xf32>
    %993 = arith.negf %992 : vector<8x32xf32>
    %994 = math.exp %993 : vector<8x32xf32>
    %cst_190 = arith.constant 1.000000e+00 : f32
    %995 = vector.broadcast %cst_190 : f32 to vector<8x32xf32>
    %996 = arith.addf %995, %994 : vector<8x32xf32>
    %997 = arith.divf %995, %996 : vector<8x32xf32>
    %998 = vector.extract_strided_slice %981 {offsets = [0, 64], sizes = [8, 32], strides = [1, 1]} : vector<8x128xf32> to vector<8x32xf32>
    %999 = math.tanh %998 : vector<8x32xf32>
    %1000 = vector.extract_strided_slice %981 {offsets = [0, 96], sizes = [8, 32], strides = [1, 1]} : vector<8x128xf32> to vector<8x32xf32>
    %1001 = arith.negf %1000 : vector<8x32xf32>
    %1002 = math.exp %1001 : vector<8x32xf32>
    %cst_191 = arith.constant 1.000000e+00 : f32
    %1003 = vector.broadcast %cst_191 : f32 to vector<8x32xf32>
    %1004 = arith.addf %1003, %1002 : vector<8x32xf32>
    %1005 = arith.divf %1003, %1004 : vector<8x32xf32>
    %1006 = arith.mulf %997, %963 : vector<8x32xf32>
    %1007 = arith.mulf %991, %999 : vector<8x32xf32>
    %1008 = arith.addf %1006, %1007 : vector<8x32xf32>
    %1009 = math.tanh %1008 : vector<8x32xf32>
    %1010 = arith.mulf %1005, %1009 : vector<8x32xf32>
    %1011 = vector.extract_strided_slice %985 {offsets = [0, 0], sizes = [8, 32], strides = [1, 1]} : vector<8x128xf32> to vector<8x32xf32>
    %1012 = arith.negf %1011 : vector<8x32xf32>
    %1013 = math.exp %1012 : vector<8x32xf32>
    %cst_192 = arith.constant 1.000000e+00 : f32
    %1014 = vector.broadcast %cst_192 : f32 to vector<8x32xf32>
    %1015 = arith.addf %1014, %1013 : vector<8x32xf32>
    %1016 = arith.divf %1014, %1015 : vector<8x32xf32>
    %1017 = vector.extract_strided_slice %985 {offsets = [0, 32], sizes = [8, 32], strides = [1, 1]} : vector<8x128xf32> to vector<8x32xf32>
    %1018 = arith.negf %1017 : vector<8x32xf32>
    %1019 = math.exp %1018 : vector<8x32xf32>
    %cst_193 = arith.constant 1.000000e+00 : f32
    %1020 = vector.broadcast %cst_193 : f32 to vector<8x32xf32>
    %1021 = arith.addf %1020, %1019 : vector<8x32xf32>
    %1022 = arith.divf %1020, %1021 : vector<8x32xf32>
    %1023 = vector.extract_strided_slice %985 {offsets = [0, 64], sizes = [8, 32], strides = [1, 1]} : vector<8x128xf32> to vector<8x32xf32>
    %1024 = math.tanh %1023 : vector<8x32xf32>
    %1025 = vector.extract_strided_slice %985 {offsets = [0, 96], sizes = [8, 32], strides = [1, 1]} : vector<8x128xf32> to vector<8x32xf32>
    %1026 = arith.negf %1025 : vector<8x32xf32>
    %1027 = math.exp %1026 : vector<8x32xf32>
    %cst_194 = arith.constant 1.000000e+00 : f32
    %1028 = vector.broadcast %cst_194 : f32 to vector<8x32xf32>
    %1029 = arith.addf %1028, %1027 : vector<8x32xf32>
    %1030 = arith.divf %1028, %1029 : vector<8x32xf32>
    %1031 = arith.mulf %1022, %970 : vector<8x32xf32>
    %1032 = arith.mulf %1016, %1024 : vector<8x32xf32>
    %1033 = arith.addf %1031, %1032 : vector<8x32xf32>
    %1034 = math.tanh %1033 : vector<8x32xf32>
    %1035 = arith.mulf %1030, %1034 : vector<8x32xf32>
    %1036 = vector.broadcast %c3_i32_182 : i32 to vector<8x1xi32>
    %1037 = arith.cmpi slt, %1036, %0 : vector<8x1xi32>
    %1038 = vector.broadcast %972 : i32 to vector<8x1xi32>
    %1039 = arith.cmpi slt, %1038, %0 : vector<8x1xi32>
    %1040 = vector.extract_strided_slice %971 {offsets = [0, 0], sizes = [8, 32], strides = [1, 1]} : vector<8x64xf32> to vector<8x32xf32>
    %1041 = vector.shape_cast %1037 : vector<8x1xi1> to vector<8x1xi1>
    %1042 = vector.broadcast %1041 : vector<8x1xi1> to vector<8x32xi1>
    %1043 = arith.select %1042, %1010, %1040 : vector<8x32xi1>, vector<8x32xf32>
    %1044 = vector.shape_cast %1037 : vector<8x1xi1> to vector<8x1xi1>
    %1045 = vector.broadcast %1044 : vector<8x1xi1> to vector<8x32xi1>
    %1046 = arith.select %1045, %1008, %963 : vector<8x32xi1>, vector<8x32xf32>
    %1047 = vector.extract_strided_slice %971 {offsets = [0, 32], sizes = [8, 32], strides = [1, 1]} : vector<8x64xf32> to vector<8x32xf32>
    %1048 = vector.shape_cast %1039 : vector<8x1xi1> to vector<8x1xi1>
    %1049 = vector.broadcast %1048 : vector<8x1xi1> to vector<8x32xi1>
    %1050 = arith.select %1049, %1035, %1047 : vector<8x32xi1>, vector<8x32xf32>
    %1051 = vector.shape_cast %1039 : vector<8x1xi1> to vector<8x1xi1>
    %1052 = vector.broadcast %1051 : vector<8x1xi1> to vector<8x32xi1>
    %1053 = arith.select %1052, %1033, %970 : vector<8x32xi1>, vector<8x32xf32>
    %1054 = tpu.concatenate %1043, %1050 in 1 : vector<8x32xf32>, vector<8x32xf32> -> vector<8x64xf32>
    %c4_i32_195 = arith.constant 4 : i32
    %c7_i32_196 = arith.constant 7 : i32
    %1055 = arith.subi %c7_i32_196, %c4_i32_195 : i32
    %c8_i32_197 = arith.constant 8 : i32
    %1056 = arith.muli %c4_i32_195, %c8_i32_197 : i32
    %1057 = tpu.assume_multiple %1056, 8 : i32
    %c8_i32_198 = arith.constant 8 : i32
    %1058 = arith.muli %1055, %c8_i32_198 : i32
    %1059 = tpu.assume_multiple %1058, 8 : i32
    %cst_199 = arith.constant dense<0.000000e+00> : vector<8x256xf32>
    %1060 = tpu.matmul %1054, %719, %cst_199 {dimension_numbers = #tpu.dot_dimension_numbers<[1], [0], [0], [1], [0, 0, 1, 1], [], []>} : vector<8x64xf32>, vector<64x256xf32>, vector<8x256xf32> -> vector<8x256xf32>
    %1061 = vector.extract_strided_slice %1060 {offsets = [0, 0], sizes = [8, 128], strides = [1, 1]} : vector<8x256xf32> to vector<8x128xf32>
    %1062 = arith.index_cast %1057 : i32 to index
    %c0_200 = arith.constant 0 : index
    %1063 = vector.load %arg13[%1062, %c0_200] : memref<64x256xf32, #tpu.memory_space<vmem>>, vector<8x128xf32>
    %1064 = arith.addf %1061, %1063 : vector<8x128xf32>
    %1065 = vector.extract_strided_slice %1060 {offsets = [0, 128], sizes = [8, 128], strides = [1, 1]} : vector<8x256xf32> to vector<8x128xf32>
    %1066 = arith.index_cast %1059 : i32 to index
    %c128_201 = arith.constant 128 : index
    %1067 = vector.load %arg13[%1066, %c128_201] : memref<64x256xf32, #tpu.memory_space<vmem>>, vector<8x128xf32>
    %1068 = arith.addf %1065, %1067 : vector<8x128xf32>
    %1069 = vector.extract_strided_slice %1064 {offsets = [0, 0], sizes = [8, 32], strides = [1, 1]} : vector<8x128xf32> to vector<8x32xf32>
    %1070 = arith.negf %1069 : vector<8x32xf32>
    %1071 = math.exp %1070 : vector<8x32xf32>
    %cst_202 = arith.constant 1.000000e+00 : f32
    %1072 = vector.broadcast %cst_202 : f32 to vector<8x32xf32>
    %1073 = arith.addf %1072, %1071 : vector<8x32xf32>
    %1074 = arith.divf %1072, %1073 : vector<8x32xf32>
    %1075 = vector.extract_strided_slice %1064 {offsets = [0, 32], sizes = [8, 32], strides = [1, 1]} : vector<8x128xf32> to vector<8x32xf32>
    %1076 = arith.negf %1075 : vector<8x32xf32>
    %1077 = math.exp %1076 : vector<8x32xf32>
    %cst_203 = arith.constant 1.000000e+00 : f32
    %1078 = vector.broadcast %cst_203 : f32 to vector<8x32xf32>
    %1079 = arith.addf %1078, %1077 : vector<8x32xf32>
    %1080 = arith.divf %1078, %1079 : vector<8x32xf32>
    %1081 = vector.extract_strided_slice %1064 {offsets = [0, 64], sizes = [8, 32], strides = [1, 1]} : vector<8x128xf32> to vector<8x32xf32>
    %1082 = math.tanh %1081 : vector<8x32xf32>
    %1083 = vector.extract_strided_slice %1064 {offsets = [0, 96], sizes = [8, 32], strides = [1, 1]} : vector<8x128xf32> to vector<8x32xf32>
    %1084 = arith.negf %1083 : vector<8x32xf32>
    %1085 = math.exp %1084 : vector<8x32xf32>
    %cst_204 = arith.constant 1.000000e+00 : f32
    %1086 = vector.broadcast %cst_204 : f32 to vector<8x32xf32>
    %1087 = arith.addf %1086, %1085 : vector<8x32xf32>
    %1088 = arith.divf %1086, %1087 : vector<8x32xf32>
    %1089 = arith.mulf %1080, %1046 : vector<8x32xf32>
    %1090 = arith.mulf %1074, %1082 : vector<8x32xf32>
    %1091 = arith.addf %1089, %1090 : vector<8x32xf32>
    %1092 = math.tanh %1091 : vector<8x32xf32>
    %1093 = arith.mulf %1088, %1092 : vector<8x32xf32>
    %1094 = vector.extract_strided_slice %1068 {offsets = [0, 0], sizes = [8, 32], strides = [1, 1]} : vector<8x128xf32> to vector<8x32xf32>
    %1095 = arith.negf %1094 : vector<8x32xf32>
    %1096 = math.exp %1095 : vector<8x32xf32>
    %cst_205 = arith.constant 1.000000e+00 : f32
    %1097 = vector.broadcast %cst_205 : f32 to vector<8x32xf32>
    %1098 = arith.addf %1097, %1096 : vector<8x32xf32>
    %1099 = arith.divf %1097, %1098 : vector<8x32xf32>
    %1100 = vector.extract_strided_slice %1068 {offsets = [0, 32], sizes = [8, 32], strides = [1, 1]} : vector<8x128xf32> to vector<8x32xf32>
    %1101 = arith.negf %1100 : vector<8x32xf32>
    %1102 = math.exp %1101 : vector<8x32xf32>
    %cst_206 = arith.constant 1.000000e+00 : f32
    %1103 = vector.broadcast %cst_206 : f32 to vector<8x32xf32>
    %1104 = arith.addf %1103, %1102 : vector<8x32xf32>
    %1105 = arith.divf %1103, %1104 : vector<8x32xf32>
    %1106 = vector.extract_strided_slice %1068 {offsets = [0, 64], sizes = [8, 32], strides = [1, 1]} : vector<8x128xf32> to vector<8x32xf32>
    %1107 = math.tanh %1106 : vector<8x32xf32>
    %1108 = vector.extract_strided_slice %1068 {offsets = [0, 96], sizes = [8, 32], strides = [1, 1]} : vector<8x128xf32> to vector<8x32xf32>
    %1109 = arith.negf %1108 : vector<8x32xf32>
    %1110 = math.exp %1109 : vector<8x32xf32>
    %cst_207 = arith.constant 1.000000e+00 : f32
    %1111 = vector.broadcast %cst_207 : f32 to vector<8x32xf32>
    %1112 = arith.addf %1111, %1110 : vector<8x32xf32>
    %1113 = arith.divf %1111, %1112 : vector<8x32xf32>
    %1114 = arith.mulf %1105, %1053 : vector<8x32xf32>
    %1115 = arith.mulf %1099, %1107 : vector<8x32xf32>
    %1116 = arith.addf %1114, %1115 : vector<8x32xf32>
    %1117 = math.tanh %1116 : vector<8x32xf32>
    %1118 = arith.mulf %1113, %1117 : vector<8x32xf32>
    %1119 = vector.broadcast %c4_i32_195 : i32 to vector<8x1xi32>
    %1120 = arith.cmpi slt, %1119, %0 : vector<8x1xi32>
    %1121 = vector.broadcast %1055 : i32 to vector<8x1xi32>
    %1122 = arith.cmpi slt, %1121, %0 : vector<8x1xi32>
    %1123 = vector.extract_strided_slice %1054 {offsets = [0, 0], sizes = [8, 32], strides = [1, 1]} : vector<8x64xf32> to vector<8x32xf32>
    %1124 = vector.shape_cast %1120 : vector<8x1xi1> to vector<8x1xi1>
    %1125 = vector.broadcast %1124 : vector<8x1xi1> to vector<8x32xi1>
    %1126 = arith.select %1125, %1093, %1123 : vector<8x32xi1>, vector<8x32xf32>
    %1127 = vector.shape_cast %1120 : vector<8x1xi1> to vector<8x1xi1>
    %1128 = vector.broadcast %1127 : vector<8x1xi1> to vector<8x32xi1>
    %1129 = arith.select %1128, %1091, %1046 : vector<8x32xi1>, vector<8x32xf32>
    %1130 = vector.extract_strided_slice %1054 {offsets = [0, 32], sizes = [8, 32], strides = [1, 1]} : vector<8x64xf32> to vector<8x32xf32>
    %1131 = vector.shape_cast %1122 : vector<8x1xi1> to vector<8x1xi1>
    %1132 = vector.broadcast %1131 : vector<8x1xi1> to vector<8x32xi1>
    %1133 = arith.select %1132, %1118, %1130 : vector<8x32xi1>, vector<8x32xf32>
    %1134 = vector.shape_cast %1122 : vector<8x1xi1> to vector<8x1xi1>
    %1135 = vector.broadcast %1134 : vector<8x1xi1> to vector<8x32xi1>
    %1136 = arith.select %1135, %1116, %1053 : vector<8x32xi1>, vector<8x32xf32>
    %1137 = tpu.concatenate %1126, %1133 in 1 : vector<8x32xf32>, vector<8x32xf32> -> vector<8x64xf32>
    %c5_i32_208 = arith.constant 5 : i32
    %c7_i32_209 = arith.constant 7 : i32
    %1138 = arith.subi %c7_i32_209, %c5_i32_208 : i32
    %c8_i32_210 = arith.constant 8 : i32
    %1139 = arith.muli %c5_i32_208, %c8_i32_210 : i32
    %1140 = tpu.assume_multiple %1139, 8 : i32
    %c8_i32_211 = arith.constant 8 : i32
    %1141 = arith.muli %1138, %c8_i32_211 : i32
    %1142 = tpu.assume_multiple %1141, 8 : i32
    %cst_212 = arith.constant dense<0.000000e+00> : vector<8x256xf32>
    %1143 = tpu.matmul %1137, %719, %cst_212 {dimension_numbers = #tpu.dot_dimension_numbers<[1], [0], [0], [1], [0, 0, 1, 1], [], []>} : vector<8x64xf32>, vector<64x256xf32>, vector<8x256xf32> -> vector<8x256xf32>
    %1144 = vector.extract_strided_slice %1143 {offsets = [0, 0], sizes = [8, 128], strides = [1, 1]} : vector<8x256xf32> to vector<8x128xf32>
    %1145 = arith.index_cast %1140 : i32 to index
    %c0_213 = arith.constant 0 : index
    %1146 = vector.load %arg13[%1145, %c0_213] : memref<64x256xf32, #tpu.memory_space<vmem>>, vector<8x128xf32>
    %1147 = arith.addf %1144, %1146 : vector<8x128xf32>
    %1148 = vector.extract_strided_slice %1143 {offsets = [0, 128], sizes = [8, 128], strides = [1, 1]} : vector<8x256xf32> to vector<8x128xf32>
    %1149 = arith.index_cast %1142 : i32 to index
    %c128_214 = arith.constant 128 : index
    %1150 = vector.load %arg13[%1149, %c128_214] : memref<64x256xf32, #tpu.memory_space<vmem>>, vector<8x128xf32>
    %1151 = arith.addf %1148, %1150 : vector<8x128xf32>
    %1152 = vector.extract_strided_slice %1147 {offsets = [0, 0], sizes = [8, 32], strides = [1, 1]} : vector<8x128xf32> to vector<8x32xf32>
    %1153 = arith.negf %1152 : vector<8x32xf32>
    %1154 = math.exp %1153 : vector<8x32xf32>
    %cst_215 = arith.constant 1.000000e+00 : f32
    %1155 = vector.broadcast %cst_215 : f32 to vector<8x32xf32>
    %1156 = arith.addf %1155, %1154 : vector<8x32xf32>
    %1157 = arith.divf %1155, %1156 : vector<8x32xf32>
    %1158 = vector.extract_strided_slice %1147 {offsets = [0, 32], sizes = [8, 32], strides = [1, 1]} : vector<8x128xf32> to vector<8x32xf32>
    %1159 = arith.negf %1158 : vector<8x32xf32>
    %1160 = math.exp %1159 : vector<8x32xf32>
    %cst_216 = arith.constant 1.000000e+00 : f32
    %1161 = vector.broadcast %cst_216 : f32 to vector<8x32xf32>
    %1162 = arith.addf %1161, %1160 : vector<8x32xf32>
    %1163 = arith.divf %1161, %1162 : vector<8x32xf32>
    %1164 = vector.extract_strided_slice %1147 {offsets = [0, 64], sizes = [8, 32], strides = [1, 1]} : vector<8x128xf32> to vector<8x32xf32>
    %1165 = math.tanh %1164 : vector<8x32xf32>
    %1166 = vector.extract_strided_slice %1147 {offsets = [0, 96], sizes = [8, 32], strides = [1, 1]} : vector<8x128xf32> to vector<8x32xf32>
    %1167 = arith.negf %1166 : vector<8x32xf32>
    %1168 = math.exp %1167 : vector<8x32xf32>
    %cst_217 = arith.constant 1.000000e+00 : f32
    %1169 = vector.broadcast %cst_217 : f32 to vector<8x32xf32>
    %1170 = arith.addf %1169, %1168 : vector<8x32xf32>
    %1171 = arith.divf %1169, %1170 : vector<8x32xf32>
    %1172 = arith.mulf %1163, %1129 : vector<8x32xf32>
    %1173 = arith.mulf %1157, %1165 : vector<8x32xf32>
    %1174 = arith.addf %1172, %1173 : vector<8x32xf32>
    %1175 = math.tanh %1174 : vector<8x32xf32>
    %1176 = arith.mulf %1171, %1175 : vector<8x32xf32>
    %1177 = vector.extract_strided_slice %1151 {offsets = [0, 0], sizes = [8, 32], strides = [1, 1]} : vector<8x128xf32> to vector<8x32xf32>
    %1178 = arith.negf %1177 : vector<8x32xf32>
    %1179 = math.exp %1178 : vector<8x32xf32>
    %cst_218 = arith.constant 1.000000e+00 : f32
    %1180 = vector.broadcast %cst_218 : f32 to vector<8x32xf32>
    %1181 = arith.addf %1180, %1179 : vector<8x32xf32>
    %1182 = arith.divf %1180, %1181 : vector<8x32xf32>
    %1183 = vector.extract_strided_slice %1151 {offsets = [0, 32], sizes = [8, 32], strides = [1, 1]} : vector<8x128xf32> to vector<8x32xf32>
    %1184 = arith.negf %1183 : vector<8x32xf32>
    %1185 = math.exp %1184 : vector<8x32xf32>
    %cst_219 = arith.constant 1.000000e+00 : f32
    %1186 = vector.broadcast %cst_219 : f32 to vector<8x32xf32>
    %1187 = arith.addf %1186, %1185 : vector<8x32xf32>
    %1188 = arith.divf %1186, %1187 : vector<8x32xf32>
    %1189 = vector.extract_strided_slice %1151 {offsets = [0, 64], sizes = [8, 32], strides = [1, 1]} : vector<8x128xf32> to vector<8x32xf32>
    %1190 = math.tanh %1189 : vector<8x32xf32>
    %1191 = vector.extract_strided_slice %1151 {offsets = [0, 96], sizes = [8, 32], strides = [1, 1]} : vector<8x128xf32> to vector<8x32xf32>
    %1192 = arith.negf %1191 : vector<8x32xf32>
    %1193 = math.exp %1192 : vector<8x32xf32>
    %cst_220 = arith.constant 1.000000e+00 : f32
    %1194 = vector.broadcast %cst_220 : f32 to vector<8x32xf32>
    %1195 = arith.addf %1194, %1193 : vector<8x32xf32>
    %1196 = arith.divf %1194, %1195 : vector<8x32xf32>
    %1197 = arith.mulf %1188, %1136 : vector<8x32xf32>
    %1198 = arith.mulf %1182, %1190 : vector<8x32xf32>
    %1199 = arith.addf %1197, %1198 : vector<8x32xf32>
    %1200 = math.tanh %1199 : vector<8x32xf32>
    %1201 = arith.mulf %1196, %1200 : vector<8x32xf32>
    %1202 = vector.broadcast %c5_i32_208 : i32 to vector<8x1xi32>
    %1203 = arith.cmpi slt, %1202, %0 : vector<8x1xi32>
    %1204 = vector.broadcast %1138 : i32 to vector<8x1xi32>
    %1205 = arith.cmpi slt, %1204, %0 : vector<8x1xi32>
    %1206 = vector.extract_strided_slice %1137 {offsets = [0, 0], sizes = [8, 32], strides = [1, 1]} : vector<8x64xf32> to vector<8x32xf32>
    %1207 = vector.shape_cast %1203 : vector<8x1xi1> to vector<8x1xi1>
    %1208 = vector.broadcast %1207 : vector<8x1xi1> to vector<8x32xi1>
    %1209 = arith.select %1208, %1176, %1206 : vector<8x32xi1>, vector<8x32xf32>
    %1210 = vector.shape_cast %1203 : vector<8x1xi1> to vector<8x1xi1>
    %1211 = vector.broadcast %1210 : vector<8x1xi1> to vector<8x32xi1>
    %1212 = arith.select %1211, %1174, %1129 : vector<8x32xi1>, vector<8x32xf32>
    %1213 = vector.extract_strided_slice %1137 {offsets = [0, 32], sizes = [8, 32], strides = [1, 1]} : vector<8x64xf32> to vector<8x32xf32>
    %1214 = vector.shape_cast %1205 : vector<8x1xi1> to vector<8x1xi1>
    %1215 = vector.broadcast %1214 : vector<8x1xi1> to vector<8x32xi1>
    %1216 = arith.select %1215, %1201, %1213 : vector<8x32xi1>, vector<8x32xf32>
    %1217 = vector.shape_cast %1205 : vector<8x1xi1> to vector<8x1xi1>
    %1218 = vector.broadcast %1217 : vector<8x1xi1> to vector<8x32xi1>
    %1219 = arith.select %1218, %1199, %1136 : vector<8x32xi1>, vector<8x32xf32>
    %1220 = tpu.concatenate %1209, %1216 in 1 : vector<8x32xf32>, vector<8x32xf32> -> vector<8x64xf32>
    %c6_i32_221 = arith.constant 6 : i32
    %c7_i32_222 = arith.constant 7 : i32
    %1221 = arith.subi %c7_i32_222, %c6_i32_221 : i32
    %c8_i32_223 = arith.constant 8 : i32
    %1222 = arith.muli %c6_i32_221, %c8_i32_223 : i32
    %1223 = tpu.assume_multiple %1222, 8 : i32
    %c8_i32_224 = arith.constant 8 : i32
    %1224 = arith.muli %1221, %c8_i32_224 : i32
    %1225 = tpu.assume_multiple %1224, 8 : i32
    %cst_225 = arith.constant dense<0.000000e+00> : vector<8x256xf32>
    %1226 = tpu.matmul %1220, %719, %cst_225 {dimension_numbers = #tpu.dot_dimension_numbers<[1], [0], [0], [1], [0, 0, 1, 1], [], []>} : vector<8x64xf32>, vector<64x256xf32>, vector<8x256xf32> -> vector<8x256xf32>
    %1227 = vector.extract_strided_slice %1226 {offsets = [0, 0], sizes = [8, 128], strides = [1, 1]} : vector<8x256xf32> to vector<8x128xf32>
    %1228 = arith.index_cast %1223 : i32 to index
    %c0_226 = arith.constant 0 : index
    %1229 = vector.load %arg13[%1228, %c0_226] : memref<64x256xf32, #tpu.memory_space<vmem>>, vector<8x128xf32>
    %1230 = arith.addf %1227, %1229 : vector<8x128xf32>
    %1231 = vector.extract_strided_slice %1226 {offsets = [0, 128], sizes = [8, 128], strides = [1, 1]} : vector<8x256xf32> to vector<8x128xf32>
    %1232 = arith.index_cast %1225 : i32 to index
    %c128_227 = arith.constant 128 : index
    %1233 = vector.load %arg13[%1232, %c128_227] : memref<64x256xf32, #tpu.memory_space<vmem>>, vector<8x128xf32>
    %1234 = arith.addf %1231, %1233 : vector<8x128xf32>
    %1235 = vector.extract_strided_slice %1230 {offsets = [0, 0], sizes = [8, 32], strides = [1, 1]} : vector<8x128xf32> to vector<8x32xf32>
    %1236 = arith.negf %1235 : vector<8x32xf32>
    %1237 = math.exp %1236 : vector<8x32xf32>
    %cst_228 = arith.constant 1.000000e+00 : f32
    %1238 = vector.broadcast %cst_228 : f32 to vector<8x32xf32>
    %1239 = arith.addf %1238, %1237 : vector<8x32xf32>
    %1240 = arith.divf %1238, %1239 : vector<8x32xf32>
    %1241 = vector.extract_strided_slice %1230 {offsets = [0, 32], sizes = [8, 32], strides = [1, 1]} : vector<8x128xf32> to vector<8x32xf32>
    %1242 = arith.negf %1241 : vector<8x32xf32>
    %1243 = math.exp %1242 : vector<8x32xf32>
    %cst_229 = arith.constant 1.000000e+00 : f32
    %1244 = vector.broadcast %cst_229 : f32 to vector<8x32xf32>
    %1245 = arith.addf %1244, %1243 : vector<8x32xf32>
    %1246 = arith.divf %1244, %1245 : vector<8x32xf32>
    %1247 = vector.extract_strided_slice %1230 {offsets = [0, 64], sizes = [8, 32], strides = [1, 1]} : vector<8x128xf32> to vector<8x32xf32>
    %1248 = math.tanh %1247 : vector<8x32xf32>
    %1249 = vector.extract_strided_slice %1230 {offsets = [0, 96], sizes = [8, 32], strides = [1, 1]} : vector<8x128xf32> to vector<8x32xf32>
    %1250 = arith.negf %1249 : vector<8x32xf32>
    %1251 = math.exp %1250 : vector<8x32xf32>
    %cst_230 = arith.constant 1.000000e+00 : f32
    %1252 = vector.broadcast %cst_230 : f32 to vector<8x32xf32>
    %1253 = arith.addf %1252, %1251 : vector<8x32xf32>
    %1254 = arith.divf %1252, %1253 : vector<8x32xf32>
    %1255 = arith.mulf %1246, %1212 : vector<8x32xf32>
    %1256 = arith.mulf %1240, %1248 : vector<8x32xf32>
    %1257 = arith.addf %1255, %1256 : vector<8x32xf32>
    %1258 = math.tanh %1257 : vector<8x32xf32>
    %1259 = arith.mulf %1254, %1258 : vector<8x32xf32>
    %1260 = vector.extract_strided_slice %1234 {offsets = [0, 0], sizes = [8, 32], strides = [1, 1]} : vector<8x128xf32> to vector<8x32xf32>
    %1261 = arith.negf %1260 : vector<8x32xf32>
    %1262 = math.exp %1261 : vector<8x32xf32>
    %cst_231 = arith.constant 1.000000e+00 : f32
    %1263 = vector.broadcast %cst_231 : f32 to vector<8x32xf32>
    %1264 = arith.addf %1263, %1262 : vector<8x32xf32>
    %1265 = arith.divf %1263, %1264 : vector<8x32xf32>
    %1266 = vector.extract_strided_slice %1234 {offsets = [0, 32], sizes = [8, 32], strides = [1, 1]} : vector<8x128xf32> to vector<8x32xf32>
    %1267 = arith.negf %1266 : vector<8x32xf32>
    %1268 = math.exp %1267 : vector<8x32xf32>
    %cst_232 = arith.constant 1.000000e+00 : f32
    %1269 = vector.broadcast %cst_232 : f32 to vector<8x32xf32>
    %1270 = arith.addf %1269, %1268 : vector<8x32xf32>
    %1271 = arith.divf %1269, %1270 : vector<8x32xf32>
    %1272 = vector.extract_strided_slice %1234 {offsets = [0, 64], sizes = [8, 32], strides = [1, 1]} : vector<8x128xf32> to vector<8x32xf32>
    %1273 = math.tanh %1272 : vector<8x32xf32>
    %1274 = vector.extract_strided_slice %1234 {offsets = [0, 96], sizes = [8, 32], strides = [1, 1]} : vector<8x128xf32> to vector<8x32xf32>
    %1275 = arith.negf %1274 : vector<8x32xf32>
    %1276 = math.exp %1275 : vector<8x32xf32>
    %cst_233 = arith.constant 1.000000e+00 : f32
    %1277 = vector.broadcast %cst_233 : f32 to vector<8x32xf32>
    %1278 = arith.addf %1277, %1276 : vector<8x32xf32>
    %1279 = arith.divf %1277, %1278 : vector<8x32xf32>
    %1280 = arith.mulf %1271, %1219 : vector<8x32xf32>
    %1281 = arith.mulf %1265, %1273 : vector<8x32xf32>
    %1282 = arith.addf %1280, %1281 : vector<8x32xf32>
    %1283 = math.tanh %1282 : vector<8x32xf32>
    %1284 = arith.mulf %1279, %1283 : vector<8x32xf32>
    %1285 = vector.broadcast %c6_i32_221 : i32 to vector<8x1xi32>
    %1286 = arith.cmpi slt, %1285, %0 : vector<8x1xi32>
    %1287 = vector.broadcast %1221 : i32 to vector<8x1xi32>
    %1288 = arith.cmpi slt, %1287, %0 : vector<8x1xi32>
    %1289 = vector.extract_strided_slice %1220 {offsets = [0, 0], sizes = [8, 32], strides = [1, 1]} : vector<8x64xf32> to vector<8x32xf32>
    %1290 = vector.shape_cast %1286 : vector<8x1xi1> to vector<8x1xi1>
    %1291 = vector.broadcast %1290 : vector<8x1xi1> to vector<8x32xi1>
    %1292 = arith.select %1291, %1259, %1289 : vector<8x32xi1>, vector<8x32xf32>
    %1293 = vector.shape_cast %1286 : vector<8x1xi1> to vector<8x1xi1>
    %1294 = vector.broadcast %1293 : vector<8x1xi1> to vector<8x32xi1>
    %1295 = arith.select %1294, %1257, %1212 : vector<8x32xi1>, vector<8x32xf32>
    %1296 = vector.extract_strided_slice %1220 {offsets = [0, 32], sizes = [8, 32], strides = [1, 1]} : vector<8x64xf32> to vector<8x32xf32>
    %1297 = vector.shape_cast %1288 : vector<8x1xi1> to vector<8x1xi1>
    %1298 = vector.broadcast %1297 : vector<8x1xi1> to vector<8x32xi1>
    %1299 = arith.select %1298, %1284, %1296 : vector<8x32xi1>, vector<8x32xf32>
    %1300 = vector.shape_cast %1288 : vector<8x1xi1> to vector<8x1xi1>
    %1301 = vector.broadcast %1300 : vector<8x1xi1> to vector<8x32xi1>
    %1302 = arith.select %1301, %1282, %1219 : vector<8x32xi1>, vector<8x32xf32>
    %1303 = tpu.concatenate %1292, %1299 in 1 : vector<8x32xf32>, vector<8x32xf32> -> vector<8x64xf32>
    %c7_i32_234 = arith.constant 7 : i32
    %c7_i32_235 = arith.constant 7 : i32
    %1304 = arith.subi %c7_i32_235, %c7_i32_234 : i32
    %c8_i32_236 = arith.constant 8 : i32
    %1305 = arith.muli %c7_i32_234, %c8_i32_236 : i32
    %1306 = tpu.assume_multiple %1305, 8 : i32
    %c8_i32_237 = arith.constant 8 : i32
    %1307 = arith.muli %1304, %c8_i32_237 : i32
    %1308 = tpu.assume_multiple %1307, 8 : i32
    %cst_238 = arith.constant dense<0.000000e+00> : vector<8x256xf32>
    %1309 = tpu.matmul %1303, %719, %cst_238 {dimension_numbers = #tpu.dot_dimension_numbers<[1], [0], [0], [1], [0, 0, 1, 1], [], []>} : vector<8x64xf32>, vector<64x256xf32>, vector<8x256xf32> -> vector<8x256xf32>
    %1310 = vector.extract_strided_slice %1309 {offsets = [0, 0], sizes = [8, 128], strides = [1, 1]} : vector<8x256xf32> to vector<8x128xf32>
    %1311 = arith.index_cast %1306 : i32 to index
    %c0_239 = arith.constant 0 : index
    %1312 = vector.load %arg13[%1311, %c0_239] : memref<64x256xf32, #tpu.memory_space<vmem>>, vector<8x128xf32>
    %1313 = arith.addf %1310, %1312 : vector<8x128xf32>
    %1314 = vector.extract_strided_slice %1309 {offsets = [0, 128], sizes = [8, 128], strides = [1, 1]} : vector<8x256xf32> to vector<8x128xf32>
    %1315 = arith.index_cast %1308 : i32 to index
    %c128_240 = arith.constant 128 : index
    %1316 = vector.load %arg13[%1315, %c128_240] : memref<64x256xf32, #tpu.memory_space<vmem>>, vector<8x128xf32>
    %1317 = arith.addf %1314, %1316 : vector<8x128xf32>
    %1318 = vector.extract_strided_slice %1313 {offsets = [0, 0], sizes = [8, 32], strides = [1, 1]} : vector<8x128xf32> to vector<8x32xf32>
    %1319 = arith.negf %1318 : vector<8x32xf32>
    %1320 = math.exp %1319 : vector<8x32xf32>
    %cst_241 = arith.constant 1.000000e+00 : f32
    %1321 = vector.broadcast %cst_241 : f32 to vector<8x32xf32>
    %1322 = arith.addf %1321, %1320 : vector<8x32xf32>
    %1323 = arith.divf %1321, %1322 : vector<8x32xf32>
    %1324 = vector.extract_strided_slice %1313 {offsets = [0, 32], sizes = [8, 32], strides = [1, 1]} : vector<8x128xf32> to vector<8x32xf32>
    %1325 = arith.negf %1324 : vector<8x32xf32>
    %1326 = math.exp %1325 : vector<8x32xf32>
    %cst_242 = arith.constant 1.000000e+00 : f32
    %1327 = vector.broadcast %cst_242 : f32 to vector<8x32xf32>
    %1328 = arith.addf %1327, %1326 : vector<8x32xf32>
    %1329 = arith.divf %1327, %1328 : vector<8x32xf32>
    %1330 = vector.extract_strided_slice %1313 {offsets = [0, 64], sizes = [8, 32], strides = [1, 1]} : vector<8x128xf32> to vector<8x32xf32>
    %1331 = math.tanh %1330 : vector<8x32xf32>
    %1332 = vector.extract_strided_slice %1313 {offsets = [0, 96], sizes = [8, 32], strides = [1, 1]} : vector<8x128xf32> to vector<8x32xf32>
    %1333 = arith.negf %1332 : vector<8x32xf32>
    %1334 = math.exp %1333 : vector<8x32xf32>
    %cst_243 = arith.constant 1.000000e+00 : f32
    %1335 = vector.broadcast %cst_243 : f32 to vector<8x32xf32>
    %1336 = arith.addf %1335, %1334 : vector<8x32xf32>
    %1337 = arith.divf %1335, %1336 : vector<8x32xf32>
    %1338 = arith.mulf %1329, %1295 : vector<8x32xf32>
    %1339 = arith.mulf %1323, %1331 : vector<8x32xf32>
    %1340 = arith.addf %1338, %1339 : vector<8x32xf32>
    %1341 = math.tanh %1340 : vector<8x32xf32>
    %1342 = arith.mulf %1337, %1341 : vector<8x32xf32>
    %1343 = vector.extract_strided_slice %1317 {offsets = [0, 0], sizes = [8, 32], strides = [1, 1]} : vector<8x128xf32> to vector<8x32xf32>
    %1344 = arith.negf %1343 : vector<8x32xf32>
    %1345 = math.exp %1344 : vector<8x32xf32>
    %cst_244 = arith.constant 1.000000e+00 : f32
    %1346 = vector.broadcast %cst_244 : f32 to vector<8x32xf32>
    %1347 = arith.addf %1346, %1345 : vector<8x32xf32>
    %1348 = arith.divf %1346, %1347 : vector<8x32xf32>
    %1349 = vector.extract_strided_slice %1317 {offsets = [0, 32], sizes = [8, 32], strides = [1, 1]} : vector<8x128xf32> to vector<8x32xf32>
    %1350 = arith.negf %1349 : vector<8x32xf32>
    %1351 = math.exp %1350 : vector<8x32xf32>
    %cst_245 = arith.constant 1.000000e+00 : f32
    %1352 = vector.broadcast %cst_245 : f32 to vector<8x32xf32>
    %1353 = arith.addf %1352, %1351 : vector<8x32xf32>
    %1354 = arith.divf %1352, %1353 : vector<8x32xf32>
    %1355 = vector.extract_strided_slice %1317 {offsets = [0, 64], sizes = [8, 32], strides = [1, 1]} : vector<8x128xf32> to vector<8x32xf32>
    %1356 = math.tanh %1355 : vector<8x32xf32>
    %1357 = vector.extract_strided_slice %1317 {offsets = [0, 96], sizes = [8, 32], strides = [1, 1]} : vector<8x128xf32> to vector<8x32xf32>
    %1358 = arith.negf %1357 : vector<8x32xf32>
    %1359 = math.exp %1358 : vector<8x32xf32>
    %cst_246 = arith.constant 1.000000e+00 : f32
    %1360 = vector.broadcast %cst_246 : f32 to vector<8x32xf32>
    %1361 = arith.addf %1360, %1359 : vector<8x32xf32>
    %1362 = arith.divf %1360, %1361 : vector<8x32xf32>
    %1363 = arith.mulf %1354, %1302 : vector<8x32xf32>
    %1364 = arith.mulf %1348, %1356 : vector<8x32xf32>
    %1365 = arith.addf %1363, %1364 : vector<8x32xf32>
    %1366 = math.tanh %1365 : vector<8x32xf32>
    %1367 = arith.mulf %1362, %1366 : vector<8x32xf32>
    %1368 = vector.broadcast %c7_i32_234 : i32 to vector<8x1xi32>
    %1369 = arith.cmpi slt, %1368, %0 : vector<8x1xi32>
    %1370 = vector.broadcast %1304 : i32 to vector<8x1xi32>
    %1371 = arith.cmpi slt, %1370, %0 : vector<8x1xi32>
    %1372 = vector.extract_strided_slice %1303 {offsets = [0, 0], sizes = [8, 32], strides = [1, 1]} : vector<8x64xf32> to vector<8x32xf32>
    %1373 = vector.shape_cast %1369 : vector<8x1xi1> to vector<8x1xi1>
    %1374 = vector.broadcast %1373 : vector<8x1xi1> to vector<8x32xi1>
    %1375 = arith.select %1374, %1342, %1372 : vector<8x32xi1>, vector<8x32xf32>
    %1376 = vector.shape_cast %1369 : vector<8x1xi1> to vector<8x1xi1>
    %1377 = vector.broadcast %1376 : vector<8x1xi1> to vector<8x32xi1>
    %1378 = arith.select %1377, %1340, %1295 : vector<8x32xi1>, vector<8x32xf32>
    %1379 = vector.extract_strided_slice %1303 {offsets = [0, 32], sizes = [8, 32], strides = [1, 1]} : vector<8x64xf32> to vector<8x32xf32>
    %1380 = vector.shape_cast %1371 : vector<8x1xi1> to vector<8x1xi1>
    %1381 = vector.broadcast %1380 : vector<8x1xi1> to vector<8x32xi1>
    %1382 = arith.select %1381, %1367, %1379 : vector<8x32xi1>, vector<8x32xf32>
    %1383 = vector.shape_cast %1371 : vector<8x1xi1> to vector<8x1xi1>
    %1384 = vector.broadcast %1383 : vector<8x1xi1> to vector<8x32xi1>
    %1385 = arith.select %1384, %1365, %1302 : vector<8x32xi1>, vector<8x32xf32>
    %1386 = tpu.concatenate %1375, %1382 in 1 : vector<8x32xf32>, vector<8x32xf32> -> vector<8x64xf32>
    %c8_i32_247 = arith.constant 8 : i32
    %c0_248 = arith.constant 0 : index
    %c0_249 = arith.constant 0 : index
    %1387 = vector.load %arg8[%c0_248, %c0_249] : memref<64x32xf32, #tpu.memory_space<vmem>>, vector<64x32xf32>
    %cst_250 = arith.constant dense<0.000000e+00> : vector<8x32xf32>
    %1388 = tpu.matmul %1386, %1387, %cst_250 {dimension_numbers = #tpu.dot_dimension_numbers<[1], [0], [0], [1], [0, 0, 1, 1], [], []>} : vector<8x64xf32>, vector<64x32xf32>, vector<8x32xf32> -> vector<8x32xf32>
    %c0_251 = arith.constant 0 : index
    %c0_252 = arith.constant 0 : index
    %1389 = vector.load %arg9[%c0_251, %c0_252] : memref<1x32xf32, #tpu.memory_space<vmem>>, vector<1x32xf32>
    %1390 = vector.broadcast %1389 : vector<1x32xf32> to vector<8x32xf32>
    %1391 = arith.addf %1388, %1390 : vector<8x32xf32>
    %c0_253 = arith.constant 0 : index
    %c0_254 = arith.constant 0 : index
    %1392 = vector.load %arg10[%c0_253, %c0_254] : memref<32x8xf32, #tpu.memory_space<vmem>>, vector<32x8xf32>
    %cst_255 = arith.constant dense<0.000000e+00> : vector<8x8xf32>
    %1393 = tpu.matmul %1391, %1392, %cst_255 {dimension_numbers = #tpu.dot_dimension_numbers<[1], [0], [0], [1], [0, 0, 1, 1], [], []>} : vector<8x32xf32>, vector<32x8xf32>, vector<8x8xf32> -> vector<8x8xf32>
    %c0_256 = arith.constant 0 : index
    %c0_257 = arith.constant 0 : index
    %1394 = vector.load %arg11[%c0_256, %c0_257] : memref<1x8xf32, #tpu.memory_space<vmem>>, vector<1x8xf32>
    %1395 = vector.broadcast %1394 : vector<1x8xf32> to vector<8x8xf32>
    %1396 = arith.addf %1393, %1395 : vector<8x8xf32>
    %c0_258 = arith.constant 0 : index
    %c0_259 = arith.constant 0 : index
    %1397 = vector.load %arg12[%c0_258, %c0_259] : memref<8x8xf32, #tpu.memory_space<vmem>>, vector<8x8xf32>
    tpu.vector_store %arg12[%c0_258, %c0_259], %1396 {strides = array<i32>} : memref<8x8xf32, #tpu.memory_space<vmem>>, vector<8x8xf32>,
    return
  }
}

</mosaic_0001>

<llo_original>
// kernel: tpu_custom_call.1
$region0: #{tpu_custom_call.1}
  #allocation0 [shape = 'u32[]', space=smem, size = 0x4, offset = 0x4, fixed_abs, tag = 'smem constant byte address 0x4 - core index']
  #allocation1 [shape = 'u32[144,128]{1,0:T(1,128)}', space=vmem, size = 0x12000, scoped, tag = 'internal scratch']
  #allocation2 [shape = 'f32[64,256]{1,0:T(8,128)}', space=vmem, size = 0x10000, scoped, tag = 'scratch operand']
  #allocation3 [shape = 'f32[64,32]{1,0:T(8,128)}', space=vmem, size = 0x8000, scoped, tag = 'scratch operand']
  #allocation4 [shape = 'f32[64,32]{1,0:T(8,128)}', space=vmem, size = 0x8000, scoped, tag = 'scratch operand']
  %s0 = inlined_call_operand.vmem [shape: f32[64,16], index: 0, kind: input, shape index: {}]
  %s1 = inlined_call_operand.vmem [shape: s32[8,1], index: 1, kind: input, shape index: {}]
  %s2 = inlined_call_operand.vmem [shape: f32[16,256], index: 2, kind: input, shape index: {}]
  %s3 = inlined_call_operand.vmem [shape: f32[1,256], index: 3, kind: input, shape index: {}]
  %s4 = inlined_call_operand.vmem [shape: f32[64,256], index: 4, kind: input, shape index: {}]
  %s5 = inlined_call_operand.hbm [shape: f32[64,256], index: 5, kind: input, shape index: {}]
  %s6 = inlined_call_operand.vmem [shape: f32[1,256], index: 6, kind: input, shape index: {}]
  %s7 = inlined_call_operand.hbm [shape: f32[64,256], index: 7, kind: input, shape index: {}]
  %s8 = inlined_call_operand.vmem [shape: f32[64,32], index: 8, kind: input, shape index: {}]
  %s9 = inlined_call_operand.vmem [shape: f32[1,32], index: 9, kind: input, shape index: {}]
  %s10 = inlined_call_operand.vmem [shape: f32[32,8], index: 10, kind: input, shape index: {}]
  %s11 = inlined_call_operand.vmem [shape: f32[1,8], index: 11, kind: input, shape index: {}]
  %s12 = inlined_call_operand.hbm [shape: f32[8,8], index: 12, kind: output, shape index: {}]
  %s13 = sld [smem:[#allocation0]]
  $region66: #{tpu_custom_call.1} parent=0
    _
  %s15 = ssub.s32 1, %s13
  %s16 = scalar_select 0, %s15, %s13
  $region1: #{tpu_custom_call.1} parent=0
    #allocation5 [shape = 'u8[65536]{0}', space=vmem, size = 0x10000, scoped, tag = 'input window, operand 5, single buffered']
    #allocation6 [shape = 's32[1]{0}', space=sflag, size = 0x4, scoped, tag = 'scoped memory for tpu_custom_call.1']
    #allocation7 [shape = 's32[1]{0}', space=sflag, size = 0x4, scoped, tag = 'scoped memory for tpu_custom_call.1']
    #allocation8 [shape = 'u8[65536]{0}', space=vmem, size = 0x10000, scoped, tag = 'input window, operand 7, single buffered']
    #allocation9 [shape = 's32[1]{0}', space=sflag, size = 0x4, scoped, tag = 'scoped memory for tpu_custom_call.1']
    #allocation10 [shape = 'u8[4096]{0}', space=vmem, size = 0x1000, scoped, tag = 'output window, operand 0, single buffered']
    %17 = vsyncpa [#allocation6], 0
    %18 = vsyncpa [#allocation9], 0
    %19 = vsyncpa [#allocation7], 0
    // Predicated region
    $region2: #{tpu_custom_call.1} parent=1 // pred_check
      _
    $region3: #{tpu_custom_call.1} parent=1 // pred_check_branch
      %21 = sbr.rel (0) target = $region5
    $region4: #{tpu_custom_call.1} parent=1 // pred_region
      _
    $region5: #{tpu_custom_call.1} parent=1 // pred_fallthru
      _
    // Predicated region
    $region6: #{tpu_custom_call.1} parent=1 // pred_check
      _
    $region7: #{tpu_custom_call.1} parent=1 // pred_check_branch
      %23 = sbr.rel (0) target = $region9
    $region8: #{tpu_custom_call.1} parent=1 // pred_region
      _
    $region9: #{tpu_custom_call.1} parent=1 // pred_fallthru
      _
    // Predicated region
    $region10: #{tpu_custom_call.1} parent=1 // pred_check
      _
    $region11: #{tpu_custom_call.1} parent=1 // pred_check_branch
      %25 = sbr.rel (0) target = $region13
    $region12: #{tpu_custom_call.1} parent=1 // pred_region
      _
    $region13: #{tpu_custom_call.1} parent=1 // pred_fallthru
      _
    // Predicated region
    $region14: #{tpu_custom_call.1} parent=1 // pred_check
      _
    $region15: #{tpu_custom_call.1} parent=1 // pred_check_branch
      %27 = sbr.rel (0) target = $region17
    $region16: #{tpu_custom_call.1} parent=1 // pred_region
      _
    $region17: #{tpu_custom_call.1} parent=1 // pred_fallthru
      _
    // Predicated region
    $region18: #{tpu_custom_call.1} parent=1 // pred_check
      _
    $region19: #{tpu_custom_call.1} parent=1 // pred_check_branch
      %29 = sbr.rel (0) target = $region21
    $region20: #{tpu_custom_call.1} parent=1 // pred_region
      _
    $region21: #{tpu_custom_call.1} parent=1 // pred_fallthru
      _
    // Predicated region
    $region22: #{tpu_custom_call.1} parent=1 // pred_check
      _
    $region23: #{tpu_custom_call.1} parent=1 // pred_check_branch
      %31 = sbr.rel (0) target = $region25
    $region24: #{tpu_custom_call.1} parent=1 // pred_region
      %s33 = ssub.s32 2048, 2048
      %34 = vsyncadd [#allocation6], %s33
      %s35 = sshll.u32 [#allocation5], 4
      %s36 = int_to_ptr.vmem [resolvable:$true] %s35
      %41 = dma.hbm_to_vmem [thread:$0]  %s5, 2048, %s36, [#allocation6], 256, 256, 16
    $region25: #{tpu_custom_call.1} parent=1 // pred_fallthru
      _
    // Predicated region
    $region26: #{tpu_custom_call.1} parent=1 // pred_check
      _
    $region27: #{tpu_custom_call.1} parent=1 // pred_check_branch
      %43 = sbr.rel (0) target = $region29
    $region28: #{tpu_custom_call.1} parent=1 // pred_region
      _
    $region29: #{tpu_custom_call.1} parent=1 // pred_fallthru
      _
    // Predicated region
    $region30: #{tpu_custom_call.1} parent=1 // pred_check
      _
    $region31: #{tpu_custom_call.1} parent=1 // pred_check_branch
      %45 = sbr.rel (0) target = $region33
    $region32: #{tpu_custom_call.1} parent=1 // pred_region
      %s47 = ssub.s32 2048, 2048
      %48 = vsyncadd [#allocation9], %s47
      %s49 = sshll.u32 [#allocation8], 4
      %s50 = int_to_ptr.vmem [resolvable:$true] %s49
      %55 = dma.hbm_to_vmem [thread:$0]  %s7, 2048, %s50, [#allocation9], 256, 256, 16
    $region33: #{tpu_custom_call.1} parent=1 // pred_fallthru
      _
    // Predicated region
    $region34: #{tpu_custom_call.1} parent=1 // pred_check
      _
    $region35: #{tpu_custom_call.1} parent=1 // pred_check_branch
      %57 = sbr.rel (0) target = $region37
    $region36: #{tpu_custom_call.1} parent=1 // pred_region
      _
    $region37: #{tpu_custom_call.1} parent=1 // pred_fallthru
      _
    // Predicated region
    $region38: #{tpu_custom_call.1} parent=1 // pred_check
      _
    $region39: #{tpu_custom_call.1} parent=1 // pred_check_branch
      %59 = sbr.rel (0) target = $region41
    $region40: #{tpu_custom_call.1} parent=1 // pred_region
      _
    $region41: #{tpu_custom_call.1} parent=1 // pred_fallthru
      _
    // Predicated region
    $region42: #{tpu_custom_call.1} parent=1 // pred_check
      _
    $region43: #{tpu_custom_call.1} parent=1 // pred_check_branch
      %61 = sbr.rel (0) target = $region45
    $region44: #{tpu_custom_call.1} parent=1 // pred_region
      _
    $region45: #{tpu_custom_call.1} parent=1 // pred_fallthru
      _
    // Predicated region
    $region46: #{tpu_custom_call.1} parent=1 // pred_check
      _
    $region47: #{tpu_custom_call.1} parent=1 // pred_check_branch
      %63 = sbr.rel (0) target = $region49
    $region48: #{tpu_custom_call.1} parent=1 // pred_region
      _
    $region49: #{tpu_custom_call.1} parent=1 // pred_fallthru
      _
    // Predicated region
    $region50: #{tpu_custom_call.1} parent=1 // pred_check
      _
    $region51: #{tpu_custom_call.1} parent=1 // pred_check_branch
      %65 = sbr.rel (0) target = $region53
    $region52: #{tpu_custom_call.1} parent=1 // pred_region
      %66 = dma.done [#allocation6], 2048
    $region53: #{tpu_custom_call.1} parent=1 // pred_fallthru
      _
    // Predicated region
    $region54: #{tpu_custom_call.1} parent=1 // pred_check
      _
    $region55: #{tpu_custom_call.1} parent=1 // pred_check_branch
      %68 = sbr.rel (0) target = $region57
    $region56: #{tpu_custom_call.1} parent=1 // pred_region
      %69 = dma.done [#allocation9], 2048
    $region57: #{tpu_custom_call.1} parent=1 // pred_fallthru
      _
    %v70 = vld [vmem:[%s1] sm:$0xff]
    %v71 = vld [vmem:[%s0] sm:$0xff]
    %v72 = vld [vmem:[%s0 + $0x8] sm:$0xff]
    %v73 = vld [vmem:[%s0 + $0x10] sm:$0xff]
    %v74 = vld [vmem:[%s0 + $0x18] sm:$0xff]
    %v75 = vld [vmem:[%s0 + $0x20] sm:$0xff]
    %v76 = vld [vmem:[%s0 + $0x28] sm:$0xff]
    %v77 = vld [vmem:[%s0 + $0x30] sm:$0xff]
    %v78 = vld [vmem:[%s0 + $0x38] sm:$0xff]
    %v79 = vld [vmem:[%s2] sm:$0xff]
    %v80 = vld [vmem:[%s2 + $0x8] sm:$0xff]
    %v81 = vld [vmem:[%s2 + $0x10] sm:$0xff]
    %v82 = vld [vmem:[%s2 + $0x18] sm:$0xff]
    %v83 = vld [vmem:[%s3] sm:$0x3]
    %v85 = vlaneseq
    %v86 = vshrl.u32 %v85, 7
    %v87 = vsub.s32 0, %v86
    %v88 = vrot.slane %v83, %v87
    %v89 = vlaneseq
    %v90 = vshrl.u32 %v89, 7
    %v91 = vsub.s32 1, %v90
    %v92 = vrot.slane %v83, %v91
    %vm95 = vcmask 130048
    %v97 = vsel %vm95, %v71, 0
    %v100 = vsel %vm95, %v72, 0
    %v103 = vsel %vm95, %v73, 0
    %v106 = vsel %vm95, %v74, 0
    %v109 = vsel %vm95, %v75, 0
    %v112 = vsel %vm95, %v76, 0
    %v115 = vsel %vm95, %v77, 0
    %v118 = vsel %vm95, %v78, 0
    %120 = vmatprep.subr.mxu0 %v80
    %121 = vmatpush1.msra.mxu0 %v79
    %122 = vmatprep.subr.mxu0 %v82
    %123 = vmatpush1.msra.mxu0 %v81
    %124 = vmatprep.subr.mxu0 0.0
    %125 = vmatpush1.msra.mxu0 0.0
    %126 = vmatprep.subr.mxu0 0.0
    %127 = vmatpush1.msra.mxu0 0.0
    %128 = vmatprep.subr.mxu0 0.0
    %129 = vmatpush1.msra.mxu0 0.0
    %130 = vmatprep.subr.mxu0 0.0
    %131 = vmatpush1.msra.mxu0 0.0
    %132 = vmatprep.subr.mxu0 0.0
    %133 = vmatpush1.msra.mxu0 0.0
    %134 = vmatprep.subr.mxu0 0.0
    %135 = vmatpush1.msra.mxu0 0.0
    %136 = vmatprep.subr.mxu0 0.0
    %137 = vmatpush1.msra.mxu0 0.0
    %138 = vmatprep.subr.mxu0 0.0
    %139 = vmatpush1.msra.mxu0 0.0
    %140 = vmatprep.subr.mxu0 0.0
    %141 = vmatpush1.msra.mxu0 0.0
    %142 = vmatprep.subr.mxu0 0.0
    %143 = vmatpush1.msra.mxu0 0.0
    %144 = vmatprep.subr.mxu0 0.0
    %145 = vmatpush1.msra.mxu0 0.0
    %146 = vmatprep.subr.mxu0 0.0
    %147 = vmatpush1.msra.mxu0 0.0
    %148 = vmatprep.subr.mxu0 0.0
    %149 = vmatpush1.msra.mxu0 0.0
    %150 = vmatprep.subr.mxu0 0.0
    %151 = vmatpush1.msra.mxu0 0.0
    %152 = vmatprep.subr.mxu0 0.0
    %153 = vmatpush1.msra.mxu0 0.0
    %154 = vmatprep.subr.mxu0 0.0
    %155 = vmatpush1.msra.mxu0 0.0
    %156 = vmatprep.subr.mxu0 0.0
    %157 = vmatpush1.msra.mxu0 0.0
    %158 = vmatprep.subr.mxu0 0.0
    %159 = vmatpush1.msra.mxu0 0.0
    %160 = vmatprep.subr.mxu0 0.0
    %161 = vmatpush1.msra.mxu0 0.0
    %162 = vmatprep.subr.mxu0 0.0
    %163 = vmatpush1.msra.mxu0 0.0
    %164 = vmatprep.subr.mxu0 0.0
    %165 = vmatpush1.msra.mxu0 0.0
    %166 = vmatprep.subr.mxu0 0.0
    %167 = vmatpush1.msra.mxu0 0.0
    %168 = vmatprep.subr.mxu0 0.0
    %169 = vmatpush1.msra.mxu0 0.0
    %170 = vmatprep.subr.mxu0 0.0
    %171 = vmatpush1.msra.mxu0 0.0
    %172 = vmatprep.subr.mxu0 0.0
    %173 = vmatpush1.msra.mxu0 0.0
    %174 = vmatprep.subr.mxu0 0.0
    %175 = vmatpush1.msra.mxu0 0.0
    %176 = vmatprep.subr.mxu0 0.0
    %177 = vmatpush1.msra.mxu0 0.0
    %178 = vmatprep.subr.mxu0 0.0
    %179 = vmatpush1.msra.mxu0 0.0
    %180 = vmatprep.subr.mxu0 0.0
    %181 = vmatpush1.msra.mxu0 0.0
    %182 = vmatprep.subr.mxu0 0.0
    %183 = vmatpush1.msra.mxu0 0.0
    %184 = vmatprep.mubr.f32.mxu0 0.0
    %185 = vmatmul.mubr.f32.gmra.mrb[0].mxu0 %v97
    %v186 = vpop.f32.mrb[0].mxu0
    %v187 = vadd.f32 %v88, %v186
    %v188 = vpop.f32.mrb[0].mxu0
    %v189 = vadd.f32 %v92, %v188
    %190 = vmatprep.mubr.f32.mxu0 0.0
    %191 = vmatmul.mubr.f32.gmra.mrb[0].mxu0 %v100
    %v192 = vpop.f32.mrb[0].mxu0
    %v193 = vadd.f32 %v88, %v192
    %v194 = vpop.f32.mrb[0].mxu0
    %v195 = vadd.f32 %v92, %v194
    %196 = vmatprep.mubr.f32.mxu0 0.0
    %197 = vmatmul.mubr.f32.gmra.mrb[0].mxu0 %v103
    %v198 = vpop.f32.mrb[0].mxu0
    %v199 = vadd.f32 %v88, %v198
    %v200 = vpop.f32.mrb[0].mxu0
    %v201 = vadd.f32 %v92, %v200
    %202 = vmatprep.mubr.f32.mxu0 0.0
    %203 = vmatmul.mubr.f32.gmra.mrb[0].mxu0 %v106
    %v204 = vpop.f32.mrb[0].mxu0
    %v205 = vadd.f32 %v88, %v204
    %v206 = vpop.f32.mrb[0].mxu0
    %v207 = vadd.f32 %v92, %v206
    %208 = vmatprep.mubr.f32.mxu0 0.0
    %209 = vmatmul.mubr.f32.gmra.mrb[0].mxu0 %v109
    %v210 = vpop.f32.mrb[0].mxu0
    %v211 = vadd.f32 %v88, %v210
    %v212 = vpop.f32.mrb[0].mxu0
    %v213 = vadd.f32 %v92, %v212
    %214 = vmatprep.mubr.f32.mxu0 0.0
    %215 = vmatmul.mubr.f32.gmra.mrb[0].mxu0 %v112
    %v216 = vpop.f32.mrb[0].mxu0
    %v217 = vadd.f32 %v88, %v216
    %v218 = vpop.f32.mrb[0].mxu0
    %v219 = vadd.f32 %v92, %v218
    %220 = vmatprep.mubr.f32.mxu0 0.0
    %221 = vmatmul.mubr.f32.gmra.mrb[0].mxu0 %v115
    %v222 = vpop.f32.mrb[0].mxu0
    %v223 = vadd.f32 %v88, %v222
    %v224 = vpop.f32.mrb[0].mxu0
    %v225 = vadd.f32 %v92, %v224
    %226 = vmatprep.mubr.f32.mxu0 0.0
    %227 = vmatmul.mubr.f32.gmra.mrb[0].mxu0 %v118
    %v228 = vpop.f32.mrb[0].mxu0
    %v229 = vadd.f32 %v88, %v228
    %v230 = vpop.f32.mrb[0].mxu0
    %v231 = vadd.f32 %v92, %v230
    %232 = vdwg.mxu0
    %233 = vst [vmem:[#allocation2] sm:$0xff] %v187
    %234 = vst [vmem:[#allocation2 + $0x8] sm:$0xff] %v189
    %235 = vst [vmem:[#allocation2 + $0x10] sm:$0xff] %v193
    %236 = vst [vmem:[#allocation2 + $0x18] sm:$0xff] %v195
    %237 = vst [vmem:[#allocation2 + $0x20] sm:$0xff] %v199
    %238 = vst [vmem:[#allocation2 + $0x28] sm:$0xff] %v201
    %239 = vst [vmem:[#allocation2 + $0x30] sm:$0xff] %v205
    %240 = vst [vmem:[#allocation2 + $0x38] sm:$0xff] %v207
    %241 = vst [vmem:[#allocation2 + $0x40] sm:$0xff] %v211
    %242 = vst [vmem:[#allocation2 + $0x48] sm:$0xff] %v213
    %243 = vst [vmem:[#allocation2 + $0x50] sm:$0xff] %v217
    %244 = vst [vmem:[#allocation2 + $0x58] sm:$0xff] %v219
    %245 = vst [vmem:[#allocation2 + $0x60] sm:$0xff] %v223
    %246 = vst [vmem:[#allocation2 + $0x68] sm:$0xff] %v225
    %247 = vst [vmem:[#allocation2 + $0x70] sm:$0xff] %v229
    %248 = vst [vmem:[#allocation2 + $0x78] sm:$0xff] %v231
    %v249 = vld [vmem:[%s4] sm:$0xff]
    %v250 = vld [vmem:[%s4 + $0x8] sm:$0xff]
    %v251 = vld [vmem:[%s4 + $0x10] sm:$0xff]
    %v252 = vld [vmem:[%s4 + $0x18] sm:$0xff]
    %v253 = vld [vmem:[%s4 + $0x20] sm:$0xff]
    %v254 = vld [vmem:[%s4 + $0x28] sm:$0xff]
    %v255 = vld [vmem:[%s4 + $0x30] sm:$0xff]
    %v256 = vld [vmem:[%s4 + $0x38] sm:$0xff]
    %v257 = vld [vmem:[%s4 + $0x40] sm:$0xff]
    %v258 = vld [vmem:[%s4 + $0x48] sm:$0xff]
    %v259 = vld [vmem:[%s4 + $0x50] sm:$0xff]
    %v260 = vld [vmem:[%s4 + $0x58] sm:$0xff]
    %v261 = vld [vmem:[%s4 + $0x60] sm:$0xff]
    %v262 = vld [vmem:[%s4 + $0x68] sm:$0xff]
    %v263 = vld [vmem:[%s4 + $0x70] sm:$0xff]
    %v264 = vld [vmem:[%s4 + $0x78] sm:$0xff]
    %vm265 = vcmask 523264
    %v267 = vsel %vm265, 0.0, 0
    %269 = vmatprep.subr.mxu0 %v250
    %270 = vmatpush1.msra.mxu0 %v249
    %271 = vmatprep.subr.mxu0 %v252
    %272 = vmatpush1.msra.mxu0 %v251
    %273 = vmatprep.subr.mxu0 %v254
    %274 = vmatpush1.msra.mxu0 %v253
    %275 = vmatprep.subr.mxu0 %v256
    %276 = vmatpush1.msra.mxu0 %v255
    %277 = vmatprep.subr.mxu0 %v258
    %278 = vmatpush1.msra.mxu0 %v257
    %279 = vmatprep.subr.mxu0 %v260
    %280 = vmatpush1.msra.mxu0 %v259
    %281 = vmatprep.subr.mxu0 %v262
    %282 = vmatpush1.msra.mxu0 %v261
    %283 = vmatprep.subr.mxu0 %v264
    %284 = vmatpush1.msra.mxu0 %v263
    %285 = vmatprep.subr.mxu0 0.0
    %286 = vmatpush1.msra.mxu0 0.0
    %287 = vmatprep.subr.mxu0 0.0
    %288 = vmatpush1.msra.mxu0 0.0
    %289 = vmatprep.subr.mxu0 0.0
    %290 = vmatpush1.msra.mxu0 0.0
    %291 = vmatprep.subr.mxu0 0.0
    %292 = vmatpush1.msra.mxu0 0.0
    %293 = vmatprep.subr.mxu0 0.0
    %294 = vmatpush1.msra.mxu0 0.0
    %295 = vmatprep.subr.mxu0 0.0
    %296 = vmatpush1.msra.mxu0 0.0
    %297 = vmatprep.subr.mxu0 0.0
    %298 = vmatpush1.msra.mxu0 0.0
    %299 = vmatprep.subr.mxu0 0.0
    %300 = vmatpush1.msra.mxu0 0.0
    %301 = vmatprep.subr.mxu0 0.0
    %302 = vmatpush1.msra.mxu0 0.0
    %303 = vmatprep.subr.mxu0 0.0
    %304 = vmatpush1.msra.mxu0 0.0
    %305 = vmatprep.subr.mxu0 0.0
    %306 = vmatpush1.msra.mxu0 0.0
    %307 = vmatprep.subr.mxu0 0.0
    %308 = vmatpush1.msra.mxu0 0.0
    %309 = vmatprep.subr.mxu0 0.0
    %310 = vmatpush1.msra.mxu0 0.0
    %311 = vmatprep.subr.mxu0 0.0
    %312 = vmatpush1.msra.mxu0 0.0
    %313 = vmatprep.subr.mxu0 0.0
    %314 = vmatpush1.msra.mxu0 0.0
    %315 = vmatprep.subr.mxu0 0.0
    %316 = vmatpush1.msra.mxu0 0.0
    %317 = vmatprep.subr.mxu0 0.0
    %318 = vmatpush1.msra.mxu0 0.0
    %319 = vmatprep.subr.mxu0 0.0
    %320 = vmatpush1.msra.mxu0 0.0
    %321 = vmatprep.subr.mxu0 0.0
    %322 = vmatpush1.msra.mxu0 0.0
    %323 = vmatprep.subr.mxu0 0.0
    %324 = vmatpush1.msra.mxu0 0.0
    %325 = vmatprep.subr.mxu0 0.0
    %326 = vmatpush1.msra.mxu0 0.0
    %327 = vmatprep.subr.mxu0 0.0
    %328 = vmatpush1.msra.mxu0 0.0
    %329 = vmatprep.subr.mxu0 0.0
    %330 = vmatpush1.msra.mxu0 0.0
    %331 = vmatprep.subr.mxu0 0.0
    %332 = vmatpush1.msra.mxu0 0.0
    %333 = vmatprep.mubr.f32.mxu0 0.0
    %334 = vmatmul.mubr.f32.gmra.mrb[0].mxu0 %v267
    %v335 = vpop.f32.mrb[0].mxu0
    %v336 = vadd.f32 0.0, %v335
    %v337 = vpop.f32.mrb[0].mxu0
    %v338 = vadd.f32 0.0, %v337
    %339 = vdwg.mxu0
    %s340 = smul.u32 0, 2
    %s341 = smul.addr %s340, 8
    %s342 = scalar_lea.vmem [#allocation2], %s341
    %v343 = vld [vmem:[%s342] sm:$0xff]
    %v344 = vadd.f32 %v336, %v343
    %s345 = smul.u32 7, 2
    %s346 = smul.addr %s345, 8
    %s347 = scalar_lea.vmem [#allocation2], %s346
    %v348 = vld [vmem:[%s347 + $0x8] sm:$0xff]
    %v349 = vadd.f32 %v338, %v348
    %v350 = vxor.u32 %v344, 2147483648
    %v351 = vmul.f32 %v350, 1.442695
    %v352 = vpow.pop %v351
    %v353 = vadd.f32 %v352, 1.0
    %v354 = vrcp.pop %v353
    %v355 = vmul.f32 1.0, %v354
    %v356 = vtanh.pop %v344
    %v357 = vmul.f32 %v355, 0.0
    %359 = vrot.lane.b32.xlu0 %v356, 64
    %v360 = vpop.permute.xlu0 %359
    %v362 = vmul.f32 %v355, %v360
    %364 = vrot.lane.b32.xlu0 %v362, 32
    %v365 = vpop.permute.xlu0 %364
    %v367 = vadd.f32 %v357, %v365
    %v368 = vtanh.pop %v367
    %370 = vrot.lane.b32.xlu0 %v368, 64
    %v371 = vpop.permute.xlu0 %370
    %v373 = vmul.f32 %v355, %v371
    %v374 = vxor.u32 %v349, 2147483648
    %v375 = vmul.f32 %v374, 1.442695
    %v376 = vpow.pop %v375
    %v377 = vadd.f32 %v376, 1.0
    %v378 = vrcp.pop %v377
    %v379 = vmul.f32 1.0, %v378
    %v380 = vtanh.pop %v349
    %v381 = vmul.f32 %v379, 0.0
    %383 = vrot.lane.b32.xlu0 %v380, 64
    %v384 = vpop.permute.xlu0 %383
    %v386 = vmul.f32 %v379, %v384
    %388 = vrot.lane.b32.xlu0 %v386, 32
    %v389 = vpop.permute.xlu0 %388
    %v391 = vadd.f32 %v381, %v389
    %v392 = vtanh.pop %v391
    %394 = vrot.lane.b32.xlu0 %v392, 64
    %v395 = vpop.permute.xlu0 %394
    %v397 = vmul.f32 %v379, %v395
    %vm398 = vcmp.gt.s32.totalorder %v70, 0
    %vm399 = vcmp.gt.s32.totalorder %v70, 7
    %v400 = vsel %vm398, 1, 0
    %401 = vset.pattern.permute.xlu0 0
    %402 = vperm.xlu0 %401, %v400
    %v403 = vpop.permute.xlu0 %402
    %vm404 = vcmp.eq.s32.totalorder %v403, 1
    %v405 = vsel %vm404, %v373, 0.0
    %v406 = vsel %vm404, %v367, 0.0
    %v407 = vsel %vm399, 1, 0
    %408 = vset.pattern.permute.xlu0 0
    %409 = vperm.xlu0 %408, %v407
    %v410 = vpop.permute.xlu0 %409
    %vm411 = vcmp.eq.s32.totalorder %v410, 1
    %v412 = vsel %vm411, %v397, 0.0
    %v413 = vsel %vm411, %v391, 0.0
    %415 = vrot.lane.b32.xlu0 %v405, 32
    %v416 = vpop.permute.xlu0 %415
    %vm418 = vcmask 261120
    %419 = vst.msk [vmem:[#allocation3] sm:$0xff] %vm418, %v416
    %421 = vrot.lane.b32.xlu0 %v412, 32
    %v422 = vpop.permute.xlu0 %421
    %s424 = scalar_lea.vmem [#allocation4], 56
    %425 = vst.msk [vmem:[%s424] sm:$0xff] %vm418, %v422
    %426 = vrot.lane.b32.xlu0 %v412, 64
    %v427 = vpop.permute.xlu0 %426
    %v429 = vsel %vm418, %v416, %v427
    %v431 = vsel %vm265, %v429, 0
    %433 = vmatprep.subr.mxu0 %v250
    %434 = vmatpush1.msra.mxu0 %v249
    %435 = vmatprep.subr.mxu0 %v252
    %436 = vmatpush1.msra.mxu0 %v251
    %437 = vmatprep.subr.mxu0 %v254
    %438 = vmatpush1.msra.mxu0 %v253
    %439 = vmatprep.subr.mxu0 %v256
    %440 = vmatpush1.msra.mxu0 %v255
    %441 = vmatprep.subr.mxu0 %v258
    %442 = vmatpush1.msra.mxu0 %v257
    %443 = vmatprep.subr.mxu0 %v260
    %444 = vmatpush1.msra.mxu0 %v259
    %445 = vmatprep.subr.mxu0 %v262
    %446 = vmatpush1.msra.mxu0 %v261
    %447 = vmatprep.subr.mxu0 %v264
    %448 = vmatpush1.msra.mxu0 %v263
    %449 = vmatprep.subr.mxu0 0.0
    %450 = vmatpush1.msra.mxu0 0.0
    %451 = vmatprep.subr.mxu0 0.0
    %452 = vmatpush1.msra.mxu0 0.0
    %453 = vmatprep.subr.mxu0 0.0
    %454 = vmatpush1.msra.mxu0 0.0
    %455 = vmatprep.subr.mxu0 0.0
    %456 = vmatpush1.msra.mxu0 0.0
    %457 = vmatprep.subr.mxu0 0.0
    %458 = vmatpush1.msra.mxu0 0.0
    %459 = vmatprep.subr.mxu0 0.0
    %460 = vmatpush1.msra.mxu0 0.0
    %461 = vmatprep.subr.mxu0 0.0
    %462 = vmatpush1.msra.mxu0 0.0
    %463 = vmatprep.subr.mxu0 0.0
    %464 = vmatpush1.msra.mxu0 0.0
    %465 = vmatprep.subr.mxu0 0.0
    %466 = vmatpush1.msra.mxu0 0.0
    %467 = vmatprep.subr.mxu0 0.0
    %468 = vmatpush1.msra.mxu0 0.0
    %469 = vmatprep.subr.mxu0 0.0
    %470 = vmatpush1.msra.mxu0 0.0
    %471 = vmatprep.subr.mxu0 0.0
    %472 = vmatpush1.msra.mxu0 0.0
    %473 = vmatprep.subr.mxu0 0.0
    %474 = vmatpush1.msra.mxu0 0.0
    %475 = vmatprep.subr.mxu0 0.0
    %476 = vmatpush1.msra.mxu0 0.0
    %477 = vmatprep.subr.mxu0 0.0
    %478 = vmatpush1.msra.mxu0 0.0
    %479 = vmatprep.subr.mxu0 0.0
    %480 = vmatpush1.msra.mxu0 0.0
    %481 = vmatprep.subr.mxu0 0.0
    %482 = vmatpush1.msra.mxu0 0.0
    %483 = vmatprep.subr.mxu0 0.0
    %484 = vmatpush1.msra.mxu0 0.0
    %485 = vmatprep.subr.mxu0 0.0
    %486 = vmatpush1.msra.mxu0 0.0
    %487 = vmatprep.subr.mxu0 0.0
    %488 = vmatpush1.msra.mxu0 0.0
    %489 = vmatprep.subr.mxu0 0.0
    %490 = vmatpush1.msra.mxu0 0.0
    %491 = vmatprep.subr.mxu0 0.0
    %492 = vmatpush1.msra.mxu0 0.0
    %493 = vmatprep.subr.mxu0 0.0
    %494 = vmatpush1.msra.mxu0 0.0
    %495 = vmatprep.subr.mxu0 0.0
    %496 = vmatpush1.msra.mxu0 0.0
    %497 = vmatprep.mubr.f32.mxu0 0.0
    %498 = vmatmul.mubr.f32.gmra.mrb[0].mxu0 %v431
    %v499 = vpop.f32.mrb[0].mxu0
    %v500 = vadd.f32 0.0, %v499
    %v501 = vpop.f32.mrb[0].mxu0
    %v502 = vadd.f32 0.0, %v501
    %503 = vdwg.mxu0
    %s504 = smul.u32 1, 2
    %s505 = smul.addr %s504, 8
    %s506 = scalar_lea.vmem [#allocation2], %s505
    %v507 = vld [vmem:[%s506] sm:$0xff]
    %v508 = vadd.f32 %v500, %v507
    %s509 = smul.u32 6, 2
    %s510 = smul.addr %s509, 8
    %s511 = scalar_lea.vmem [#allocation2], %s510
    %v512 = vld [vmem:[%s511 + $0x8] sm:$0xff]
    %v513 = vadd.f32 %v502, %v512
    %v514 = vxor.u32 %v508, 2147483648
    %v515 = vmul.f32 %v514, 1.442695
    %v516 = vpow.pop %v515
    %v517 = vadd.f32 %v516, 1.0
    %v518 = vrcp.pop %v517
    %v519 = vmul.f32 1.0, %v518
    %v520 = vtanh.pop %v508
    %v521 = vmul.f32 %v519, %v406
    %523 = vrot.lane.b32.xlu0 %v520, 64
    %v524 = vpop.permute.xlu0 %523
    %v526 = vmul.f32 %v519, %v524
    %528 = vrot.lane.b32.xlu0 %v526, 32
    %v529 = vpop.permute.xlu0 %528
    %v531 = vadd.f32 %v521, %v529
    %v532 = vtanh.pop %v531
    %534 = vrot.lane.b32.xlu0 %v532, 64
    %v535 = vpop.permute.xlu0 %534
    %v537 = vmul.f32 %v519, %v535
    %v538 = vxor.u32 %v513, 2147483648
    %v539 = vmul.f32 %v538, 1.442695
    %v540 = vpow.pop %v539
    %v541 = vadd.f32 %v540, 1.0
    %v542 = vrcp.pop %v541
    %v543 = vmul.f32 1.0, %v542
    %v544 = vtanh.pop %v513
    %v545 = vmul.f32 %v543, %v413
    %547 = vrot.lane.b32.xlu0 %v544, 64
    %v548 = vpop.permute.xlu0 %547
    %v550 = vmul.f32 %v543, %v548
    %552 = vrot.lane.b32.xlu0 %v550, 32
    %v553 = vpop.permute.xlu0 %552
    %v555 = vadd.f32 %v545, %v553
    %v556 = vtanh.pop %v555
    %558 = vrot.lane.b32.xlu0 %v556, 64
    %v559 = vpop.permute.xlu0 %558
    %v561 = vmul.f32 %v543, %v559
    %vm562 = vcmp.gt.s32.totalorder %v70, 1
    %vm563 = vcmp.gt.s32.totalorder %v70, 6
    %v564 = vsel %vm562, 1, 0
    %565 = vset.pattern.permute.xlu0 0
    %566 = vperm.xlu0 %565, %v564
    %v567 = vpop.permute.xlu0 %566
    %vm568 = vcmp.eq.s32.totalorder %v567, 1
    %569 = vrot.lane.b32.xlu0 %v429, 96
    %v570 = vpop.permute.xlu0 %569
    %v572 = vsel %vm568, %v537, %v570
    %v573 = vsel %vm568, %v531, %v406
    %v574 = vsel %vm563, 1, 0
    %575 = vset.pattern.permute.xlu0 0
    %576 = vperm.xlu0 %575, %v574
    %v577 = vpop.permute.xlu0 %576
    %vm578 = vcmp.eq.s32.totalorder %v577, 1
    %579 = vrot.lane.b32.xlu0 %v429, 64
    %v580 = vpop.permute.xlu0 %579
    %v582 = vsel %vm578, %v561, %v580
    %v583 = vsel %vm578, %v555, %v413
    %585 = vrot.lane.b32.xlu0 %v572, 32
    %v586 = vpop.permute.xlu0 %585
    %s588 = scalar_lea.vmem [#allocation3], 8
    %589 = vst.msk [vmem:[%s588] sm:$0xff] %vm418, %v586
    %591 = vrot.lane.b32.xlu0 %v582, 32
    %v592 = vpop.permute.xlu0 %591
    %s594 = scalar_lea.vmem [#allocation4], 48
    %595 = vst.msk [vmem:[%s594] sm:$0xff] %vm418, %v592
    %596 = vrot.lane.b32.xlu0 %v582, 64
    %v597 = vpop.permute.xlu0 %596
    %v599 = vsel %vm418, %v586, %v597
    %v601 = vsel %vm265, %v599, 0
    %603 = vmatprep.subr.mxu0 %v250
    %604 = vmatpush1.msra.mxu0 %v249
    %605 = vmatprep.subr.mxu0 %v252
    %606 = vmatpush1.msra.mxu0 %v251
    %607 = vmatprep.subr.mxu0 %v254
    %608 = vmatpush1.msra.mxu0 %v253
    %609 = vmatprep.subr.mxu0 %v256
    %610 = vmatpush1.msra.mxu0 %v255
    %611 = vmatprep.subr.mxu0 %v258
    %612 = vmatpush1.msra.mxu0 %v257
    %613 = vmatprep.subr.mxu0 %v260
    %614 = vmatpush1.msra.mxu0 %v259
    %615 = vmatprep.subr.mxu0 %v262
    %616 = vmatpush1.msra.mxu0 %v261
    %617 = vmatprep.subr.mxu0 %v264
    %618 = vmatpush1.msra.mxu0 %v263
    %619 = vmatprep.subr.mxu0 0.0
    %620 = vmatpush1.msra.mxu0 0.0
    %621 = vmatprep.subr.mxu0 0.0
    %622 = vmatpush1.msra.mxu0 0.0
    %623 = vmatprep.subr.mxu0 0.0
    %624 = vmatpush1.msra.mxu0 0.0
    %625 = vmatprep.subr.mxu0 0.0
    %626 = vmatpush1.msra.mxu0 0.0
    %627 = vmatprep.subr.mxu0 0.0
    %628 = vmatpush1.msra.mxu0 0.0
    %629 = vmatprep.subr.mxu0 0.0
    %630 = vmatpush1.msra.mxu0 0.0
    %631 = vmatprep.subr.mxu0 0.0
    %632 = vmatpush1.msra.mxu0 0.0
    %633 = vmatprep.subr.mxu0 0.0
    %634 = vmatpush1.msra.mxu0 0.0
    %635 = vmatprep.subr.mxu0 0.0
    %636 = vmatpush1.msra.mxu0 0.0
    %637 = vmatprep.subr.mxu0 0.0
    %638 = vmatpush1.msra.mxu0 0.0
    %639 = vmatprep.subr.mxu0 0.0
    %640 = vmatpush1.msra.mxu0 0.0
    %641 = vmatprep.subr.mxu0 0.0
    %642 = vmatpush1.msra.mxu0 0.0
    %643 = vmatprep.subr.mxu0 0.0
    %644 = vmatpush1.msra.mxu0 0.0
    %645 = vmatprep.subr.mxu0 0.0
    %646 = vmatpush1.msra.mxu0 0.0
    %647 = vmatprep.subr.mxu0 0.0
    %648 = vmatpush1.msra.mxu0 0.0
    %649 = vmatprep.subr.mxu0 0.0
    %650 = vmatpush1.msra.mxu0 0.0
    %651 = vmatprep.subr.mxu0 0.0
    %652 = vmatpush1.msra.mxu0 0.0
    %653 = vmatprep.subr.mxu0 0.0
    %654 = vmatpush1.msra.mxu0 0.0
    %655 = vmatprep.subr.mxu0 0.0
    %656 = vmatpush1.msra.mxu0 0.0
    %657 = vmatprep.subr.mxu0 0.0
    %658 = vmatpush1.msra.mxu0 0.0
    %659 = vmatprep.subr.mxu0 0.0
    %660 = vmatpush1.msra.mxu0 0.0
    %661 = vmatprep.subr.mxu0 0.0
    %662 = vmatpush1.msra.mxu0 0.0
    %663 = vmatprep.subr.mxu0 0.0
    %664 = vmatpush1.msra.mxu0 0.0
    %665 = vmatprep.subr.mxu0 0.0
    %666 = vmatpush1.msra.mxu0 0.0
    %667 = vmatprep.mubr.f32.mxu0 0.0
    %668 = vmatmul.mubr.f32.gmra.mrb[0].mxu0 %v601
    %v669 = vpop.f32.mrb[0].mxu0
    %v670 = vadd.f32 0.0, %v669
    %v671 = vpop.f32.mrb[0].mxu0
    %v672 = vadd.f32 0.0, %v671
    %673 = vdwg.mxu0
    %s674 = smul.u32 2, 2
    %s675 = smul.addr %s674, 8
    %s676 = scalar_lea.vmem [#allocation2], %s675
    %v677 = vld [vmem:[%s676] sm:$0xff]
    %v678 = vadd.f32 %v670, %v677
    %s679 = smul.u32 5, 2
    %s680 = smul.addr %s679, 8
    %s681 = scalar_lea.vmem [#allocation2], %s680
    %v682 = vld [vmem:[%s681 + $0x8] sm:$0xff]
    %v683 = vadd.f32 %v672, %v682
    %v684 = vxor.u32 %v678, 2147483648
    %v685 = vmul.f32 %v684, 1.442695
    %v686 = vpow.pop %v685
    %v687 = vadd.f32 %v686, 1.0
    %v688 = vrcp.pop %v687
    %v689 = vmul.f32 1.0, %v688
    %v690 = vtanh.pop %v678
    %v691 = vmul.f32 %v689, %v573
    %693 = vrot.lane.b32.xlu0 %v690, 64
    %v694 = vpop.permute.xlu0 %693
    %v696 = vmul.f32 %v689, %v694
    %698 = vrot.lane.b32.xlu0 %v696, 32
    %v699 = vpop.permute.xlu0 %698
    %v701 = vadd.f32 %v691, %v699
    %v702 = vtanh.pop %v701
    %704 = vrot.lane.b32.xlu0 %v702, 64
    %v705 = vpop.permute.xlu0 %704
    %v707 = vmul.f32 %v689, %v705
    %v708 = vxor.u32 %v683, 2147483648
    %v709 = vmul.f32 %v708, 1.442695
    %v710 = vpow.pop %v709
    %v711 = vadd.f32 %v710, 1.0
    %v712 = vrcp.pop %v711
    %v713 = vmul.f32 1.0, %v712
    %v714 = vtanh.pop %v683
    %v715 = vmul.f32 %v713, %v583
    %717 = vrot.lane.b32.xlu0 %v714, 64
    %v718 = vpop.permute.xlu0 %717
    %v720 = vmul.f32 %v713, %v718
    %722 = vrot.lane.b32.xlu0 %v720, 32
    %v723 = vpop.permute.xlu0 %722
    %v725 = vadd.f32 %v715, %v723
    %v726 = vtanh.pop %v725
    %728 = vrot.lane.b32.xlu0 %v726, 64
    %v729 = vpop.permute.xlu0 %728
    %v731 = vmul.f32 %v713, %v729
    %vm732 = vcmp.gt.s32.totalorder %v70, 2
    %vm733 = vcmp.gt.s32.totalorder %v70, 5
    %v734 = vsel %vm732, 1, 0
    %735 = vset.pattern.permute.xlu0 0
    %736 = vperm.xlu0 %735, %v734
    %v737 = vpop.permute.xlu0 %736
    %vm738 = vcmp.eq.s32.totalorder %v737, 1
    %739 = vrot.lane.b32.xlu0 %v599, 96
    %v740 = vpop.permute.xlu0 %739
    %v742 = vsel %vm738, %v707, %v740
    %v743 = vsel %vm738, %v701, %v573
    %v744 = vsel %vm733, 1, 0
    %745 = vset.pattern.permute.xlu0 0
    %746 = vperm.xlu0 %745, %v744
    %v747 = vpop.permute.xlu0 %746
    %vm748 = vcmp.eq.s32.totalorder %v747, 1
    %749 = vrot.lane.b32.xlu0 %v599, 64
    %v750 = vpop.permute.xlu0 %749
    %v752 = vsel %vm748, %v731, %v750
    %v753 = vsel %vm748, %v725, %v583
    %755 = vrot.lane.b32.xlu0 %v742, 32
    %v756 = vpop.permute.xlu0 %755
    %s758 = scalar_lea.vmem [#allocation3], 16
    %759 = vst.msk [vmem:[%s758] sm:$0xff] %vm418, %v756
    %761 = vrot.lane.b32.xlu0 %v752, 32
    %v762 = vpop.permute.xlu0 %761
    %s764 = scalar_lea.vmem [#allocation4], 40
    %765 = vst.msk [vmem:[%s764] sm:$0xff] %vm418, %v762
    %766 = vrot.lane.b32.xlu0 %v752, 64
    %v767 = vpop.permute.xlu0 %766
    %v769 = vsel %vm418, %v756, %v767
    %v771 = vsel %vm265, %v769, 0
    %773 = vmatprep.subr.mxu0 %v250
    %774 = vmatpush1.msra.mxu0 %v249
    %775 = vmatprep.subr.mxu0 %v252
    %776 = vmatpush1.msra.mxu0 %v251
    %777 = vmatprep.subr.mxu0 %v254
    %778 = vmatpush1.msra.mxu0 %v253
    %779 = vmatprep.subr.mxu0 %v256
    %780 = vmatpush1.msra.mxu0 %v255
    %781 = vmatprep.subr.mxu0 %v258
    %782 = vmatpush1.msra.mxu0 %v257
    %783 = vmatprep.subr.mxu0 %v260
    %784 = vmatpush1.msra.mxu0 %v259
    %785 = vmatprep.subr.mxu0 %v262
    %786 = vmatpush1.msra.mxu0 %v261
    %787 = vmatprep.subr.mxu0 %v264
    %788 = vmatpush1.msra.mxu0 %v263
    %789 = vmatprep.subr.mxu0 0.0
    %790 = vmatpush1.msra.mxu0 0.0
    %791 = vmatprep.subr.mxu0 0.0
    %792 = vmatpush1.msra.mxu0 0.0
    %793 = vmatprep.subr.mxu0 0.0
    %794 = vmatpush1.msra.mxu0 0.0
    %795 = vmatprep.subr.mxu0 0.0
    %796 = vmatpush1.msra.mxu0 0.0
    %797 = vmatprep.subr.mxu0 0.0
    %798 = vmatpush1.msra.mxu0 0.0
    %799 = vmatprep.subr.mxu0 0.0
    %800 = vmatpush1.msra.mxu0 0.0
    %801 = vmatprep.subr.mxu0 0.0
    %802 = vmatpush1.msra.mxu0 0.0
    %803 = vmatprep.subr.mxu0 0.0
    %804 = vmatpush1.msra.mxu0 0.0
    %805 = vmatprep.subr.mxu0 0.0
    %806 = vmatpush1.msra.mxu0 0.0
    %807 = vmatprep.subr.mxu0 0.0
    %808 = vmatpush1.msra.mxu0 0.0
    %809 = vmatprep.subr.mxu0 0.0
    %810 = vmatpush1.msra.mxu0 0.0
    %811 = vmatprep.subr.mxu0 0.0
    %812 = vmatpush1.msra.mxu0 0.0
    %813 = vmatprep.subr.mxu0 0.0
    %814 = vmatpush1.msra.mxu0 0.0
    %815 = vmatprep.subr.mxu0 0.0
    %816 = vmatpush1.msra.mxu0 0.0
    %817 = vmatprep.subr.mxu0 0.0
    %818 = vmatpush1.msra.mxu0 0.0
    %819 = vmatprep.subr.mxu0 0.0
    %820 = vmatpush1.msra.mxu0 0.0
    %821 = vmatprep.subr.mxu0 0.0
    %822 = vmatpush1.msra.mxu0 0.0
    %823 = vmatprep.subr.mxu0 0.0
    %824 = vmatpush1.msra.mxu0 0.0
    %825 = vmatprep.subr.mxu0 0.0
    %826 = vmatpush1.msra.mxu0 0.0
    %827 = vmatprep.subr.mxu0 0.0
    %828 = vmatpush1.msra.mxu0 0.0
    %829 = vmatprep.subr.mxu0 0.0
    %830 = vmatpush1.msra.mxu0 0.0
    %831 = vmatprep.subr.mxu0 0.0
    %832 = vmatpush1.msra.mxu0 0.0
    %833 = vmatprep.subr.mxu0 0.0
    %834 = vmatpush1.msra.mxu0 0.0
    %835 = vmatprep.subr.mxu0 0.0
    %836 = vmatpush1.msra.mxu0 0.0
    %837 = vmatprep.mubr.f32.mxu0 0.0
    %838 = vmatmul.mubr.f32.gmra.mrb[0].mxu0 %v771
    %v839 = vpop.f32.mrb[0].mxu0
    %v840 = vadd.f32 0.0, %v839
    %v841 = vpop.f32.mrb[0].mxu0
    %v842 = vadd.f32 0.0, %v841
    %843 = vdwg.mxu0
    %s844 = smul.u32 3, 2
    %s845 = smul.addr %s844, 8
    %s846 = scalar_lea.vmem [#allocation2], %s845
    %v847 = vld [vmem:[%s846] sm:$0xff]
    %v848 = vadd.f32 %v840, %v847
    %s849 = smul.u32 4, 2
    %s850 = smul.addr %s849, 8
    %s851 = scalar_lea.vmem [#allocation2], %s850
    %v852 = vld [vmem:[%s851 + $0x8] sm:$0xff]
    %v853 = vadd.f32 %v842, %v852
    %v854 = vxor.u32 %v848, 2147483648
    %v855 = vmul.f32 %v854, 1.442695
    %v856 = vpow.pop %v855
    %v857 = vadd.f32 %v856, 1.0
    %v858 = vrcp.pop %v857
    %v859 = vmul.f32 1.0, %v858
    %v860 = vtanh.pop %v848
    %v861 = vmul.f32 %v859, %v743
    %863 = vrot.lane.b32.xlu0 %v860, 64
    %v864 = vpop.permute.xlu0 %863
    %v866 = vmul.f32 %v859, %v864
    %868 = vrot.lane.b32.xlu0 %v866, 32
    %v869 = vpop.permute.xlu0 %868
    %v871 = vadd.f32 %v861, %v869
    %v872 = vtanh.pop %v871
    %874 = vrot.lane.b32.xlu0 %v872, 64
    %v875 = vpop.permute.xlu0 %874
    %v877 = vmul.f32 %v859, %v875
    %v878 = vxor.u32 %v853, 2147483648
    %v879 = vmul.f32 %v878, 1.442695
    %v880 = vpow.pop %v879
    %v881 = vadd.f32 %v880, 1.0
    %v882 = vrcp.pop %v881
    %v883 = vmul.f32 1.0, %v882
    %v884 = vtanh.pop %v853
    %v885 = vmul.f32 %v883, %v753
    %887 = vrot.lane.b32.xlu0 %v884, 64
    %v888 = vpop.permute.xlu0 %887
    %v890 = vmul.f32 %v883, %v888
    %892 = vrot.lane.b32.xlu0 %v890, 32
    %v893 = vpop.permute.xlu0 %892
    %v895 = vadd.f32 %v885, %v893
    %v896 = vtanh.pop %v895
    %898 = vrot.lane.b32.xlu0 %v896, 64
    %v899 = vpop.permute.xlu0 %898
    %v901 = vmul.f32 %v883, %v899
    %vm902 = vcmp.gt.s32.totalorder %v70, 3
    %vm903 = vcmp.gt.s32.totalorder %v70, 4
    %v904 = vsel %vm902, 1, 0
    %905 = vset.pattern.permute.xlu0 0
    %906 = vperm.xlu0 %905, %v904
    %v907 = vpop.permute.xlu0 %906
    %vm908 = vcmp.eq.s32.totalorder %v907, 1
    %909 = vrot.lane.b32.xlu0 %v769, 96
    %v910 = vpop.permute.xlu0 %909
    %v912 = vsel %vm908, %v877, %v910
    %v913 = vsel %vm908, %v871, %v743
    %v914 = vsel %vm903, 1, 0
    %915 = vset.pattern.permute.xlu0 0
    %916 = vperm.xlu0 %915, %v914
    %v917 = vpop.permute.xlu0 %916
    %vm918 = vcmp.eq.s32.totalorder %v917, 1
    %919 = vrot.lane.b32.xlu0 %v769, 64
    %v920 = vpop.permute.xlu0 %919
    %v922 = vsel %vm918, %v901, %v920
    %v923 = vsel %vm918, %v895, %v753
    %925 = vrot.lane.b32.xlu0 %v912, 32
    %v926 = vpop.permute.xlu0 %925
    %s928 = scalar_lea.vmem [#allocation3], 24
    %929 = vst.msk [vmem:[%s928] sm:$0xff] %vm418, %v926
    %931 = vrot.lane.b32.xlu0 %v922, 32
    %v932 = vpop.permute.xlu0 %931
    %s934 = scalar_lea.vmem [#allocation4], 32
    %935 = vst.msk [vmem:[%s934] sm:$0xff] %vm418, %v932
    %936 = vrot.lane.b32.xlu0 %v922, 64
    %v937 = vpop.permute.xlu0 %936
    %v939 = vsel %vm418, %v926, %v937
    %v941 = vsel %vm265, %v939, 0
    %943 = vmatprep.subr.mxu0 %v250
    %944 = vmatpush1.msra.mxu0 %v249
    %945 = vmatprep.subr.mxu0 %v252
    %946 = vmatpush1.msra.mxu0 %v251
    %947 = vmatprep.subr.mxu0 %v254
    %948 = vmatpush1.msra.mxu0 %v253
    %949 = vmatprep.subr.mxu0 %v256
    %950 = vmatpush1.msra.mxu0 %v255
    %951 = vmatprep.subr.mxu0 %v258
    %952 = vmatpush1.msra.mxu0 %v257
    %953 = vmatprep.subr.mxu0 %v260
    %954 = vmatpush1.msra.mxu0 %v259
    %955 = vmatprep.subr.mxu0 %v262
    %956 = vmatpush1.msra.mxu0 %v261
    %957 = vmatprep.subr.mxu0 %v264
    %958 = vmatpush1.msra.mxu0 %v263
    %959 = vmatprep.subr.mxu0 0.0
    %960 = vmatpush1.msra.mxu0 0.0
    %961 = vmatprep.subr.mxu0 0.0
    %962 = vmatpush1.msra.mxu0 0.0
    %963 = vmatprep.subr.mxu0 0.0
    %964 = vmatpush1.msra.mxu0 0.0
    %965 = vmatprep.subr.mxu0 0.0
    %966 = vmatpush1.msra.mxu0 0.0
    %967 = vmatprep.subr.mxu0 0.0
    %968 = vmatpush1.msra.mxu0 0.0
    %969 = vmatprep.subr.mxu0 0.0
    %970 = vmatpush1.msra.mxu0 0.0
    %971 = vmatprep.subr.mxu0 0.0
    %972 = vmatpush1.msra.mxu0 0.0
    %973 = vmatprep.subr.mxu0 0.0
    %974 = vmatpush1.msra.mxu0 0.0
    %975 = vmatprep.subr.mxu0 0.0
    %976 = vmatpush1.msra.mxu0 0.0
    %977 = vmatprep.subr.mxu0 0.0
    %978 = vmatpush1.msra.mxu0 0.0
    %979 = vmatprep.subr.mxu0 0.0
    %980 = vmatpush1.msra.mxu0 0.0
    %981 = vmatprep.subr.mxu0 0.0
    %982 = vmatpush1.msra.mxu0 0.0
    %983 = vmatprep.subr.mxu0 0.0
    %984 = vmatpush1.msra.mxu0 0.0
    %985 = vmatprep.subr.mxu0 0.0
    %986 = vmatpush1.msra.mxu0 0.0
    %987 = vmatprep.subr.mxu0 0.0
    %988 = vmatpush1.msra.mxu0 0.0
    %989 = vmatprep.subr.mxu0 0.0
    %990 = vmatpush1.msra.mxu0 0.0
    %991 = vmatprep.subr.mxu0 0.0
    %992 = vmatpush1.msra.mxu0 0.0
    %993 = vmatprep.subr.mxu0 0.0
    %994 = vmatpush1.msra.mxu0 0.0
    %995 = vmatprep.subr.mxu0 0.0
    %996 = vmatpush1.msra.mxu0 0.0
    %997 = vmatprep.subr.mxu0 0.0
    %998 = vmatpush1.msra.mxu0 0.0
    %999 = vmatprep.subr.mxu0 0.0
    %1000 = vmatpush1.msra.mxu0 0.0
    %1001 = vmatprep.subr.mxu0 0.0
    %1002 = vmatpush1.msra.mxu0 0.0
    %1003 = vmatprep.subr.mxu0 0.0
    %1004 = vmatpush1.msra.mxu0 0.0
    %1005 = vmatprep.subr.mxu0 0.0
    %1006 = vmatpush1.msra.mxu0 0.0
    %1007 = vmatprep.mubr.f32.mxu0 0.0
    %1008 = vmatmul.mubr.f32.gmra.mrb[0].mxu0 %v941
    %v1009 = vpop.f32.mrb[0].mxu0
    %v1010 = vadd.f32 0.0, %v1009
    %v1011 = vpop.f32.mrb[0].mxu0
    %v1012 = vadd.f32 0.0, %v1011
    %1013 = vdwg.mxu0
    %v1014 = vld [vmem:[%s851] sm:$0xff]
    %v1015 = vadd.f32 %v1010, %v1014
    %v1016 = vld [vmem:[%s846 + $0x8] sm:$0xff]
    %v1017 = vadd.f32 %v1012, %v1016
    %v1018 = vxor.u32 %v1015, 2147483648
    %v1019 = vmul.f32 %v1018, 1.442695
    %v1020 = vpow.pop %v1019
    %v1021 = vadd.f32 %v1020, 1.0
    %v1022 = vrcp.pop %v1021
    %v1023 = vmul.f32 1.0, %v1022
    %v1024 = vtanh.pop %v1015
    %v1025 = vmul.f32 %v1023, %v913
    %1027 = vrot.lane.b32.xlu0 %v1024, 64
    %v1028 = vpop.permute.xlu0 %1027
    %v1030 = vmul.f32 %v1023, %v1028
    %1032 = vrot.lane.b32.xlu0 %v1030, 32
    %v1033 = vpop.permute.xlu0 %1032
    %v1035 = vadd.f32 %v1025, %v1033
    %v1036 = vtanh.pop %v1035
    %1038 = vrot.lane.b32.xlu0 %v1036, 64
    %v1039 = vpop.permute.xlu0 %1038
    %v1041 = vmul.f32 %v1023, %v1039
    %v1042 = vxor.u32 %v1017, 2147483648
    %v1043 = vmul.f32 %v1042, 1.442695
    %v1044 = vpow.pop %v1043
    %v1045 = vadd.f32 %v1044, 1.0
    %v1046 = vrcp.pop %v1045
    %v1047 = vmul.f32 1.0, %v1046
    %v1048 = vtanh.pop %v1017
    %v1049 = vmul.f32 %v1047, %v923
    %1051 = vrot.lane.b32.xlu0 %v1048, 64
    %v1052 = vpop.permute.xlu0 %1051
    %v1054 = vmul.f32 %v1047, %v1052
    %1056 = vrot.lane.b32.xlu0 %v1054, 32
    %v1057 = vpop.permute.xlu0 %1056
    %v1059 = vadd.f32 %v1049, %v1057
    %v1060 = vtanh.pop %v1059
    %1062 = vrot.lane.b32.xlu0 %v1060, 64
    %v1063 = vpop.permute.xlu0 %1062
    %v1065 = vmul.f32 %v1047, %v1063
    %1066 = vrot.lane.b32.xlu0 %v939, 96
    %v1067 = vpop.permute.xlu0 %1066
    %v1069 = vsel %vm918, %v1041, %v1067
    %v1070 = vsel %vm918, %v1035, %v913
    %1071 = vrot.lane.b32.xlu0 %v939, 64
    %v1072 = vpop.permute.xlu0 %1071
    %v1074 = vsel %vm908, %v1065, %v1072
    %v1075 = vsel %vm908, %v1059, %v923
    %1077 = vrot.lane.b32.xlu0 %v1069, 32
    %v1078 = vpop.permute.xlu0 %1077
    %s1080 = scalar_lea.vmem [#allocation3], 32
    %1081 = vst.msk [vmem:[%s1080] sm:$0xff] %vm418, %v1078
    %1083 = vrot.lane.b32.xlu0 %v1074, 32
    %v1084 = vpop.permute.xlu0 %1083
    %s1086 = scalar_lea.vmem [#allocation4], 24
    %1087 = vst.msk [vmem:[%s1086] sm:$0xff] %vm418, %v1084
    %1088 = vrot.lane.b32.xlu0 %v1074, 64
    %v1089 = vpop.permute.xlu0 %1088
    %v1091 = vsel %vm418, %v1078, %v1089
    %v1093 = vsel %vm265, %v1091, 0
    %1095 = vmatprep.subr.mxu0 %v250
    %1096 = vmatpush1.msra.mxu0 %v249
    %1097 = vmatprep.subr.mxu0 %v252
    %1098 = vmatpush1.msra.mxu0 %v251
    %1099 = vmatprep.subr.mxu0 %v254
    %1100 = vmatpush1.msra.mxu0 %v253
    %1101 = vmatprep.subr.mxu0 %v256
    %1102 = vmatpush1.msra.mxu0 %v255
    %1103 = vmatprep.subr.mxu0 %v258
    %1104 = vmatpush1.msra.mxu0 %v257
    %1105 = vmatprep.subr.mxu0 %v260
    %1106 = vmatpush1.msra.mxu0 %v259
    %1107 = vmatprep.subr.mxu0 %v262
    %1108 = vmatpush1.msra.mxu0 %v261
    %1109 = vmatprep.subr.mxu0 %v264
    %1110 = vmatpush1.msra.mxu0 %v263
    %1111 = vmatprep.subr.mxu0 0.0
    %1112 = vmatpush1.msra.mxu0 0.0
    %1113 = vmatprep.subr.mxu0 0.0
    %1114 = vmatpush1.msra.mxu0 0.0
    %1115 = vmatprep.subr.mxu0 0.0
    %1116 = vmatpush1.msra.mxu0 0.0
    %1117 = vmatprep.subr.mxu0 0.0
    %1118 = vmatpush1.msra.mxu0 0.0
    %1119 = vmatprep.subr.mxu0 0.0
    %1120 = vmatpush1.msra.mxu0 0.0
    %1121 = vmatprep.subr.mxu0 0.0
    %1122 = vmatpush1.msra.mxu0 0.0
    %1123 = vmatprep.subr.mxu0 0.0
    %1124 = vmatpush1.msra.mxu0 0.0
    %1125 = vmatprep.subr.mxu0 0.0
    %1126 = vmatpush1.msra.mxu0 0.0
    %1127 = vmatprep.subr.mxu0 0.0
    %1128 = vmatpush1.msra.mxu0 0.0
    %1129 = vmatprep.subr.mxu0 0.0
    %1130 = vmatpush1.msra.mxu0 0.0
    %1131 = vmatprep.subr.mxu0 0.0
    %1132 = vmatpush1.msra.mxu0 0.0
    %1133 = vmatprep.subr.mxu0 0.0
    %1134 = vmatpush1.msra.mxu0 0.0
    %1135 = vmatprep.subr.mxu0 0.0
    %1136 = vmatpush1.msra.mxu0 0.0
    %1137 = vmatprep.subr.mxu0 0.0
    %1138 = vmatpush1.msra.mxu0 0.0
    %1139 = vmatprep.subr.mxu0 0.0
    %1140 = vmatpush1.msra.mxu0 0.0
    %1141 = vmatprep.subr.mxu0 0.0
    %1142 = vmatpush1.msra.mxu0 0.0
    %1143 = vmatprep.subr.mxu0 0.0
    %1144 = vmatpush1.msra.mxu0 0.0
    %1145 = vmatprep.subr.mxu0 0.0
    %1146 = vmatpush1.msra.mxu0 0.0
    %1147 = vmatprep.subr.mxu0 0.0
    %1148 = vmatpush1.msra.mxu0 0.0
    %1149 = vmatprep.subr.mxu0 0.0
    %1150 = vmatpush1.msra.mxu0 0.0
    %1151 = vmatprep.subr.mxu0 0.0
    %1152 = vmatpush1.msra.mxu0 0.0
    %1153 = vmatprep.subr.mxu0 0.0
    %1154 = vmatpush1.msra.mxu0 0.0
    %1155 = vmatprep.subr.mxu0 0.0
    %1156 = vmatpush1.msra.mxu0 0.0
    %1157 = vmatprep.subr.mxu0 0.0
    %1158 = vmatpush1.msra.mxu0 0.0
    %1159 = vmatprep.mubr.f32.mxu0 0.0
    %1160 = vmatmul.mubr.f32.gmra.mrb[0].mxu0 %v1093
    %v1161 = vpop.f32.mrb[0].mxu0
    %v1162 = vadd.f32 0.0, %v1161
    %v1163 = vpop.f32.mrb[0].mxu0
    %v1164 = vadd.f32 0.0, %v1163
    %1165 = vdwg.mxu0
    %v1166 = vld [vmem:[%s681] sm:$0xff]
    %v1167 = vadd.f32 %v1162, %v1166
    %v1168 = vld [vmem:[%s676 + $0x8] sm:$0xff]
    %v1169 = vadd.f32 %v1164, %v1168
    %v1170 = vxor.u32 %v1167, 2147483648
    %v1171 = vmul.f32 %v1170, 1.442695
    %v1172 = vpow.pop %v1171
    %v1173 = vadd.f32 %v1172, 1.0
    %v1174 = vrcp.pop %v1173
    %v1175 = vmul.f32 1.0, %v1174
    %v1176 = vtanh.pop %v1167
    %v1177 = vmul.f32 %v1175, %v1070
    %1179 = vrot.lane.b32.xlu0 %v1176, 64
    %v1180 = vpop.permute.xlu0 %1179
    %v1182 = vmul.f32 %v1175, %v1180
    %1184 = vrot.lane.b32.xlu0 %v1182, 32
    %v1185 = vpop.permute.xlu0 %1184
    %v1187 = vadd.f32 %v1177, %v1185
    %v1188 = vtanh.pop %v1187
    %1190 = vrot.lane.b32.xlu0 %v1188, 64
    %v1191 = vpop.permute.xlu0 %1190
    %v1193 = vmul.f32 %v1175, %v1191
    %v1194 = vxor.u32 %v1169, 2147483648
    %v1195 = vmul.f32 %v1194, 1.442695
    %v1196 = vpow.pop %v1195
    %v1197 = vadd.f32 %v1196, 1.0
    %v1198 = vrcp.pop %v1197
    %v1199 = vmul.f32 1.0, %v1198
    %v1200 = vtanh.pop %v1169
    %v1201 = vmul.f32 %v1199, %v1075
    %1203 = vrot.lane.b32.xlu0 %v1200, 64
    %v1204 = vpop.permute.xlu0 %1203
    %v1206 = vmul.f32 %v1199, %v1204
    %1208 = vrot.lane.b32.xlu0 %v1206, 32
    %v1209 = vpop.permute.xlu0 %1208
    %v1211 = vadd.f32 %v1201, %v1209
    %v1212 = vtanh.pop %v1211
    %1214 = vrot.lane.b32.xlu0 %v1212, 64
    %v1215 = vpop.permute.xlu0 %1214
    %v1217 = vmul.f32 %v1199, %v1215
    %1218 = vrot.lane.b32.xlu0 %v1091, 96
    %v1219 = vpop.permute.xlu0 %1218
    %v1221 = vsel %vm748, %v1193, %v1219
    %v1222 = vsel %vm748, %v1187, %v1070
    %1223 = vrot.lane.b32.xlu0 %v1091, 64
    %v1224 = vpop.permute.xlu0 %1223
    %v1226 = vsel %vm738, %v1217, %v1224
    %v1227 = vsel %vm738, %v1211, %v1075
    %1229 = vrot.lane.b32.xlu0 %v1221, 32
    %v1230 = vpop.permute.xlu0 %1229
    %s1232 = scalar_lea.vmem [#allocation3], 40
    %1233 = vst.msk [vmem:[%s1232] sm:$0xff] %vm418, %v1230
    %1235 = vrot.lane.b32.xlu0 %v1226, 32
    %v1236 = vpop.permute.xlu0 %1235
    %s1238 = scalar_lea.vmem [#allocation4], 16
    %1239 = vst.msk [vmem:[%s1238] sm:$0xff] %vm418, %v1236
    %1240 = vrot.lane.b32.xlu0 %v1226, 64
    %v1241 = vpop.permute.xlu0 %1240
    %v1243 = vsel %vm418, %v1230, %v1241
    %v1245 = vsel %vm265, %v1243, 0
    %1247 = vmatprep.subr.mxu0 %v250
    %1248 = vmatpush1.msra.mxu0 %v249
    %1249 = vmatprep.subr.mxu0 %v252
    %1250 = vmatpush1.msra.mxu0 %v251
    %1251 = vmatprep.subr.mxu0 %v254
    %1252 = vmatpush1.msra.mxu0 %v253
    %1253 = vmatprep.subr.mxu0 %v256
    %1254 = vmatpush1.msra.mxu0 %v255
    %1255 = vmatprep.subr.mxu0 %v258
    %1256 = vmatpush1.msra.mxu0 %v257
    %1257 = vmatprep.subr.mxu0 %v260
    %1258 = vmatpush1.msra.mxu0 %v259
    %1259 = vmatprep.subr.mxu0 %v262
    %1260 = vmatpush1.msra.mxu0 %v261
    %1261 = vmatprep.subr.mxu0 %v264
    %1262 = vmatpush1.msra.mxu0 %v263
    %1263 = vmatprep.subr.mxu0 0.0
    %1264 = vmatpush1.msra.mxu0 0.0
    %1265 = vmatprep.subr.mxu0 0.0
    %1266 = vmatpush1.msra.mxu0 0.0
    %1267 = vmatprep.subr.mxu0 0.0
    %1268 = vmatpush1.msra.mxu0 0.0
    %1269 = vmatprep.subr.mxu0 0.0
    %1270 = vmatpush1.msra.mxu0 0.0
    %1271 = vmatprep.subr.mxu0 0.0
    %1272 = vmatpush1.msra.mxu0 0.0
    %1273 = vmatprep.subr.mxu0 0.0
    %1274 = vmatpush1.msra.mxu0 0.0
    %1275 = vmatprep.subr.mxu0 0.0
    %1276 = vmatpush1.msra.mxu0 0.0
    %1277 = vmatprep.subr.mxu0 0.0
    %1278 = vmatpush1.msra.mxu0 0.0
    %1279 = vmatprep.subr.mxu0 0.0
    %1280 = vmatpush1.msra.mxu0 0.0
    %1281 = vmatprep.subr.mxu0 0.0
    %1282 = vmatpush1.msra.mxu0 0.0
    %1283 = vmatprep.subr.mxu0 0.0
    %1284 = vmatpush1.msra.mxu0 0.0
    %1285 = vmatprep.subr.mxu0 0.0
    %1286 = vmatpush1.msra.mxu0 0.0
    %1287 = vmatprep.subr.mxu0 0.0
    %1288 = vmatpush1.msra.mxu0 0.0
    %1289 = vmatprep.subr.mxu0 0.0
    %1290 = vmatpush1.msra.mxu0 0.0
    %1291 = vmatprep.subr.mxu0 0.0
    %1292 = vmatpush1.msra.mxu0 0.0
    %1293 = vmatprep.subr.mxu0 0.0
    %1294 = vmatpush1.msra.mxu0 0.0
    %1295 = vmatprep.subr.mxu0 0.0
    %1296 = vmatpush1.msra.mxu0 0.0
    %1297 = vmatprep.subr.mxu0 0.0
    %1298 = vmatpush1.msra.mxu0 0.0
    %1299 = vmatprep.subr.mxu0 0.0
    %1300 = vmatpush1.msra.mxu0 0.0
    %1301 = vmatprep.subr.mxu0 0.0
    %1302 = vmatpush1.msra.mxu0 0.0
    %1303 = vmatprep.subr.mxu0 0.0
    %1304 = vmatpush1.msra.mxu0 0.0
    %1305 = vmatprep.subr.mxu0 0.0
    %1306 = vmatpush1.msra.mxu0 0.0
    %1307 = vmatprep.subr.mxu0 0.0
    %1308 = vmatpush1.msra.mxu0 0.0
    %1309 = vmatprep.subr.mxu0 0.0
    %1310 = vmatpush1.msra.mxu0 0.0
    %1311 = vmatprep.mubr.f32.mxu0 0.0
    %1312 = vmatmul.mubr.f32.gmra.mrb[0].mxu0 %v1245
    %v1313 = vpop.f32.mrb[0].mxu0
    %v1314 = vadd.f32 0.0, %v1313
    %v1315 = vpop.f32.mrb[0].mxu0
    %v1316 = vadd.f32 0.0, %v1315
    %1317 = vdwg.mxu0
    %v1318 = vld [vmem:[%s511] sm:$0xff]
    %v1319 = vadd.f32 %v1314, %v1318
    %v1320 = vld [vmem:[%s506 + $0x8] sm:$0xff]
    %v1321 = vadd.f32 %v1316, %v1320
    %v1322 = vxor.u32 %v1319, 2147483648
    %v1323 = vmul.f32 %v1322, 1.442695
    %v1324 = vpow.pop %v1323
    %v1325 = vadd.f32 %v1324, 1.0
    %v1326 = vrcp.pop %v1325
    %v1327 = vmul.f32 1.0, %v1326
    %v1328 = vtanh.pop %v1319
    %v1329 = vmul.f32 %v1327, %v1222
    %1331 = vrot.lane.b32.xlu0 %v1328, 64
    %v1332 = vpop.permute.xlu0 %1331
    %v1334 = vmul.f32 %v1327, %v1332
    %1336 = vrot.lane.b32.xlu0 %v1334, 32
    %v1337 = vpop.permute.xlu0 %1336
    %v1339 = vadd.f32 %v1329, %v1337
    %v1340 = vtanh.pop %v1339
    %1342 = vrot.lane.b32.xlu0 %v1340, 64
    %v1343 = vpop.permute.xlu0 %1342
    %v1345 = vmul.f32 %v1327, %v1343
    %v1346 = vxor.u32 %v1321, 2147483648
    %v1347 = vmul.f32 %v1346, 1.442695
    %v1348 = vpow.pop %v1347
    %v1349 = vadd.f32 %v1348, 1.0
    %v1350 = vrcp.pop %v1349
    %v1351 = vmul.f32 1.0, %v1350
    %v1352 = vtanh.pop %v1321
    %v1353 = vmul.f32 %v1351, %v1227
    %1355 = vrot.lane.b32.xlu0 %v1352, 64
    %v1356 = vpop.permute.xlu0 %1355
    %v1358 = vmul.f32 %v1351, %v1356
    %1360 = vrot.lane.b32.xlu0 %v1358, 32
    %v1361 = vpop.permute.xlu0 %1360
    %v1363 = vadd.f32 %v1353, %v1361
    %v1364 = vtanh.pop %v1363
    %1366 = vrot.lane.b32.xlu0 %v1364, 64
    %v1367 = vpop.permute.xlu0 %1366
    %v1369 = vmul.f32 %v1351, %v1367
    %1370 = vrot.lane.b32.xlu0 %v1243, 96
    %v1371 = vpop.permute.xlu0 %1370
    %v1373 = vsel %vm578, %v1345, %v1371
    %v1374 = vsel %vm578, %v1339, %v1222
    %1375 = vrot.lane.b32.xlu0 %v1243, 64
    %v1376 = vpop.permute.xlu0 %1375
    %v1378 = vsel %vm568, %v1369, %v1376
    %v1379 = vsel %vm568, %v1363, %v1227
    %1381 = vrot.lane.b32.xlu0 %v1373, 32
    %v1382 = vpop.permute.xlu0 %1381
    %s1384 = scalar_lea.vmem [#allocation3], 48
    %1385 = vst.msk [vmem:[%s1384] sm:$0xff] %vm418, %v1382
    %1387 = vrot.lane.b32.xlu0 %v1378, 32
    %v1388 = vpop.permute.xlu0 %1387
    %s1390 = scalar_lea.vmem [#allocation4], 8
    %1391 = vst.msk [vmem:[%s1390] sm:$0xff] %vm418, %v1388
    %1392 = vrot.lane.b32.xlu0 %v1378, 64
    %v1393 = vpop.permute.xlu0 %1392
    %v1395 = vsel %vm418, %v1382, %v1393
    %v1397 = vsel %vm265, %v1395, 0
    %1399 = vmatprep.subr.mxu0 %v250
    %1400 = vmatpush1.msra.mxu0 %v249
    %1401 = vmatprep.subr.mxu0 %v252
    %1402 = vmatpush1.msra.mxu0 %v251
    %1403 = vmatprep.subr.mxu0 %v254
    %1404 = vmatpush1.msra.mxu0 %v253
    %1405 = vmatprep.subr.mxu0 %v256
    %1406 = vmatpush1.msra.mxu0 %v255
    %1407 = vmatprep.subr.mxu0 %v258
    %1408 = vmatpush1.msra.mxu0 %v257
    %1409 = vmatprep.subr.mxu0 %v260
    %1410 = vmatpush1.msra.mxu0 %v259
    %1411 = vmatprep.subr.mxu0 %v262
    %1412 = vmatpush1.msra.mxu0 %v261
    %1413 = vmatprep.subr.mxu0 %v264
    %1414 = vmatpush1.msra.mxu0 %v263
    %1415 = vmatprep.subr.mxu0 0.0
    %1416 = vmatpush1.msra.mxu0 0.0
    %1417 = vmatprep.subr.mxu0 0.0
    %1418 = vmatpush1.msra.mxu0 0.0
    %1419 = vmatprep.subr.mxu0 0.0
    %1420 = vmatpush1.msra.mxu0 0.0
    %1421 = vmatprep.subr.mxu0 0.0
    %1422 = vmatpush1.msra.mxu0 0.0
    %1423 = vmatprep.subr.mxu0 0.0
    %1424 = vmatpush1.msra.mxu0 0.0
    %1425 = vmatprep.subr.mxu0 0.0
    %1426 = vmatpush1.msra.mxu0 0.0
    %1427 = vmatprep.subr.mxu0 0.0
    %1428 = vmatpush1.msra.mxu0 0.0
    %1429 = vmatprep.subr.mxu0 0.0
    %1430 = vmatpush1.msra.mxu0 0.0
    %1431 = vmatprep.subr.mxu0 0.0
    %1432 = vmatpush1.msra.mxu0 0.0
    %1433 = vmatprep.subr.mxu0 0.0
    %1434 = vmatpush1.msra.mxu0 0.0
    %1435 = vmatprep.subr.mxu0 0.0
    %1436 = vmatpush1.msra.mxu0 0.0
    %1437 = vmatprep.subr.mxu0 0.0
    %1438 = vmatpush1.msra.mxu0 0.0
    %1439 = vmatprep.subr.mxu0 0.0
    %1440 = vmatpush1.msra.mxu0 0.0
    %1441 = vmatprep.subr.mxu0 0.0
    %1442 = vmatpush1.msra.mxu0 0.0
    %1443 = vmatprep.subr.mxu0 0.0
    %1444 = vmatpush1.msra.mxu0 0.0
    %1445 = vmatprep.subr.mxu0 0.0
    %1446 = vmatpush1.msra.mxu0 0.0
    %1447 = vmatprep.subr.mxu0 0.0
    %1448 = vmatpush1.msra.mxu0 0.0
    %1449 = vmatprep.subr.mxu0 0.0
    %1450 = vmatpush1.msra.mxu0 0.0
    %1451 = vmatprep.subr.mxu0 0.0
    %1452 = vmatpush1.msra.mxu0 0.0
    %1453 = vmatprep.subr.mxu0 0.0
    %1454 = vmatpush1.msra.mxu0 0.0
    %1455 = vmatprep.subr.mxu0 0.0
    %1456 = vmatpush1.msra.mxu0 0.0
    %1457 = vmatprep.subr.mxu0 0.0
    %1458 = vmatpush1.msra.mxu0 0.0
    %1459 = vmatprep.subr.mxu0 0.0
    %1460 = vmatpush1.msra.mxu0 0.0
    %1461 = vmatprep.subr.mxu0 0.0
    %1462 = vmatpush1.msra.mxu0 0.0
    %1463 = vmatprep.mubr.f32.mxu0 0.0
    %1464 = vmatmul.mubr.f32.gmra.mrb[0].mxu0 %v1397
    %v1465 = vpop.f32.mrb[0].mxu0
    %v1466 = vadd.f32 0.0, %v1465
    %v1467 = vpop.f32.mrb[0].mxu0
    %v1468 = vadd.f32 0.0, %v1467
    %1469 = vdwg.mxu0
    %v1470 = vld [vmem:[%s347] sm:$0xff]
    %v1471 = vadd.f32 %v1466, %v1470
    %v1472 = vld [vmem:[%s342 + $0x8] sm:$0xff]
    %v1473 = vadd.f32 %v1468, %v1472
    %v1474 = vxor.u32 %v1471, 2147483648
    %v1475 = vmul.f32 %v1474, 1.442695
    %v1476 = vpow.pop %v1475
    %v1477 = vadd.f32 %v1476, 1.0
    %v1478 = vrcp.pop %v1477
    %v1479 = vmul.f32 1.0, %v1478
    %v1480 = vtanh.pop %v1471
    %v1481 = vmul.f32 %v1479, %v1374
    %1483 = vrot.lane.b32.xlu0 %v1480, 64
    %v1484 = vpop.permute.xlu0 %1483
    %v1486 = vmul.f32 %v1479, %v1484
    %1488 = vrot.lane.b32.xlu0 %v1486, 32
    %v1489 = vpop.permute.xlu0 %1488
    %v1491 = vadd.f32 %v1481, %v1489
    %v1492 = vtanh.pop %v1491
    %1494 = vrot.lane.b32.xlu0 %v1492, 64
    %v1495 = vpop.permute.xlu0 %1494
    %v1497 = vmul.f32 %v1479, %v1495
    %v1498 = vxor.u32 %v1473, 2147483648
    %v1499 = vmul.f32 %v1498, 1.442695
    %v1500 = vpow.pop %v1499
    %v1501 = vadd.f32 %v1500, 1.0
    %v1502 = vrcp.pop %v1501
    %v1503 = vmul.f32 1.0, %v1502
    %v1504 = vtanh.pop %v1473
    %v1505 = vmul.f32 %v1503, %v1379
    %1507 = vrot.lane.b32.xlu0 %v1504, 64
    %v1508 = vpop.permute.xlu0 %1507
    %v1510 = vmul.f32 %v1503, %v1508
    %1512 = vrot.lane.b32.xlu0 %v1510, 32
    %v1513 = vpop.permute.xlu0 %1512
    %v1515 = vadd.f32 %v1505, %v1513
    %v1516 = vtanh.pop %v1515
    %1518 = vrot.lane.b32.xlu0 %v1516, 64
    %v1519 = vpop.permute.xlu0 %1518
    %v1521 = vmul.f32 %v1503, %v1519
    %1522 = vrot.lane.b32.xlu0 %v1395, 96
    %v1523 = vpop.permute.xlu0 %1522
    %v1525 = vsel %vm411, %v1497, %v1523
    %1526 = vrot.lane.b32.xlu0 %v1395, 64
    %v1527 = vpop.permute.xlu0 %1526
    %v1529 = vsel %vm404, %v1521, %v1527
    %1531 = vrot.lane.b32.xlu0 %v1525, 32
    %v1532 = vpop.permute.xlu0 %1531
    %s1534 = scalar_lea.vmem [#allocation3], 56
    %1535 = vst.msk [vmem:[%s1534] sm:$0xff] %vm418, %v1532
    %1537 = vrot.lane.b32.xlu0 %v1529, 32
    %v1538 = vpop.permute.xlu0 %1537
    %1540 = vst.msk [vmem:[#allocation4] sm:$0xff] %vm418, %v1538
    %v1541 = vld [vmem:[#allocation3] sm:$0xff]
    %v1542 = vld [vmem:[#allocation3 + $0x8] sm:$0xff]
    %v1543 = vld [vmem:[#allocation3 + $0x10] sm:$0xff]
    %v1544 = vld [vmem:[#allocation3 + $0x18] sm:$0xff]
    %v1545 = vld [vmem:[#allocation3 + $0x20] sm:$0xff]
    %v1546 = vld [vmem:[#allocation3 + $0x28] sm:$0xff]
    %v1547 = vld [vmem:[#allocation3 + $0x30] sm:$0xff]
    %v1548 = vld [vmem:[#allocation3 + $0x38] sm:$0xff]
    %v1549 = vld [vmem:[#allocation5] sm:$0xff]
    %v1550 = vld [vmem:[#allocation5 + $0x8] sm:$0xff]
    %v1551 = vld [vmem:[#allocation5 + $0x10] sm:$0xff]
    %v1552 = vld [vmem:[#allocation5 + $0x18] sm:$0xff]
    %v1553 = vld [vmem:[#allocation5 + $0x20] sm:$0xff]
    %v1554 = vld [vmem:[#allocation5 + $0x28] sm:$0xff]
    %v1555 = vld [vmem:[#allocation5 + $0x30] sm:$0xff]
    %v1556 = vld [vmem:[#allocation5 + $0x38] sm:$0xff]
    %v1557 = vld [vmem:[#allocation4] sm:$0xff]
    %v1558 = vld [vmem:[#allocation4 + $0x8] sm:$0xff]
    %v1559 = vld [vmem:[#allocation4 + $0x10] sm:$0xff]
    %v1560 = vld [vmem:[#allocation4 + $0x18] sm:$0xff]
    %v1561 = vld [vmem:[#allocation4 + $0x20] sm:$0xff]
    %v1562 = vld [vmem:[#allocation4 + $0x28] sm:$0xff]
    %v1563 = vld [vmem:[#allocation4 + $0x30] sm:$0xff]
    %v1564 = vld [vmem:[#allocation4 + $0x38] sm:$0xff]
    %v1565 = vld [vmem:[#allocation5 + $0x40] sm:$0xff]
    %v1566 = vld [vmem:[#allocation5 + $0x48] sm:$0xff]
    %v1567 = vld [vmem:[#allocation5 + $0x50] sm:$0xff]
    %v1568 = vld [vmem:[#allocation5 + $0x58] sm:$0xff]
    %v1569 = vld [vmem:[#allocation5 + $0x60] sm:$0xff]
    %v1570 = vld [vmem:[#allocation5 + $0x68] sm:$0xff]
    %v1571 = vld [vmem:[#allocation5 + $0x70] sm:$0xff]
    %v1572 = vld [vmem:[#allocation5 + $0x78] sm:$0xff]
    %v1574 = vsel %vm418, %v1557, 0
    %v1577 = vsel %vm418, %v1558, 0
    %v1580 = vsel %vm418, %v1559, 0
    %v1583 = vsel %vm418, %v1560, 0
    %v1586 = vsel %vm418, %v1561, 0
    %v1589 = vsel %vm418, %v1562, 0
    %v1592 = vsel %vm418, %v1563, 0
    %v1595 = vsel %vm418, %v1564, 0
    %1597 = vmatprep.subr.mxu0 %v1566
    %1598 = vmatpush1.msra.mxu0 %v1565
    %1599 = vmatprep.subr.mxu0 %v1568
    %1600 = vmatpush1.msra.mxu0 %v1567
    %1601 = vmatprep.subr.mxu0 %v1570
    %1602 = vmatpush1.msra.mxu0 %v1569
    %1603 = vmatprep.subr.mxu0 %v1572
    %1604 = vmatpush1.msra.mxu0 %v1571
    %1605 = vmatprep.subr.mxu0 0.0
    %1606 = vmatpush1.msra.mxu0 0.0
    %1607 = vmatprep.subr.mxu0 0.0
    %1608 = vmatpush1.msra.mxu0 0.0
    %1609 = vmatprep.subr.mxu0 0.0
    %1610 = vmatpush1.msra.mxu0 0.0
    %1611 = vmatprep.subr.mxu0 0.0
    %1612 = vmatpush1.msra.mxu0 0.0
    %1613 = vmatprep.subr.mxu0 0.0
    %1614 = vmatpush1.msra.mxu0 0.0
    %1615 = vmatprep.subr.mxu0 0.0
    %1616 = vmatpush1.msra.mxu0 0.0
    %1617 = vmatprep.subr.mxu0 0.0
    %1618 = vmatpush1.msra.mxu0 0.0
    %1619 = vmatprep.subr.mxu0 0.0
    %1620 = vmatpush1.msra.mxu0 0.0
    %1621 = vmatprep.subr.mxu0 0.0
    %1622 = vmatpush1.msra.mxu0 0.0
    %1623 = vmatprep.subr.mxu0 0.0
    %1624 = vmatpush1.msra.mxu0 0.0
    %1625 = vmatprep.subr.mxu0 0.0
    %1626 = vmatpush1.msra.mxu0 0.0
    %1627 = vmatprep.subr.mxu0 0.0
    %1628 = vmatpush1.msra.mxu0 0.0
    %1629 = vmatprep.subr.mxu0 0.0
    %1630 = vmatpush1.msra.mxu0 0.0
    %1631 = vmatprep.subr.mxu0 0.0
    %1632 = vmatpush1.msra.mxu0 0.0
    %1633 = vmatprep.subr.mxu0 0.0
    %1634 = vmatpush1.msra.mxu0 0.0
    %1635 = vmatprep.subr.mxu0 0.0
    %1636 = vmatpush1.msra.mxu0 0.0
    %1637 = vmatprep.subr.mxu0 0.0
    %1638 = vmatpush1.msra.mxu0 0.0
    %1639 = vmatprep.subr.mxu0 0.0
    %1640 = vmatpush1.msra.mxu0 0.0
    %1641 = vmatprep.subr.mxu0 0.0
    %1642 = vmatpush1.msra.mxu0 0.0
    %1643 = vmatprep.subr.mxu0 0.0
    %1644 = vmatpush1.msra.mxu0 0.0
    %1645 = vmatprep.subr.mxu0 0.0
    %1646 = vmatpush1.msra.mxu0 0.0
    %1647 = vmatprep.subr.mxu0 0.0
    %1648 = vmatpush1.msra.mxu0 0.0
    %1649 = vmatprep.subr.mxu0 0.0
    %1650 = vmatpush1.msra.mxu0 0.0
    %1651 = vmatprep.subr.mxu0 0.0
    %1652 = vmatpush1.msra.mxu0 0.0
    %1653 = vmatprep.subr.mxu0 0.0
    %1654 = vmatpush1.msra.mxu0 0.0
    %1655 = vmatprep.subr.mxu0 0.0
    %1656 = vmatpush1.msra.mxu0 0.0
    %1657 = vmatprep.subr.mxu0 0.0
    %1658 = vmatpush1.msra.mxu0 0.0
    %1659 = vmatprep.subr.mxu0 0.0
    %1660 = vmatpush1.msra.mxu0 0.0
    %1661 = vmatprep.mubr.f32.mxu0 0.0
    %1662 = vmatmul.mubr.f32.gmra.mrb[0].mxu0 %v1574
    %v1663 = vpop.f32.mrb[0].mxu0
    %v1664 = vadd.f32 0.0, %v1663
    %v1665 = vpop.f32.mrb[0].mxu0
    %v1666 = vadd.f32 0.0, %v1665
    %1667 = vmatprep.mubr.f32.mxu0 0.0
    %1668 = vmatmul.mubr.f32.gmra.mrb[0].mxu0 %v1577
    %v1669 = vpop.f32.mrb[0].mxu0
    %v1670 = vadd.f32 0.0, %v1669
    %v1671 = vpop.f32.mrb[0].mxu0
    %v1672 = vadd.f32 0.0, %v1671
    %1673 = vmatprep.mubr.f32.mxu0 0.0
    %1674 = vmatmul.mubr.f32.gmra.mrb[0].mxu0 %v1580
    %v1675 = vpop.f32.mrb[0].mxu0
    %v1676 = vadd.f32 0.0, %v1675
    %v1677 = vpop.f32.mrb[0].mxu0
    %v1678 = vadd.f32 0.0, %v1677
    %1679 = vmatprep.mubr.f32.mxu0 0.0
    %1680 = vmatmul.mubr.f32.gmra.mrb[0].mxu0 %v1583
    %v1681 = vpop.f32.mrb[0].mxu0
    %v1682 = vadd.f32 0.0, %v1681
    %v1683 = vpop.f32.mrb[0].mxu0
    %v1684 = vadd.f32 0.0, %v1683
    %1685 = vmatprep.mubr.f32.mxu0 0.0
    %1686 = vmatmul.mubr.f32.gmra.mrb[0].mxu0 %v1586
    %v1687 = vpop.f32.mrb[0].mxu0
    %v1688 = vadd.f32 0.0, %v1687
    %v1689 = vpop.f32.mrb[0].mxu0
    %v1690 = vadd.f32 0.0, %v1689
    %1691 = vmatprep.mubr.f32.mxu0 0.0
    %1692 = vmatmul.mubr.f32.gmra.mrb[0].mxu0 %v1589
    %v1693 = vpop.f32.mrb[0].mxu0
    %v1694 = vadd.f32 0.0, %v1693
    %v1695 = vpop.f32.mrb[0].mxu0
    %v1696 = vadd.f32 0.0, %v1695
    %1697 = vmatprep.mubr.f32.mxu0 0.0
    %1698 = vmatmul.mubr.f32.gmra.mrb[0].mxu0 %v1592
    %v1699 = vpop.f32.mrb[0].mxu0
    %v1700 = vadd.f32 0.0, %v1699
    %v1701 = vpop.f32.mrb[0].mxu0
    %v1702 = vadd.f32 0.0, %v1701
    %1703 = vmatprep.mubr.f32.mxu0 0.0
    %1704 = vmatmul.mubr.f32.gmra.mrb[0].mxu0 %v1595
    %v1705 = vpop.f32.mrb[0].mxu0
    %v1706 = vadd.f32 0.0, %v1705
    %v1707 = vpop.f32.mrb[0].mxu0
    %v1708 = vadd.f32 0.0, %v1707
    %1709 = vdwg.mxu0
    %v1711 = vsel %vm418, %v1541, 0
    %v1714 = vsel %vm418, %v1542, 0
    %v1717 = vsel %vm418, %v1543, 0
    %v1720 = vsel %vm418, %v1544, 0
    %v1723 = vsel %vm418, %v1545, 0
    %v1726 = vsel %vm418, %v1546, 0
    %v1729 = vsel %vm418, %v1547, 0
    %v1732 = vsel %vm418, %v1548, 0
    %1734 = vmatprep.subr.mxu0 %v1550
    %1735 = vmatpush1.msra.mxu0 %v1549
    %1736 = vmatprep.subr.mxu0 %v1552
    %1737 = vmatpush1.msra.mxu0 %v1551
    %1738 = vmatprep.subr.mxu0 %v1554
    %1739 = vmatpush1.msra.mxu0 %v1553
    %1740 = vmatprep.subr.mxu0 %v1556
    %1741 = vmatpush1.msra.mxu0 %v1555
    %1742 = vmatprep.subr.mxu0 0.0
    %1743 = vmatpush1.msra.mxu0 0.0
    %1744 = vmatprep.subr.mxu0 0.0
    %1745 = vmatpush1.msra.mxu0 0.0
    %1746 = vmatprep.subr.mxu0 0.0
    %1747 = vmatpush1.msra.mxu0 0.0
    %1748 = vmatprep.subr.mxu0 0.0
    %1749 = vmatpush1.msra.mxu0 0.0
    %1750 = vmatprep.subr.mxu0 0.0
    %1751 = vmatpush1.msra.mxu0 0.0
    %1752 = vmatprep.subr.mxu0 0.0
    %1753 = vmatpush1.msra.mxu0 0.0
    %1754 = vmatprep.subr.mxu0 0.0
    %1755 = vmatpush1.msra.mxu0 0.0
    %1756 = vmatprep.subr.mxu0 0.0
    %1757 = vmatpush1.msra.mxu0 0.0
    %1758 = vmatprep.subr.mxu0 0.0
    %1759 = vmatpush1.msra.mxu0 0.0
    %1760 = vmatprep.subr.mxu0 0.0
    %1761 = vmatpush1.msra.mxu0 0.0
    %1762 = vmatprep.subr.mxu0 0.0
    %1763 = vmatpush1.msra.mxu0 0.0
    %1764 = vmatprep.subr.mxu0 0.0
    %1765 = vmatpush1.msra.mxu0 0.0
    %1766 = vmatprep.subr.mxu0 0.0
    %1767 = vmatpush1.msra.mxu0 0.0
    %1768 = vmatprep.subr.mxu0 0.0
    %1769 = vmatpush1.msra.mxu0 0.0
    %1770 = vmatprep.subr.mxu0 0.0
    %1771 = vmatpush1.msra.mxu0 0.0
    %1772 = vmatprep.subr.mxu0 0.0
    %1773 = vmatpush1.msra.mxu0 0.0
    %1774 = vmatprep.subr.mxu0 0.0
    %1775 = vmatpush1.msra.mxu0 0.0
    %1776 = vmatprep.subr.mxu0 0.0
    %1777 = vmatpush1.msra.mxu0 0.0
    %1778 = vmatprep.subr.mxu0 0.0
    %1779 = vmatpush1.msra.mxu0 0.0
    %1780 = vmatprep.subr.mxu0 0.0
    %1781 = vmatpush1.msra.mxu0 0.0
    %1782 = vmatprep.subr.mxu0 0.0
    %1783 = vmatpush1.msra.mxu0 0.0
    %1784 = vmatprep.subr.mxu0 0.0
    %1785 = vmatpush1.msra.mxu0 0.0
    %1786 = vmatprep.subr.mxu0 0.0
    %1787 = vmatpush1.msra.mxu0 0.0
    %1788 = vmatprep.subr.mxu0 0.0
    %1789 = vmatpush1.msra.mxu0 0.0
    %1790 = vmatprep.subr.mxu0 0.0
    %1791 = vmatpush1.msra.mxu0 0.0
    %1792 = vmatprep.subr.mxu0 0.0
    %1793 = vmatpush1.msra.mxu0 0.0
    %1794 = vmatprep.subr.mxu0 0.0
    %1795 = vmatpush1.msra.mxu0 0.0
    %1796 = vmatprep.subr.mxu0 0.0
    %1797 = vmatpush1.msra.mxu0 0.0
    %1798 = vmatprep.mubr.f32.mxu0 0.0
    %1799 = vmatmul.mubr.f32.gmra.mrb[0].mxu0 %v1711
    %v1800 = vpop.f32.mrb[0].mxu0
    %v1801 = vadd.f32 %v1664, %v1800
    %v1802 = vpop.f32.mrb[0].mxu0
    %v1803 = vadd.f32 %v1666, %v1802
    %1804 = vmatprep.mubr.f32.mxu0 0.0
    %1805 = vmatmul.mubr.f32.gmra.mrb[0].mxu0 %v1714
    %v1806 = vpop.f32.mrb[0].mxu0
    %v1807 = vadd.f32 %v1670, %v1806
    %v1808 = vpop.f32.mrb[0].mxu0
    %v1809 = vadd.f32 %v1672, %v1808
    %1810 = vmatprep.mubr.f32.mxu0 0.0
    %1811 = vmatmul.mubr.f32.gmra.mrb[0].mxu0 %v1717
    %v1812 = vpop.f32.mrb[0].mxu0
    %v1813 = vadd.f32 %v1676, %v1812
    %v1814 = vpop.f32.mrb[0].mxu0
    %v1815 = vadd.f32 %v1678, %v1814
    %1816 = vmatprep.mubr.f32.mxu0 0.0
    %1817 = vmatmul.mubr.f32.gmra.mrb[0].mxu0 %v1720
    %v1818 = vpop.f32.mrb[0].mxu0
    %v1819 = vadd.f32 %v1682, %v1818
    %v1820 = vpop.f32.mrb[0].mxu0
    %v1821 = vadd.f32 %v1684, %v1820
    %1822 = vmatprep.mubr.f32.mxu0 0.0
    %1823 = vmatmul.mubr.f32.gmra.mrb[0].mxu0 %v1723
    %v1824 = vpop.f32.mrb[0].mxu0
    %v1825 = vadd.f32 %v1688, %v1824
    %v1826 = vpop.f32.mrb[0].mxu0
    %v1827 = vadd.f32 %v1690, %v1826
    %1828 = vmatprep.mubr.f32.mxu0 0.0
    %1829 = vmatmul.mubr.f32.gmra.mrb[0].mxu0 %v1726
    %v1830 = vpop.f32.mrb[0].mxu0
    %v1831 = vadd.f32 %v1694, %v1830
    %v1832 = vpop.f32.mrb[0].mxu0
    %v1833 = vadd.f32 %v1696, %v1832
    %1834 = vmatprep.mubr.f32.mxu0 0.0
    %1835 = vmatmul.mubr.f32.gmra.mrb[0].mxu0 %v1729
    %v1836 = vpop.f32.mrb[0].mxu0
    %v1837 = vadd.f32 %v1700, %v1836
    %v1838 = vpop.f32.mrb[0].mxu0
    %v1839 = vadd.f32 %v1702, %v1838
    %1840 = vmatprep.mubr.f32.mxu0 0.0
    %1841 = vmatmul.mubr.f32.gmra.mrb[0].mxu0 %v1732
    %v1842 = vpop.f32.mrb[0].mxu0
    %v1843 = vadd.f32 %v1706, %v1842
    %v1844 = vpop.f32.mrb[0].mxu0
    %v1845 = vadd.f32 %v1708, %v1844
    %1846 = vdwg.mxu0
    %v1847 = vld [vmem:[%s6] sm:$0x3]
    %v1849 = vlaneseq
    %v1850 = vshrl.u32 %v1849, 7
    %v1851 = vsub.s32 0, %v1850
    %v1852 = vrot.slane %v1847, %v1851
    %v1853 = vlaneseq
    %v1854 = vshrl.u32 %v1853, 7
    %v1855 = vsub.s32 1, %v1854
    %v1856 = vrot.slane %v1847, %v1855
    %v1859 = vadd.f32 %v1801, %v1852
    %v1860 = vadd.f32 %v1803, %v1856
    %v1861 = vadd.f32 %v1807, %v1852
    %v1862 = vadd.f32 %v1809, %v1856
    %v1863 = vadd.f32 %v1813, %v1852
    %v1864 = vadd.f32 %v1815, %v1856
    %v1865 = vadd.f32 %v1819, %v1852
    %v1866 = vadd.f32 %v1821, %v1856
    %v1867 = vadd.f32 %v1825, %v1852
    %v1868 = vadd.f32 %v1827, %v1856
    %v1869 = vadd.f32 %v1831, %v1852
    %v1870 = vadd.f32 %v1833, %v1856
    %v1871 = vadd.f32 %v1837, %v1852
    %v1872 = vadd.f32 %v1839, %v1856
    %v1873 = vadd.f32 %v1843, %v1852
    %v1874 = vadd.f32 %v1845, %v1856
    %1875 = vst [vmem:[#allocation2] sm:$0xff] %v1859
    %1876 = vst [vmem:[#allocation2 + $0x8] sm:$0xff] %v1860
    %1877 = vst [vmem:[#allocation2 + $0x10] sm:$0xff] %v1861
    %1878 = vst [vmem:[#allocation2 + $0x18] sm:$0xff] %v1862
    %1879 = vst [vmem:[#allocation2 + $0x20] sm:$0xff] %v1863
    %1880 = vst [vmem:[#allocation2 + $0x28] sm:$0xff] %v1864
    %1881 = vst [vmem:[#allocation2 + $0x30] sm:$0xff] %v1865
    %1882 = vst [vmem:[#allocation2 + $0x38] sm:$0xff] %v1866
    %1883 = vst [vmem:[#allocation2 + $0x40] sm:$0xff] %v1867
    %1884 = vst [vmem:[#allocation2 + $0x48] sm:$0xff] %v1868
    %1885 = vst [vmem:[#allocation2 + $0x50] sm:$0xff] %v1869
    %1886 = vst [vmem:[#allocation2 + $0x58] sm:$0xff] %v1870
    %1887 = vst [vmem:[#allocation2 + $0x60] sm:$0xff] %v1871
    %1888 = vst [vmem:[#allocation2 + $0x68] sm:$0xff] %v1872
    %1889 = vst [vmem:[#allocation2 + $0x70] sm:$0xff] %v1873
    %1890 = vst [vmem:[#allocation2 + $0x78] sm:$0xff] %v1874
    %v1891 = vld [vmem:[#allocation8] sm:$0xff]
    %v1892 = vld [vmem:[#allocation8 + $0x8] sm:$0xff]
    %v1893 = vld [vmem:[#allocation8 + $0x10] sm:$0xff]
    %v1894 = vld [vmem:[#allocation8 + $0x18] sm:$0xff]
    %v1895 = vld [vmem:[#allocation8 + $0x20] sm:$0xff]
    %v1896 = vld [vmem:[#allocation8 + $0x28] sm:$0xff]
    %v1897 = vld [vmem:[#allocation8 + $0x30] sm:$0xff]
    %v1898 = vld [vmem:[#allocation8 + $0x38] sm:$0xff]
    %v1899 = vld [vmem:[#allocation8 + $0x40] sm:$0xff]
    %v1900 = vld [vmem:[#allocation8 + $0x48] sm:$0xff]
    %v1901 = vld [vmem:[#allocation8 + $0x50] sm:$0xff]
    %v1902 = vld [vmem:[#allocation8 + $0x58] sm:$0xff]
    %v1903 = vld [vmem:[#allocation8 + $0x60] sm:$0xff]
    %v1904 = vld [vmem:[#allocation8 + $0x68] sm:$0xff]
    %v1905 = vld [vmem:[#allocation8 + $0x70] sm:$0xff]
    %v1906 = vld [vmem:[#allocation8 + $0x78] sm:$0xff]
    %1907 = vmatprep.subr.mxu0 %v1892
    %1908 = vmatpush1.msra.mxu0 %v1891
    %1909 = vmatprep.subr.mxu0 %v1894
    %1910 = vmatpush1.msra.mxu0 %v1893
    %1911 = vmatprep.subr.mxu0 %v1896
    %1912 = vmatpush1.msra.mxu0 %v1895
    %1913 = vmatprep.subr.mxu0 %v1898
    %1914 = vmatpush1.msra.mxu0 %v1897
    %1915 = vmatprep.subr.mxu0 %v1900
    %1916 = vmatpush1.msra.mxu0 %v1899
    %1917 = vmatprep.subr.mxu0 %v1902
    %1918 = vmatpush1.msra.mxu0 %v1901
    %1919 = vmatprep.subr.mxu0 %v1904
    %1920 = vmatpush1.msra.mxu0 %v1903
    %1921 = vmatprep.subr.mxu0 %v1906
    %1922 = vmatpush1.msra.mxu0 %v1905
    %1923 = vmatprep.subr.mxu0 0.0
    %1924 = vmatpush1.msra.mxu0 0.0
    %1925 = vmatprep.subr.mxu0 0.0
    %1926 = vmatpush1.msra.mxu0 0.0
    %1927 = vmatprep.subr.mxu0 0.0
    %1928 = vmatpush1.msra.mxu0 0.0
    %1929 = vmatprep.subr.mxu0 0.0
    %1930 = vmatpush1.msra.mxu0 0.0
    %1931 = vmatprep.subr.mxu0 0.0
    %1932 = vmatpush1.msra.mxu0 0.0
    %1933 = vmatprep.subr.mxu0 0.0
    %1934 = vmatpush1.msra.mxu0 0.0
    %1935 = vmatprep.subr.mxu0 0.0
    %1936 = vmatpush1.msra.mxu0 0.0
    %1937 = vmatprep.subr.mxu0 0.0
    %1938 = vmatpush1.msra.mxu0 0.0
    %1939 = vmatprep.subr.mxu0 0.0
    %1940 = vmatpush1.msra.mxu0 0.0
    %1941 = vmatprep.subr.mxu0 0.0
    %1942 = vmatpush1.msra.mxu0 0.0
    %1943 = vmatprep.subr.mxu0 0.0
    %1944 = vmatpush1.msra.mxu0 0.0
    %1945 = vmatprep.subr.mxu0 0.0
    %1946 = vmatpush1.msra.mxu0 0.0
    %1947 = vmatprep.subr.mxu0 0.0
    %1948 = vmatpush1.msra.mxu0 0.0
    %1949 = vmatprep.subr.mxu0 0.0
    %1950 = vmatpush1.msra.mxu0 0.0
    %1951 = vmatprep.subr.mxu0 0.0
    %1952 = vmatpush1.msra.mxu0 0.0
    %1953 = vmatprep.subr.mxu0 0.0
    %1954 = vmatpush1.msra.mxu0 0.0
    %1955 = vmatprep.subr.mxu0 0.0
    %1956 = vmatpush1.msra.mxu0 0.0
    %1957 = vmatprep.subr.mxu0 0.0
    %1958 = vmatpush1.msra.mxu0 0.0
    %1959 = vmatprep.subr.mxu0 0.0
    %1960 = vmatpush1.msra.mxu0 0.0
    %1961 = vmatprep.subr.mxu0 0.0
    %1962 = vmatpush1.msra.mxu0 0.0
    %1963 = vmatprep.subr.mxu0 0.0
    %1964 = vmatpush1.msra.mxu0 0.0
    %1965 = vmatprep.subr.mxu0 0.0
    %1966 = vmatpush1.msra.mxu0 0.0
    %1967 = vmatprep.subr.mxu0 0.0
    %1968 = vmatpush1.msra.mxu0 0.0
    %1969 = vmatprep.subr.mxu0 0.0
    %1970 = vmatpush1.msra.mxu0 0.0
    %1971 = vmatprep.mubr.f32.mxu0 0.0
    %1972 = vmatmul.mubr.f32.gmra.mrb[0].mxu0 %v267
    %v1973 = vpop.f32.mrb[0].mxu0
    %v1974 = vadd.f32 0.0, %v1973
    %v1975 = vpop.f32.mrb[0].mxu0
    %v1976 = vadd.f32 0.0, %v1975
    %1977 = vdwg.mxu0
    %v1978 = vld [vmem:[%s342] sm:$0xff]
    %v1979 = vadd.f32 %v1974, %v1978
    %v1980 = vld [vmem:[%s347 + $0x8] sm:$0xff]
    %v1981 = vadd.f32 %v1976, %v1980
    %v1982 = vxor.u32 %v1979, 2147483648
    %v1983 = vmul.f32 %v1982, 1.442695
    %v1984 = vpow.pop %v1983
    %v1985 = vadd.f32 %v1984, 1.0
    %v1986 = vrcp.pop %v1985
    %v1987 = vmul.f32 1.0, %v1986
    %v1988 = vtanh.pop %v1979
    %v1989 = vmul.f32 %v1987, 0.0
    %1991 = vrot.lane.b32.xlu0 %v1988, 64
    %v1992 = vpop.permute.xlu0 %1991
    %v1994 = vmul.f32 %v1987, %v1992
    %1996 = vrot.lane.b32.xlu0 %v1994, 32
    %v1997 = vpop.permute.xlu0 %1996
    %v1999 = vadd.f32 %v1989, %v1997
    %v2000 = vtanh.pop %v1999
    %2002 = vrot.lane.b32.xlu0 %v2000, 64
    %v2003 = vpop.permute.xlu0 %2002
    %v2005 = vmul.f32 %v1987, %v2003
    %v2006 = vxor.u32 %v1981, 2147483648
    %v2007 = vmul.f32 %v2006, 1.442695
    %v2008 = vpow.pop %v2007
    %v2009 = vadd.f32 %v2008, 1.0
    %v2010 = vrcp.pop %v2009
    %v2011 = vmul.f32 1.0, %v2010
    %v2012 = vtanh.pop %v1981
    %v2013 = vmul.f32 %v2011, 0.0
    %2015 = vrot.lane.b32.xlu0 %v2012, 64
    %v2016 = vpop.permute.xlu0 %2015
    %v2018 = vmul.f32 %v2011, %v2016
    %2020 = vrot.lane.b32.xlu0 %v2018, 32
    %v2021 = vpop.permute.xlu0 %2020
    %v2023 = vadd.f32 %v2013, %v2021
    %v2024 = vtanh.pop %v2023
    %2026 = vrot.lane.b32.xlu0 %v2024, 64
    %v2027 = vpop.permute.xlu0 %2026
    %v2029 = vmul.f32 %v2011, %v2027
    %v2030 = vsel %vm404, %v2005, 0.0
    %v2031 = vsel %vm404, %v1999, 0.0
    %v2032 = vsel %vm411, %v2029, 0.0
    %v2033 = vsel %vm411, %v2023, 0.0
    %2035 = vrot.lane.b32.xlu0 %v2030, 32
    %v2036 = vpop.permute.xlu0 %2035
    %2039 = vrot.lane.b32.xlu0 %v2032, 64
    %v2040 = vpop.permute.xlu0 %2039
    %v2042 = vsel %vm418, %v2036, %v2040
    %v2044 = vsel %vm265, %v2042, 0
    %2046 = vmatprep.subr.mxu0 %v1892
    %2047 = vmatpush1.msra.mxu0 %v1891
    %2048 = vmatprep.subr.mxu0 %v1894
    %2049 = vmatpush1.msra.mxu0 %v1893
    %2050 = vmatprep.subr.mxu0 %v1896
    %2051 = vmatpush1.msra.mxu0 %v1895
    %2052 = vmatprep.subr.mxu0 %v1898
    %2053 = vmatpush1.msra.mxu0 %v1897
    %2054 = vmatprep.subr.mxu0 %v1900
    %2055 = vmatpush1.msra.mxu0 %v1899
    %2056 = vmatprep.subr.mxu0 %v1902
    %2057 = vmatpush1.msra.mxu0 %v1901
    %2058 = vmatprep.subr.mxu0 %v1904
    %2059 = vmatpush1.msra.mxu0 %v1903
    %2060 = vmatprep.subr.mxu0 %v1906
    %2061 = vmatpush1.msra.mxu0 %v1905
    %2062 = vmatprep.subr.mxu0 0.0
    %2063 = vmatpush1.msra.mxu0 0.0
    %2064 = vmatprep.subr.mxu0 0.0
    %2065 = vmatpush1.msra.mxu0 0.0
    %2066 = vmatprep.subr.mxu0 0.0
    %2067 = vmatpush1.msra.mxu0 0.0
    %2068 = vmatprep.subr.mxu0 0.0
    %2069 = vmatpush1.msra.mxu0 0.0
    %2070 = vmatprep.subr.mxu0 0.0
    %2071 = vmatpush1.msra.mxu0 0.0
    %2072 = vmatprep.subr.mxu0 0.0
    %2073 = vmatpush1.msra.mxu0 0.0
    %2074 = vmatprep.subr.mxu0 0.0
    %2075 = vmatpush1.msra.mxu0 0.0
    %2076 = vmatprep.subr.mxu0 0.0
    %2077 = vmatpush1.msra.mxu0 0.0
    %2078 = vmatprep.subr.mxu0 0.0
    %2079 = vmatpush1.msra.mxu0 0.0
    %2080 = vmatprep.subr.mxu0 0.0
    %2081 = vmatpush1.msra.mxu0 0.0
    %2082 = vmatprep.subr.mxu0 0.0
    %2083 = vmatpush1.msra.mxu0 0.0
    %2084 = vmatprep.subr.mxu0 0.0
    %2085 = vmatpush1.msra.mxu0 0.0
    %2086 = vmatprep.subr.mxu0 0.0
    %2087 = vmatpush1.msra.mxu0 0.0
    %2088 = vmatprep.subr.mxu0 0.0
    %2089 = vmatpush1.msra.mxu0 0.0
    %2090 = vmatprep.subr.mxu0 0.0
    %2091 = vmatpush1.msra.mxu0 0.0
    %2092 = vmatprep.subr.mxu0 0.0
    %2093 = vmatpush1.msra.mxu0 0.0
    %2094 = vmatprep.subr.mxu0 0.0
    %2095 = vmatpush1.msra.mxu0 0.0
    %2096 = vmatprep.subr.mxu0 0.0
    %2097 = vmatpush1.msra.mxu0 0.0
    %2098 = vmatprep.subr.mxu0 0.0
    %2099 = vmatpush1.msra.mxu0 0.0
    %2100 = vmatprep.subr.mxu0 0.0
    %2101 = vmatpush1.msra.mxu0 0.0
    %2102 = vmatprep.subr.mxu0 0.0
    %2103 = vmatpush1.msra.mxu0 0.0
    %2104 = vmatprep.subr.mxu0 0.0
    %2105 = vmatpush1.msra.mxu0 0.0
    %2106 = vmatprep.subr.mxu0 0.0
    %2107 = vmatpush1.msra.mxu0 0.0
    %2108 = vmatprep.subr.mxu0 0.0
    %2109 = vmatpush1.msra.mxu0 0.0
    %2110 = vmatprep.mubr.f32.mxu0 0.0
    %2111 = vmatmul.mubr.f32.gmra.mrb[0].mxu0 %v2044
    %v2112 = vpop.f32.mrb[0].mxu0
    %v2113 = vadd.f32 0.0, %v2112
    %v2114 = vpop.f32.mrb[0].mxu0
    %v2115 = vadd.f32 0.0, %v2114
    %2116 = vdwg.mxu0
    %v2117 = vld [vmem:[%s506] sm:$0xff]
    %v2118 = vadd.f32 %v2113, %v2117
    %v2119 = vld [vmem:[%s511 + $0x8] sm:$0xff]
    %v2120 = vadd.f32 %v2115, %v2119
    %v2121 = vxor.u32 %v2118, 2147483648
    %v2122 = vmul.f32 %v2121, 1.442695
    %v2123 = vpow.pop %v2122
    %v2124 = vadd.f32 %v2123, 1.0
    %v2125 = vrcp.pop %v2124
    %v2126 = vmul.f32 1.0, %v2125
    %v2127 = vtanh.pop %v2118
    %v2128 = vmul.f32 %v2126, %v2031
    %2130 = vrot.lane.b32.xlu0 %v2127, 64
    %v2131 = vpop.permute.xlu0 %2130
    %v2133 = vmul.f32 %v2126, %v2131
    %2135 = vrot.lane.b32.xlu0 %v2133, 32
    %v2136 = vpop.permute.xlu0 %2135
    %v2138 = vadd.f32 %v2128, %v2136
    %v2139 = vtanh.pop %v2138
    %2141 = vrot.lane.b32.xlu0 %v2139, 64
    %v2142 = vpop.permute.xlu0 %2141
    %v2144 = vmul.f32 %v2126, %v2142
    %v2145 = vxor.u32 %v2120, 2147483648
    %v2146 = vmul.f32 %v2145, 1.442695
    %v2147 = vpow.pop %v2146
    %v2148 = vadd.f32 %v2147, 1.0
    %v2149 = vrcp.pop %v2148
    %v2150 = vmul.f32 1.0, %v2149
    %v2151 = vtanh.pop %v2120
    %v2152 = vmul.f32 %v2150, %v2033
    %2154 = vrot.lane.b32.xlu0 %v2151, 64
    %v2155 = vpop.permute.xlu0 %2154
    %v2157 = vmul.f32 %v2150, %v2155
    %2159 = vrot.lane.b32.xlu0 %v2157, 32
    %v2160 = vpop.permute.xlu0 %2159
    %v2162 = vadd.f32 %v2152, %v2160
    %v2163 = vtanh.pop %v2162
    %2165 = vrot.lane.b32.xlu0 %v2163, 64
    %v2166 = vpop.permute.xlu0 %2165
    %v2168 = vmul.f32 %v2150, %v2166
    %2169 = vrot.lane.b32.xlu0 %v2042, 96
    %v2170 = vpop.permute.xlu0 %2169
    %v2172 = vsel %vm568, %v2144, %v2170
    %v2173 = vsel %vm568, %v2138, %v2031
    %2174 = vrot.lane.b32.xlu0 %v2042, 64
    %v2175 = vpop.permute.xlu0 %2174
    %v2177 = vsel %vm578, %v2168, %v2175
    %v2178 = vsel %vm578, %v2162, %v2033
    %2180 = vrot.lane.b32.xlu0 %v2172, 32
    %v2181 = vpop.permute.xlu0 %2180
    %2184 = vrot.lane.b32.xlu0 %v2177, 64
    %v2185 = vpop.permute.xlu0 %2184
    %v2187 = vsel %vm418, %v2181, %v2185
    %v2189 = vsel %vm265, %v2187, 0
    %2191 = vmatprep.subr.mxu0 %v1892
    %2192 = vmatpush1.msra.mxu0 %v1891
    %2193 = vmatprep.subr.mxu0 %v1894
    %2194 = vmatpush1.msra.mxu0 %v1893
    %2195 = vmatprep.subr.mxu0 %v1896
    %2196 = vmatpush1.msra.mxu0 %v1895
    %2197 = vmatprep.subr.mxu0 %v1898
    %2198 = vmatpush1.msra.mxu0 %v1897
    %2199 = vmatprep.subr.mxu0 %v1900
    %2200 = vmatpush1.msra.mxu0 %v1899
    %2201 = vmatprep.subr.mxu0 %v1902
    %2202 = vmatpush1.msra.mxu0 %v1901
    %2203 = vmatprep.subr.mxu0 %v1904
    %2204 = vmatpush1.msra.mxu0 %v1903
    %2205 = vmatprep.subr.mxu0 %v1906
    %2206 = vmatpush1.msra.mxu0 %v1905
    %2207 = vmatprep.subr.mxu0 0.0
    %2208 = vmatpush1.msra.mxu0 0.0
    %2209 = vmatprep.subr.mxu0 0.0
    %2210 = vmatpush1.msra.mxu0 0.0
    %2211 = vmatprep.subr.mxu0 0.0
    %2212 = vmatpush1.msra.mxu0 0.0
    %2213 = vmatprep.subr.mxu0 0.0
    %2214 = vmatpush1.msra.mxu0 0.0
    %2215 = vmatprep.subr.mxu0 0.0
    %2216 = vmatpush1.msra.mxu0 0.0
    %2217 = vmatprep.subr.mxu0 0.0
    %2218 = vmatpush1.msra.mxu0 0.0
    %2219 = vmatprep.subr.mxu0 0.0
    %2220 = vmatpush1.msra.mxu0 0.0
    %2221 = vmatprep.subr.mxu0 0.0
    %2222 = vmatpush1.msra.mxu0 0.0
    %2223 = vmatprep.subr.mxu0 0.0
    %2224 = vmatpush1.msra.mxu0 0.0
    %2225 = vmatprep.subr.mxu0 0.0
    %2226 = vmatpush1.msra.mxu0 0.0
    %2227 = vmatprep.subr.mxu0 0.0
    %2228 = vmatpush1.msra.mxu0 0.0
    %2229 = vmatprep.subr.mxu0 0.0
    %2230 = vmatpush1.msra.mxu0 0.0
    %2231 = vmatprep.subr.mxu0 0.0
    %2232 = vmatpush1.msra.mxu0 0.0
    %2233 = vmatprep.subr.mxu0 0.0
    %2234 = vmatpush1.msra.mxu0 0.0
    %2235 = vmatprep.subr.mxu0 0.0
    %2236 = vmatpush1.msra.mxu0 0.0
    %2237 = vmatprep.subr.mxu0 0.0
    %2238 = vmatpush1.msra.mxu0 0.0
    %2239 = vmatprep.subr.mxu0 0.0
    %2240 = vmatpush1.msra.mxu0 0.0
    %2241 = vmatprep.subr.mxu0 0.0
    %2242 = vmatpush1.msra.mxu0 0.0
    %2243 = vmatprep.subr.mxu0 0.0
    %2244 = vmatpush1.msra.mxu0 0.0
    %2245 = vmatprep.subr.mxu0 0.0
    %2246 = vmatpush1.msra.mxu0 0.0
    %2247 = vmatprep.subr.mxu0 0.0
    %2248 = vmatpush1.msra.mxu0 0.0
    %2249 = vmatprep.subr.mxu0 0.0
    %2250 = vmatpush1.msra.mxu0 0.0
    %2251 = vmatprep.subr.mxu0 0.0
    %2252 = vmatpush1.msra.mxu0 0.0
    %2253 = vmatprep.subr.mxu0 0.0
    %2254 = vmatpush1.msra.mxu0 0.0
    %2255 = vmatprep.mubr.f32.mxu0 0.0
    %2256 = vmatmul.mubr.f32.gmra.mrb[0].mxu0 %v2189
    %v2257 = vpop.f32.mrb[0].mxu0
    %v2258 = vadd.f32 0.0, %v2257
    %v2259 = vpop.f32.mrb[0].mxu0
    %v2260 = vadd.f32 0.0, %v2259
    %2261 = vdwg.mxu0
    %v2262 = vld [vmem:[%s676] sm:$0xff]
    %v2263 = vadd.f32 %v2258, %v2262
    %v2264 = vld [vmem:[%s681 + $0x8] sm:$0xff]
    %v2265 = vadd.f32 %v2260, %v2264
    %v2266 = vxor.u32 %v2263, 2147483648
    %v2267 = vmul.f32 %v2266, 1.442695
    %v2268 = vpow.pop %v2267
    %v2269 = vadd.f32 %v2268, 1.0
    %v2270 = vrcp.pop %v2269
    %v2271 = vmul.f32 1.0, %v2270
    %v2272 = vtanh.pop %v2263
    %v2273 = vmul.f32 %v2271, %v2173
    %2275 = vrot.lane.b32.xlu0 %v2272, 64
    %v2276 = vpop.permute.xlu0 %2275
    %v2278 = vmul.f32 %v2271, %v2276
    %2280 = vrot.lane.b32.xlu0 %v2278, 32
    %v2281 = vpop.permute.xlu0 %2280
    %v2283 = vadd.f32 %v2273, %v2281
    %v2284 = vtanh.pop %v2283
    %2286 = vrot.lane.b32.xlu0 %v2284, 64
    %v2287 = vpop.permute.xlu0 %2286
    %v2289 = vmul.f32 %v2271, %v2287
    %v2290 = vxor.u32 %v2265, 2147483648
    %v2291 = vmul.f32 %v2290, 1.442695
    %v2292 = vpow.pop %v2291
    %v2293 = vadd.f32 %v2292, 1.0
    %v2294 = vrcp.pop %v2293
    %v2295 = vmul.f32 1.0, %v2294
    %v2296 = vtanh.pop %v2265
    %v2297 = vmul.f32 %v2295, %v2178
    %2299 = vrot.lane.b32.xlu0 %v2296, 64
    %v2300 = vpop.permute.xlu0 %2299
    %v2302 = vmul.f32 %v2295, %v2300
    %2304 = vrot.lane.b32.xlu0 %v2302, 32
    %v2305 = vpop.permute.xlu0 %2304
    %v2307 = vadd.f32 %v2297, %v2305
    %v2308 = vtanh.pop %v2307
    %2310 = vrot.lane.b32.xlu0 %v2308, 64
    %v2311 = vpop.permute.xlu0 %2310
    %v2313 = vmul.f32 %v2295, %v2311
    %2314 = vrot.lane.b32.xlu0 %v2187, 96
    %v2315 = vpop.permute.xlu0 %2314
    %v2317 = vsel %vm738, %v2289, %v2315
    %v2318 = vsel %vm738, %v2283, %v2173
    %2319 = vrot.lane.b32.xlu0 %v2187, 64
    %v2320 = vpop.permute.xlu0 %2319
    %v2322 = vsel %vm748, %v2313, %v2320
    %v2323 = vsel %vm748, %v2307, %v2178
    %2325 = vrot.lane.b32.xlu0 %v2317, 32
    %v2326 = vpop.permute.xlu0 %2325
    %2329 = vrot.lane.b32.xlu0 %v2322, 64
    %v2330 = vpop.permute.xlu0 %2329
    %v2332 = vsel %vm418, %v2326, %v2330
    %v2334 = vsel %vm265, %v2332, 0
    %2336 = vmatprep.subr.mxu0 %v1892
    %2337 = vmatpush1.msra.mxu0 %v1891
    %2338 = vmatprep.subr.mxu0 %v1894
    %2339 = vmatpush1.msra.mxu0 %v1893
    %2340 = vmatprep.subr.mxu0 %v1896
    %2341 = vmatpush1.msra.mxu0 %v1895
    %2342 = vmatprep.subr.mxu0 %v1898
    %2343 = vmatpush1.msra.mxu0 %v1897
    %2344 = vmatprep.subr.mxu0 %v1900
    %2345 = vmatpush1.msra.mxu0 %v1899
    %2346 = vmatprep.subr.mxu0 %v1902
    %2347 = vmatpush1.msra.mxu0 %v1901
    %2348 = vmatprep.subr.mxu0 %v1904
    %2349 = vmatpush1.msra.mxu0 %v1903
    %2350 = vmatprep.subr.mxu0 %v1906
    %2351 = vmatpush1.msra.mxu0 %v1905
    %2352 = vmatprep.subr.mxu0 0.0
    %2353 = vmatpush1.msra.mxu0 0.0
    %2354 = vmatprep.subr.mxu0 0.0
    %2355 = vmatpush1.msra.mxu0 0.0
    %2356 = vmatprep.subr.mxu0 0.0
    %2357 = vmatpush1.msra.mxu0 0.0
    %2358 = vmatprep.subr.mxu0 0.0
    %2359 = vmatpush1.msra.mxu0 0.0
    %2360 = vmatprep.subr.mxu0 0.0
    %2361 = vmatpush1.msra.mxu0 0.0
    %2362 = vmatprep.subr.mxu0 0.0
    %2363 = vmatpush1.msra.mxu0 0.0
    %2364 = vmatprep.subr.mxu0 0.0
    %2365 = vmatpush1.msra.mxu0 0.0
    %2366 = vmatprep.subr.mxu0 0.0
    %2367 = vmatpush1.msra.mxu0 0.0
    %2368 = vmatprep.subr.mxu0 0.0
    %2369 = vmatpush1.msra.mxu0 0.0
    %2370 = vmatprep.subr.mxu0 0.0
    %2371 = vmatpush1.msra.mxu0 0.0
    %2372 = vmatprep.subr.mxu0 0.0
    %2373 = vmatpush1.msra.mxu0 0.0
    %2374 = vmatprep.subr.mxu0 0.0
    %2375 = vmatpush1.msra.mxu0 0.0
    %2376 = vmatprep.subr.mxu0 0.0
    %2377 = vmatpush1.msra.mxu0 0.0
    %2378 = vmatprep.subr.mxu0 0.0
    %2379 = vmatpush1.msra.mxu0 0.0
    %2380 = vmatprep.subr.mxu0 0.0
    %2381 = vmatpush1.msra.mxu0 0.0
    %2382 = vmatprep.subr.mxu0 0.0
    %2383 = vmatpush1.msra.mxu0 0.0
    %2384 = vmatprep.subr.mxu0 0.0
    %2385 = vmatpush1.msra.mxu0 0.0
    %2386 = vmatprep.subr.mxu0 0.0
    %2387 = vmatpush1.msra.mxu0 0.0
    %2388 = vmatprep.subr.mxu0 0.0
    %2389 = vmatpush1.msra.mxu0 0.0
    %2390 = vmatprep.subr.mxu0 0.0
    %2391 = vmatpush1.msra.mxu0 0.0
    %2392 = vmatprep.subr.mxu0 0.0
    %2393 = vmatpush1.msra.mxu0 0.0
    %2394 = vmatprep.subr.mxu0 0.0
    %2395 = vmatpush1.msra.mxu0 0.0
    %2396 = vmatprep.subr.mxu0 0.0
    %2397 = vmatpush1.msra.mxu0 0.0
    %2398 = vmatprep.subr.mxu0 0.0
    %2399 = vmatpush1.msra.mxu0 0.0
    %2400 = vmatprep.mubr.f32.mxu0 0.0
    %2401 = vmatmul.mubr.f32.gmra.mrb[0].mxu0 %v2334
    %v2402 = vpop.f32.mrb[0].mxu0
    %v2403 = vadd.f32 0.0, %v2402
    %v2404 = vpop.f32.mrb[0].mxu0
    %v2405 = vadd.f32 0.0, %v2404
    %2406 = vdwg.mxu0
    %v2407 = vld [vmem:[%s846] sm:$0xff]
    %v2408 = vadd.f32 %v2403, %v2407
    %v2409 = vld [vmem:[%s851 + $0x8] sm:$0xff]
    %v2410 = vadd.f32 %v2405, %v2409
    %v2411 = vxor.u32 %v2408, 2147483648
    %v2412 = vmul.f32 %v2411, 1.442695
    %v2413 = vpow.pop %v2412
    %v2414 = vadd.f32 %v2413, 1.0
    %v2415 = vrcp.pop %v2414
    %v2416 = vmul.f32 1.0, %v2415
    %v2417 = vtanh.pop %v2408
    %v2418 = vmul.f32 %v2416, %v2318
    %2420 = vrot.lane.b32.xlu0 %v2417, 64
    %v2421 = vpop.permute.xlu0 %2420
    %v2423 = vmul.f32 %v2416, %v2421
    %2425 = vrot.lane.b32.xlu0 %v2423, 32
    %v2426 = vpop.permute.xlu0 %2425
    %v2428 = vadd.f32 %v2418, %v2426
    %v2429 = vtanh.pop %v2428
    %2431 = vrot.lane.b32.xlu0 %v2429, 64
    %v2432 = vpop.permute.xlu0 %2431
    %v2434 = vmul.f32 %v2416, %v2432
    %v2435 = vxor.u32 %v2410, 2147483648
    %v2436 = vmul.f32 %v2435, 1.442695
    %v2437 = vpow.pop %v2436
    %v2438 = vadd.f32 %v2437, 1.0
    %v2439 = vrcp.pop %v2438
    %v2440 = vmul.f32 1.0, %v2439
    %v2441 = vtanh.pop %v2410
    %v2442 = vmul.f32 %v2440, %v2323
    %2444 = vrot.lane.b32.xlu0 %v2441, 64
    %v2445 = vpop.permute.xlu0 %2444
    %v2447 = vmul.f32 %v2440, %v2445
    %2449 = vrot.lane.b32.xlu0 %v2447, 32
    %v2450 = vpop.permute.xlu0 %2449
    %v2452 = vadd.f32 %v2442, %v2450
    %v2453 = vtanh.pop %v2452
    %2455 = vrot.lane.b32.xlu0 %v2453, 64
    %v2456 = vpop.permute.xlu0 %2455
    %v2458 = vmul.f32 %v2440, %v2456
    %2459 = vrot.lane.b32.xlu0 %v2332, 96
    %v2460 = vpop.permute.xlu0 %2459
    %v2462 = vsel %vm908, %v2434, %v2460
    %v2463 = vsel %vm908, %v2428, %v2318
    %2464 = vrot.lane.b32.xlu0 %v2332, 64
    %v2465 = vpop.permute.xlu0 %2464
    %v2467 = vsel %vm918, %v2458, %v2465
    %v2468 = vsel %vm918, %v2452, %v2323
    %2470 = vrot.lane.b32.xlu0 %v2462, 32
    %v2471 = vpop.permute.xlu0 %2470
    %2474 = vrot.lane.b32.xlu0 %v2467, 64
    %v2475 = vpop.permute.xlu0 %2474
    %v2477 = vsel %vm418, %v2471, %v2475
    %v2479 = vsel %vm265, %v2477, 0
    %2481 = vmatprep.subr.mxu0 %v1892
    %2482 = vmatpush1.msra.mxu0 %v1891
    %2483 = vmatprep.subr.mxu0 %v1894
    %2484 = vmatpush1.msra.mxu0 %v1893
    %2485 = vmatprep.subr.mxu0 %v1896
    %2486 = vmatpush1.msra.mxu0 %v1895
    %2487 = vmatprep.subr.mxu0 %v1898
    %2488 = vmatpush1.msra.mxu0 %v1897
    %2489 = vmatprep.subr.mxu0 %v1900
    %2490 = vmatpush1.msra.mxu0 %v1899
    %2491 = vmatprep.subr.mxu0 %v1902
    %2492 = vmatpush1.msra.mxu0 %v1901
    %2493 = vmatprep.subr.mxu0 %v1904
    %2494 = vmatpush1.msra.mxu0 %v1903
    %2495 = vmatprep.subr.mxu0 %v1906
    %2496 = vmatpush1.msra.mxu0 %v1905
    %2497 = vmatprep.subr.mxu0 0.0
    %2498 = vmatpush1.msra.mxu0 0.0
    %2499 = vmatprep.subr.mxu0 0.0
    %2500 = vmatpush1.msra.mxu0 0.0
    %2501 = vmatprep.subr.mxu0 0.0
    %2502 = vmatpush1.msra.mxu0 0.0
    %2503 = vmatprep.subr.mxu0 0.0
    %2504 = vmatpush1.msra.mxu0 0.0
    %2505 = vmatprep.subr.mxu0 0.0
    %2506 = vmatpush1.msra.mxu0 0.0
    %2507 = vmatprep.subr.mxu0 0.0
    %2508 = vmatpush1.msra.mxu0 0.0
    %2509 = vmatprep.subr.mxu0 0.0
    %2510 = vmatpush1.msra.mxu0 0.0
    %2511 = vmatprep.subr.mxu0 0.0
    %2512 = vmatpush1.msra.mxu0 0.0
    %2513 = vmatprep.subr.mxu0 0.0
    %2514 = vmatpush1.msra.mxu0 0.0
    %2515 = vmatprep.subr.mxu0 0.0
    %2516 = vmatpush1.msra.mxu0 0.0
    %2517 = vmatprep.subr.mxu0 0.0
    %2518 = vmatpush1.msra.mxu0 0.0
    %2519 = vmatprep.subr.mxu0 0.0
    %2520 = vmatpush1.msra.mxu0 0.0
    %2521 = vmatprep.subr.mxu0 0.0
    %2522 = vmatpush1.msra.mxu0 0.0
    %2523 = vmatprep.subr.mxu0 0.0
    %2524 = vmatpush1.msra.mxu0 0.0
    %2525 = vmatprep.subr.mxu0 0.0
    %2526 = vmatpush1.msra.mxu0 0.0
    %2527 = vmatprep.subr.mxu0 0.0
    %2528 = vmatpush1.msra.mxu0 0.0
    %2529 = vmatprep.subr.mxu0 0.0
    %2530 = vmatpush1.msra.mxu0 0.0
    %2531 = vmatprep.subr.mxu0 0.0
    %2532 = vmatpush1.msra.mxu0 0.0
    %2533 = vmatprep.subr.mxu0 0.0
    %2534 = vmatpush1.msra.mxu0 0.0
    %2535 = vmatprep.subr.mxu0 0.0
    %2536 = vmatpush1.msra.mxu0 0.0
    %2537 = vmatprep.subr.mxu0 0.0
    %2538 = vmatpush1.msra.mxu0 0.0
    %2539 = vmatprep.subr.mxu0 0.0
    %2540 = vmatpush1.msra.mxu0 0.0
    %2541 = vmatprep.subr.mxu0 0.0
    %2542 = vmatpush1.msra.mxu0 0.0
    %2543 = vmatprep.subr.mxu0 0.0
    %2544 = vmatpush1.msra.mxu0 0.0
    %2545 = vmatprep.mubr.f32.mxu0 0.0
    %2546 = vmatmul.mubr.f32.gmra.mrb[0].mxu0 %v2479
    %v2547 = vpop.f32.mrb[0].mxu0
    %v2548 = vadd.f32 0.0, %v2547
    %v2549 = vpop.f32.mrb[0].mxu0
    %v2550 = vadd.f32 0.0, %v2549
    %2551 = vdwg.mxu0
    %v2552 = vld [vmem:[%s851] sm:$0xff]
    %v2553 = vadd.f32 %v2548, %v2552
    %v2554 = vld [vmem:[%s846 + $0x8] sm:$0xff]
    %v2555 = vadd.f32 %v2550, %v2554
    %v2556 = vxor.u32 %v2553, 2147483648
    %v2557 = vmul.f32 %v2556, 1.442695
    %v2558 = vpow.pop %v2557
    %v2559 = vadd.f32 %v2558, 1.0
    %v2560 = vrcp.pop %v2559
    %v2561 = vmul.f32 1.0, %v2560
    %v2562 = vtanh.pop %v2553
    %v2563 = vmul.f32 %v2561, %v2463
    %2565 = vrot.lane.b32.xlu0 %v2562, 64
    %v2566 = vpop.permute.xlu0 %2565
    %v2568 = vmul.f32 %v2561, %v2566
    %2570 = vrot.lane.b32.xlu0 %v2568, 32
    %v2571 = vpop.permute.xlu0 %2570
    %v2573 = vadd.f32 %v2563, %v2571
    %v2574 = vtanh.pop %v2573
    %2576 = vrot.lane.b32.xlu0 %v2574, 64
    %v2577 = vpop.permute.xlu0 %2576
    %v2579 = vmul.f32 %v2561, %v2577
    %v2580 = vxor.u32 %v2555, 2147483648
    %v2581 = vmul.f32 %v2580, 1.442695
    %v2582 = vpow.pop %v2581
    %v2583 = vadd.f32 %v2582, 1.0
    %v2584 = vrcp.pop %v2583
    %v2585 = vmul.f32 1.0, %v2584
    %v2586 = vtanh.pop %v2555
    %v2587 = vmul.f32 %v2585, %v2468
    %2589 = vrot.lane.b32.xlu0 %v2586, 64
    %v2590 = vpop.permute.xlu0 %2589
    %v2592 = vmul.f32 %v2585, %v2590
    %2594 = vrot.lane.b32.xlu0 %v2592, 32
    %v2595 = vpop.permute.xlu0 %2594
    %v2597 = vadd.f32 %v2587, %v2595
    %v2598 = vtanh.pop %v2597
    %2600 = vrot.lane.b32.xlu0 %v2598, 64
    %v2601 = vpop.permute.xlu0 %2600
    %v2603 = vmul.f32 %v2585, %v2601
    %2604 = vrot.lane.b32.xlu0 %v2477, 96
    %v2605 = vpop.permute.xlu0 %2604
    %v2607 = vsel %vm918, %v2579, %v2605
    %v2608 = vsel %vm918, %v2573, %v2463
    %2609 = vrot.lane.b32.xlu0 %v2477, 64
    %v2610 = vpop.permute.xlu0 %2609
    %v2612 = vsel %vm908, %v2603, %v2610
    %v2613 = vsel %vm908, %v2597, %v2468
    %2615 = vrot.lane.b32.xlu0 %v2607, 32
    %v2616 = vpop.permute.xlu0 %2615
    %2619 = vrot.lane.b32.xlu0 %v2612, 64
    %v2620 = vpop.permute.xlu0 %2619
    %v2622 = vsel %vm418, %v2616, %v2620
    %v2624 = vsel %vm265, %v2622, 0
    %2626 = vmatprep.subr.mxu0 %v1892
    %2627 = vmatpush1.msra.mxu0 %v1891
    %2628 = vmatprep.subr.mxu0 %v1894
    %2629 = vmatpush1.msra.mxu0 %v1893
    %2630 = vmatprep.subr.mxu0 %v1896
    %2631 = vmatpush1.msra.mxu0 %v1895
    %2632 = vmatprep.subr.mxu0 %v1898
    %2633 = vmatpush1.msra.mxu0 %v1897
    %2634 = vmatprep.subr.mxu0 %v1900
    %2635 = vmatpush1.msra.mxu0 %v1899
    %2636 = vmatprep.subr.mxu0 %v1902
    %2637 = vmatpush1.msra.mxu0 %v1901
    %2638 = vmatprep.subr.mxu0 %v1904
    %2639 = vmatpush1.msra.mxu0 %v1903
    %2640 = vmatprep.subr.mxu0 %v1906
    %2641 = vmatpush1.msra.mxu0 %v1905
    %2642 = vmatprep.subr.mxu0 0.0
    %2643 = vmatpush1.msra.mxu0 0.0
    %2644 = vmatprep.subr.mxu0 0.0
    %2645 = vmatpush1.msra.mxu0 0.0
    %2646 = vmatprep.subr.mxu0 0.0
    %2647 = vmatpush1.msra.mxu0 0.0
    %2648 = vmatprep.subr.mxu0 0.0
    %2649 = vmatpush1.msra.mxu0 0.0
    %2650 = vmatprep.subr.mxu0 0.0
    %2651 = vmatpush1.msra.mxu0 0.0
    %2652 = vmatprep.subr.mxu0 0.0
    %2653 = vmatpush1.msra.mxu0 0.0
    %2654 = vmatprep.subr.mxu0 0.0
    %2655 = vmatpush1.msra.mxu0 0.0
    %2656 = vmatprep.subr.mxu0 0.0
    %2657 = vmatpush1.msra.mxu0 0.0
    %2658 = vmatprep.subr.mxu0 0.0
    %2659 = vmatpush1.msra.mxu0 0.0
    %2660 = vmatprep.subr.mxu0 0.0
    %2661 = vmatpush1.msra.mxu0 0.0
    %2662 = vmatprep.subr.mxu0 0.0
    %2663 = vmatpush1.msra.mxu0 0.0
    %2664 = vmatprep.subr.mxu0 0.0
    %2665 = vmatpush1.msra.mxu0 0.0
    %2666 = vmatprep.subr.mxu0 0.0
    %2667 = vmatpush1.msra.mxu0 0.0
    %2668 = vmatprep.subr.mxu0 0.0
    %2669 = vmatpush1.msra.mxu0 0.0
    %2670 = vmatprep.subr.mxu0 0.0
    %2671 = vmatpush1.msra.mxu0 0.0
    %2672 = vmatprep.subr.mxu0 0.0
    %2673 = vmatpush1.msra.mxu0 0.0
    %2674 = vmatprep.subr.mxu0 0.0
    %2675 = vmatpush1.msra.mxu0 0.0
    %2676 = vmatprep.subr.mxu0 0.0
    %2677 = vmatpush1.msra.mxu0 0.0
    %2678 = vmatprep.subr.mxu0 0.0
    %2679 = vmatpush1.msra.mxu0 0.0
    %2680 = vmatprep.subr.mxu0 0.0
    %2681 = vmatpush1.msra.mxu0 0.0
    %2682 = vmatprep.subr.mxu0 0.0
    %2683 = vmatpush1.msra.mxu0 0.0
    %2684 = vmatprep.subr.mxu0 0.0
    %2685 = vmatpush1.msra.mxu0 0.0
    %2686 = vmatprep.subr.mxu0 0.0
    %2687 = vmatpush1.msra.mxu0 0.0
    %2688 = vmatprep.subr.mxu0 0.0
    %2689 = vmatpush1.msra.mxu0 0.0
    %2690 = vmatprep.mubr.f32.mxu0 0.0
    %2691 = vmatmul.mubr.f32.gmra.mrb[0].mxu0 %v2624
    %v2692 = vpop.f32.mrb[0].mxu0
    %v2693 = vadd.f32 0.0, %v2692
    %v2694 = vpop.f32.mrb[0].mxu0
    %v2695 = vadd.f32 0.0, %v2694
    %2696 = vdwg.mxu0
    %v2697 = vld [vmem:[%s681] sm:$0xff]
    %v2698 = vadd.f32 %v2693, %v2697
    %v2699 = vld [vmem:[%s676 + $0x8] sm:$0xff]
    %v2700 = vadd.f32 %v2695, %v2699
    %v2701 = vxor.u32 %v2698, 2147483648
    %v2702 = vmul.f32 %v2701, 1.442695
    %v2703 = vpow.pop %v2702
    %v2704 = vadd.f32 %v2703, 1.0
    %v2705 = vrcp.pop %v2704
    %v2706 = vmul.f32 1.0, %v2705
    %v2707 = vtanh.pop %v2698
    %v2708 = vmul.f32 %v2706, %v2608
    %2710 = vrot.lane.b32.xlu0 %v2707, 64
    %v2711 = vpop.permute.xlu0 %2710
    %v2713 = vmul.f32 %v2706, %v2711
    %2715 = vrot.lane.b32.xlu0 %v2713, 32
    %v2716 = vpop.permute.xlu0 %2715
    %v2718 = vadd.f32 %v2708, %v2716
    %v2719 = vtanh.pop %v2718
    %2721 = vrot.lane.b32.xlu0 %v2719, 64
    %v2722 = vpop.permute.xlu0 %2721
    %v2724 = vmul.f32 %v2706, %v2722
    %v2725 = vxor.u32 %v2700, 2147483648
    %v2726 = vmul.f32 %v2725, 1.442695
    %v2727 = vpow.pop %v2726
    %v2728 = vadd.f32 %v2727, 1.0
    %v2729 = vrcp.pop %v2728
    %v2730 = vmul.f32 1.0, %v2729
    %v2731 = vtanh.pop %v2700
    %v2732 = vmul.f32 %v2730, %v2613
    %2734 = vrot.lane.b32.xlu0 %v2731, 64
    %v2735 = vpop.permute.xlu0 %2734
    %v2737 = vmul.f32 %v2730, %v2735
    %2739 = vrot.lane.b32.xlu0 %v2737, 32
    %v2740 = vpop.permute.xlu0 %2739
    %v2742 = vadd.f32 %v2732, %v2740
    %v2743 = vtanh.pop %v2742
    %2745 = vrot.lane.b32.xlu0 %v2743, 64
    %v2746 = vpop.permute.xlu0 %2745
    %v2748 = vmul.f32 %v2730, %v2746
    %2749 = vrot.lane.b32.xlu0 %v2622, 96
    %v2750 = vpop.permute.xlu0 %2749
    %v2752 = vsel %vm748, %v2724, %v2750
    %v2753 = vsel %vm748, %v2718, %v2608
    %2754 = vrot.lane.b32.xlu0 %v2622, 64
    %v2755 = vpop.permute.xlu0 %2754
    %v2757 = vsel %vm738, %v2748, %v2755
    %v2758 = vsel %vm738, %v2742, %v2613
    %2760 = vrot.lane.b32.xlu0 %v2752, 32
    %v2761 = vpop.permute.xlu0 %2760
    %2764 = vrot.lane.b32.xlu0 %v2757, 64
    %v2765 = vpop.permute.xlu0 %2764
    %v2767 = vsel %vm418, %v2761, %v2765
    %v2769 = vsel %vm265, %v2767, 0
    %2771 = vmatprep.subr.mxu0 %v1892
    %2772 = vmatpush1.msra.mxu0 %v1891
    %2773 = vmatprep.subr.mxu0 %v1894
    %2774 = vmatpush1.msra.mxu0 %v1893
    %2775 = vmatprep.subr.mxu0 %v1896
    %2776 = vmatpush1.msra.mxu0 %v1895
    %2777 = vmatprep.subr.mxu0 %v1898
    %2778 = vmatpush1.msra.mxu0 %v1897
    %2779 = vmatprep.subr.mxu0 %v1900
    %2780 = vmatpush1.msra.mxu0 %v1899
    %2781 = vmatprep.subr.mxu0 %v1902
    %2782 = vmatpush1.msra.mxu0 %v1901
    %2783 = vmatprep.subr.mxu0 %v1904
    %2784 = vmatpush1.msra.mxu0 %v1903
    %2785 = vmatprep.subr.mxu0 %v1906
    %2786 = vmatpush1.msra.mxu0 %v1905
    %2787 = vmatprep.subr.mxu0 0.0
    %2788 = vmatpush1.msra.mxu0 0.0
    %2789 = vmatprep.subr.mxu0 0.0
    %2790 = vmatpush1.msra.mxu0 0.0
    %2791 = vmatprep.subr.mxu0 0.0
    %2792 = vmatpush1.msra.mxu0 0.0
    %2793 = vmatprep.subr.mxu0 0.0
    %2794 = vmatpush1.msra.mxu0 0.0
    %2795 = vmatprep.subr.mxu0 0.0
    %2796 = vmatpush1.msra.mxu0 0.0
    %2797 = vmatprep.subr.mxu0 0.0
    %2798 = vmatpush1.msra.mxu0 0.0
    %2799 = vmatprep.subr.mxu0 0.0
    %2800 = vmatpush1.msra.mxu0 0.0
    %2801 = vmatprep.subr.mxu0 0.0
    %2802 = vmatpush1.msra.mxu0 0.0
    %2803 = vmatprep.subr.mxu0 0.0
    %2804 = vmatpush1.msra.mxu0 0.0
    %2805 = vmatprep.subr.mxu0 0.0
    %2806 = vmatpush1.msra.mxu0 0.0
    %2807 = vmatprep.subr.mxu0 0.0
    %2808 = vmatpush1.msra.mxu0 0.0
    %2809 = vmatprep.subr.mxu0 0.0
    %2810 = vmatpush1.msra.mxu0 0.0
    %2811 = vmatprep.subr.mxu0 0.0
    %2812 = vmatpush1.msra.mxu0 0.0
    %2813 = vmatprep.subr.mxu0 0.0
    %2814 = vmatpush1.msra.mxu0 0.0
    %2815 = vmatprep.subr.mxu0 0.0
    %2816 = vmatpush1.msra.mxu0 0.0
    %2817 = vmatprep.subr.mxu0 0.0
    %2818 = vmatpush1.msra.mxu0 0.0
    %2819 = vmatprep.subr.mxu0 0.0
    %2820 = vmatpush1.msra.mxu0 0.0
    %2821 = vmatprep.subr.mxu0 0.0
    %2822 = vmatpush1.msra.mxu0 0.0
    %2823 = vmatprep.subr.mxu0 0.0
    %2824 = vmatpush1.msra.mxu0 0.0
    %2825 = vmatprep.subr.mxu0 0.0
    %2826 = vmatpush1.msra.mxu0 0.0
    %2827 = vmatprep.subr.mxu0 0.0
    %2828 = vmatpush1.msra.mxu0 0.0
    %2829 = vmatprep.subr.mxu0 0.0
    %2830 = vmatpush1.msra.mxu0 0.0
    %2831 = vmatprep.subr.mxu0 0.0
    %2832 = vmatpush1.msra.mxu0 0.0
    %2833 = vmatprep.subr.mxu0 0.0
    %2834 = vmatpush1.msra.mxu0 0.0
    %2835 = vmatprep.mubr.f32.mxu0 0.0
    %2836 = vmatmul.mubr.f32.gmra.mrb[0].mxu0 %v2769
    %v2837 = vpop.f32.mrb[0].mxu0
    %v2838 = vadd.f32 0.0, %v2837
    %v2839 = vpop.f32.mrb[0].mxu0
    %v2840 = vadd.f32 0.0, %v2839
    %2841 = vdwg.mxu0
    %v2842 = vld [vmem:[%s511] sm:$0xff]
    %v2843 = vadd.f32 %v2838, %v2842
    %v2844 = vld [vmem:[%s506 + $0x8] sm:$0xff]
    %v2845 = vadd.f32 %v2840, %v2844
    %v2846 = vxor.u32 %v2843, 2147483648
    %v2847 = vmul.f32 %v2846, 1.442695
    %v2848 = vpow.pop %v2847
    %v2849 = vadd.f32 %v2848, 1.0
    %v2850 = vrcp.pop %v2849
    %v2851 = vmul.f32 1.0, %v2850
    %v2852 = vtanh.pop %v2843
    %v2853 = vmul.f32 %v2851, %v2753
    %2855 = vrot.lane.b32.xlu0 %v2852, 64
    %v2856 = vpop.permute.xlu0 %2855
    %v2858 = vmul.f32 %v2851, %v2856
    %2860 = vrot.lane.b32.xlu0 %v2858, 32
    %v2861 = vpop.permute.xlu0 %2860
    %v2863 = vadd.f32 %v2853, %v2861
    %v2864 = vtanh.pop %v2863
    %2866 = vrot.lane.b32.xlu0 %v2864, 64
    %v2867 = vpop.permute.xlu0 %2866
    %v2869 = vmul.f32 %v2851, %v2867
    %v2870 = vxor.u32 %v2845, 2147483648
    %v2871 = vmul.f32 %v2870, 1.442695
    %v2872 = vpow.pop %v2871
    %v2873 = vadd.f32 %v2872, 1.0
    %v2874 = vrcp.pop %v2873
    %v2875 = vmul.f32 1.0, %v2874
    %v2876 = vtanh.pop %v2845
    %v2877 = vmul.f32 %v2875, %v2758
    %2879 = vrot.lane.b32.xlu0 %v2876, 64
    %v2880 = vpop.permute.xlu0 %2879
    %v2882 = vmul.f32 %v2875, %v2880
    %2884 = vrot.lane.b32.xlu0 %v2882, 32
    %v2885 = vpop.permute.xlu0 %2884
    %v2887 = vadd.f32 %v2877, %v2885
    %v2888 = vtanh.pop %v2887
    %2890 = vrot.lane.b32.xlu0 %v2888, 64
    %v2891 = vpop.permute.xlu0 %2890
    %v2893 = vmul.f32 %v2875, %v2891
    %2894 = vrot.lane.b32.xlu0 %v2767, 96
    %v2895 = vpop.permute.xlu0 %2894
    %v2897 = vsel %vm578, %v2869, %v2895
    %v2898 = vsel %vm578, %v2863, %v2753
    %2899 = vrot.lane.b32.xlu0 %v2767, 64
    %v2900 = vpop.permute.xlu0 %2899
    %v2902 = vsel %vm568, %v2893, %v2900
    %v2903 = vsel %vm568, %v2887, %v2758
    %2905 = vrot.lane.b32.xlu0 %v2897, 32
    %v2906 = vpop.permute.xlu0 %2905
    %2909 = vrot.lane.b32.xlu0 %v2902, 64
    %v2910 = vpop.permute.xlu0 %2909
    %v2912 = vsel %vm418, %v2906, %v2910
    %v2914 = vsel %vm265, %v2912, 0
    %2916 = vmatprep.subr.mxu0 %v1892
    %2917 = vmatpush1.msra.mxu0 %v1891
    %2918 = vmatprep.subr.mxu0 %v1894
    %2919 = vmatpush1.msra.mxu0 %v1893
    %2920 = vmatprep.subr.mxu0 %v1896
    %2921 = vmatpush1.msra.mxu0 %v1895
    %2922 = vmatprep.subr.mxu0 %v1898
    %2923 = vmatpush1.msra.mxu0 %v1897
    %2924 = vmatprep.subr.mxu0 %v1900
    %2925 = vmatpush1.msra.mxu0 %v1899
    %2926 = vmatprep.subr.mxu0 %v1902
    %2927 = vmatpush1.msra.mxu0 %v1901
    %2928 = vmatprep.subr.mxu0 %v1904
    %2929 = vmatpush1.msra.mxu0 %v1903
    %2930 = vmatprep.subr.mxu0 %v1906
    %2931 = vmatpush1.msra.mxu0 %v1905
    %2932 = vmatprep.subr.mxu0 0.0
    %2933 = vmatpush1.msra.mxu0 0.0
    %2934 = vmatprep.subr.mxu0 0.0
    %2935 = vmatpush1.msra.mxu0 0.0
    %2936 = vmatprep.subr.mxu0 0.0
    %2937 = vmatpush1.msra.mxu0 0.0
    %2938 = vmatprep.subr.mxu0 0.0
    %2939 = vmatpush1.msra.mxu0 0.0
    %2940 = vmatprep.subr.mxu0 0.0
    %2941 = vmatpush1.msra.mxu0 0.0
    %2942 = vmatprep.subr.mxu0 0.0
    %2943 = vmatpush1.msra.mxu0 0.0
    %2944 = vmatprep.subr.mxu0 0.0
    %2945 = vmatpush1.msra.mxu0 0.0
    %2946 = vmatprep.subr.mxu0 0.0
    %2947 = vmatpush1.msra.mxu0 0.0
    %2948 = vmatprep.subr.mxu0 0.0
    %2949 = vmatpush1.msra.mxu0 0.0
    %2950 = vmatprep.subr.mxu0 0.0
    %2951 = vmatpush1.msra.mxu0 0.0
    %2952 = vmatprep.subr.mxu0 0.0
    %2953 = vmatpush1.msra.mxu0 0.0
    %2954 = vmatprep.subr.mxu0 0.0
    %2955 = vmatpush1.msra.mxu0 0.0
    %2956 = vmatprep.subr.mxu0 0.0
    %2957 = vmatpush1.msra.mxu0 0.0
    %2958 = vmatprep.subr.mxu0 0.0
    %2959 = vmatpush1.msra.mxu0 0.0
    %2960 = vmatprep.subr.mxu0 0.0
    %2961 = vmatpush1.msra.mxu0 0.0
    %2962 = vmatprep.subr.mxu0 0.0
    %2963 = vmatpush1.msra.mxu0 0.0
    %2964 = vmatprep.subr.mxu0 0.0
    %2965 = vmatpush1.msra.mxu0 0.0
    %2966 = vmatprep.subr.mxu0 0.0
    %2967 = vmatpush1.msra.mxu0 0.0
    %2968 = vmatprep.subr.mxu0 0.0
    %2969 = vmatpush1.msra.mxu0 0.0
    %2970 = vmatprep.subr.mxu0 0.0
    %2971 = vmatpush1.msra.mxu0 0.0
    %2972 = vmatprep.subr.mxu0 0.0
    %2973 = vmatpush1.msra.mxu0 0.0
    %2974 = vmatprep.subr.mxu0 0.0
    %2975 = vmatpush1.msra.mxu0 0.0
    %2976 = vmatprep.subr.mxu0 0.0
    %2977 = vmatpush1.msra.mxu0 0.0
    %2978 = vmatprep.subr.mxu0 0.0
    %2979 = vmatpush1.msra.mxu0 0.0
    %2980 = vmatprep.mubr.f32.mxu0 0.0
    %2981 = vmatmul.mubr.f32.gmra.mrb[0].mxu0 %v2914
    %v2982 = vpop.f32.mrb[0].mxu0
    %v2983 = vadd.f32 0.0, %v2982
    %v2984 = vpop.f32.mrb[0].mxu0
    %v2985 = vadd.f32 0.0, %v2984
    %2986 = vdwg.mxu0
    %v2987 = vld [vmem:[%s347] sm:$0xff]
    %v2988 = vadd.f32 %v2983, %v2987
    %v2989 = vld [vmem:[%s342 + $0x8] sm:$0xff]
    %v2990 = vadd.f32 %v2985, %v2989
    %v2991 = vxor.u32 %v2988, 2147483648
    %v2992 = vmul.f32 %v2991, 1.442695
    %v2993 = vpow.pop %v2992
    %v2994 = vadd.f32 %v2993, 1.0
    %v2995 = vrcp.pop %v2994
    %v2996 = vmul.f32 1.0, %v2995
    %v2997 = vtanh.pop %v2988
    %v2998 = vmul.f32 %v2996, %v2898
    %3000 = vrot.lane.b32.xlu0 %v2997, 64
    %v3001 = vpop.permute.xlu0 %3000
    %v3003 = vmul.f32 %v2996, %v3001
    %3005 = vrot.lane.b32.xlu0 %v3003, 32
    %v3006 = vpop.permute.xlu0 %3005
    %v3008 = vadd.f32 %v2998, %v3006
    %v3009 = vtanh.pop %v3008
    %3011 = vrot.lane.b32.xlu0 %v3009, 64
    %v3012 = vpop.permute.xlu0 %3011
    %v3014 = vmul.f32 %v2996, %v3012
    %v3015 = vxor.u32 %v2990, 2147483648
    %v3016 = vmul.f32 %v3015, 1.442695
    %v3017 = vpow.pop %v3016
    %v3018 = vadd.f32 %v3017, 1.0
    %v3019 = vrcp.pop %v3018
    %v3020 = vmul.f32 1.0, %v3019
    %v3021 = vtanh.pop %v2990
    %v3022 = vmul.f32 %v3020, %v2903
    %3024 = vrot.lane.b32.xlu0 %v3021, 64
    %v3025 = vpop.permute.xlu0 %3024
    %v3027 = vmul.f32 %v3020, %v3025
    %3029 = vrot.lane.b32.xlu0 %v3027, 32
    %v3030 = vpop.permute.xlu0 %3029
    %v3032 = vadd.f32 %v3022, %v3030
    %v3033 = vtanh.pop %v3032
    %3035 = vrot.lane.b32.xlu0 %v3033, 64
    %v3036 = vpop.permute.xlu0 %3035
    %v3038 = vmul.f32 %v3020, %v3036
    %3039 = vrot.lane.b32.xlu0 %v2912, 96
    %v3040 = vpop.permute.xlu0 %3039
    %v3042 = vsel %vm411, %v3014, %v3040
    %3043 = vrot.lane.b32.xlu0 %v2912, 64
    %v3044 = vpop.permute.xlu0 %3043
    %v3046 = vsel %vm404, %v3038, %v3044
    %3048 = vrot.lane.b32.xlu0 %v3042, 32
    %v3049 = vpop.permute.xlu0 %3048
    %3052 = vrot.lane.b32.xlu0 %v3046, 64
    %v3053 = vpop.permute.xlu0 %3052
    %v3055 = vsel %vm418, %v3049, %v3053
    %v3056 = vld [vmem:[%s8] sm:$0xff]
    %v3057 = vld [vmem:[%s8 + $0x8] sm:$0xff]
    %v3058 = vld [vmem:[%s8 + $0x10] sm:$0xff]
    %v3059 = vld [vmem:[%s8 + $0x18] sm:$0xff]
    %v3060 = vld [vmem:[%s8 + $0x20] sm:$0xff]
    %v3061 = vld [vmem:[%s8 + $0x28] sm:$0xff]
    %v3062 = vld [vmem:[%s8 + $0x30] sm:$0xff]
    %v3063 = vld [vmem:[%s8 + $0x38] sm:$0xff]
    %v3064 = vld [vmem:[%s9] sm:$0x1]
    %v3066 = vlaneseq
    %v3067 = vshrl.u32 %v3066, 7
    %v3068 = vsub.s32 0, %v3067
    %v3069 = vrot.slane %v3064, %v3068
    %v3072 = vsel %vm265, %v3055, 0
    %3074 = vmatprep.subr.mxu0 0.0
    %3075 = vmatpush1.msra.mxu0 %v3056
    %3076 = vmatprep.subr.mxu0 0.0
    %3077 = vmatpush1.msra.mxu0 %v3057
    %3078 = vmatprep.subr.mxu0 0.0
    %3079 = vmatpush1.msra.mxu0 %v3058
    %3080 = vmatprep.subr.mxu0 0.0
    %3081 = vmatpush1.msra.mxu0 %v3059
    %3082 = vmatprep.subr.mxu0 0.0
    %3083 = vmatpush1.msra.mxu0 %v3060
    %3084 = vmatprep.subr.mxu0 0.0
    %3085 = vmatpush1.msra.mxu0 %v3061
    %3086 = vmatprep.subr.mxu0 0.0
    %3087 = vmatpush1.msra.mxu0 %v3062
    %3088 = vmatprep.subr.mxu0 0.0
    %3089 = vmatpush1.msra.mxu0 %v3063
    %3090 = vmatprep.subr.mxu0 0.0
    %3091 = vmatpush1.msra.mxu0 0.0
    %3092 = vmatprep.subr.mxu0 0.0
    %3093 = vmatpush1.msra.mxu0 0.0
    %3094 = vmatprep.subr.mxu0 0.0
    %3095 = vmatpush1.msra.mxu0 0.0
    %3096 = vmatprep.subr.mxu0 0.0
    %3097 = vmatpush1.msra.mxu0 0.0
    %3098 = vmatprep.subr.mxu0 0.0
    %3099 = vmatpush1.msra.mxu0 0.0
    %3100 = vmatprep.subr.mxu0 0.0
    %3101 = vmatpush1.msra.mxu0 0.0
    %3102 = vmatprep.subr.mxu0 0.0
    %3103 = vmatpush1.msra.mxu0 0.0
    %3104 = vmatprep.subr.mxu0 0.0
    %3105 = vmatpush1.msra.mxu0 0.0
    %3106 = vmatprep.subr.mxu0 0.0
    %3107 = vmatpush1.msra.mxu0 0.0
    %3108 = vmatprep.subr.mxu0 0.0
    %3109 = vmatpush1.msra.mxu0 0.0
    %3110 = vmatprep.subr.mxu0 0.0
    %3111 = vmatpush1.msra.mxu0 0.0
    %3112 = vmatprep.subr.mxu0 0.0
    %3113 = vmatpush1.msra.mxu0 0.0
    %3114 = vmatprep.subr.mxu0 0.0
    %3115 = vmatpush1.msra.mxu0 0.0
    %3116 = vmatprep.subr.mxu0 0.0
    %3117 = vmatpush1.msra.mxu0 0.0
    %3118 = vmatprep.subr.mxu0 0.0
    %3119 = vmatpush1.msra.mxu0 0.0
    %3120 = vmatprep.subr.mxu0 0.0
    %3121 = vmatpush1.msra.mxu0 0.0
    %3122 = vmatprep.subr.mxu0 0.0
    %3123 = vmatpush1.msra.mxu0 0.0
    %3124 = vmatprep.subr.mxu0 0.0
    %3125 = vmatpush1.msra.mxu0 0.0
    %3126 = vmatprep.subr.mxu0 0.0
    %3127 = vmatpush1.msra.mxu0 0.0
    %3128 = vmatprep.subr.mxu0 0.0
    %3129 = vmatpush1.msra.mxu0 0.0
    %3130 = vmatprep.subr.mxu0 0.0
    %3131 = vmatpush1.msra.mxu0 0.0
    %3132 = vmatprep.subr.mxu0 0.0
    %3133 = vmatpush1.msra.mxu0 0.0
    %3134 = vmatprep.subr.mxu0 0.0
    %3135 = vmatpush1.msra.mxu0 0.0
    %3136 = vmatprep.subr.mxu0 0.0
    %3137 = vmatpush1.msra.mxu0 0.0
    %3138 = vmatprep.mubr.f32.mxu0 0.0
    %3139 = vmatmul.mubr.f32.gmra.mrb[0].mxu0 %v3072
    %v3140 = vpop.f32.mrb[0].mxu0
    %v3141 = vadd.f32 %v3069, %v3140
    %v3142 = vpop.f32.mrb[0].mxu0
    %3143 = vdwg.mxu0
    %v3144 = vld [vmem:[%s10] sm:$0xff]
    %v3145 = vld [vmem:[%s10 + $0x8] sm:$0xff]
    %v3146 = vld [vmem:[%s10 + $0x10] sm:$0xff]
    %v3147 = vld [vmem:[%s10 + $0x18] sm:$0xff]
    %v3148 = vld [vmem:[%s11] sm:$0x1]
    %v3150 = vlaneseq
    %v3151 = vshrl.u32 %v3150, 7
    %v3152 = vsub.s32 0, %v3151
    %v3153 = vrot.slane %v3148, %v3152
    %v3156 = vsel %vm418, %v3141, 0
    %3158 = vmatprep.subr.mxu0 0.0
    %3159 = vmatpush1.msra.mxu0 %v3144
    %3160 = vmatprep.subr.mxu0 0.0
    %3161 = vmatpush1.msra.mxu0 %v3145
    %3162 = vmatprep.subr.mxu0 0.0
    %3163 = vmatpush1.msra.mxu0 %v3146
    %3164 = vmatprep.subr.mxu0 0.0
    %3165 = vmatpush1.msra.mxu0 %v3147
    %3166 = vmatprep.subr.mxu0 0.0
    %3167 = vmatpush1.msra.mxu0 0.0
    %3168 = vmatprep.subr.mxu0 0.0
    %3169 = vmatpush1.msra.mxu0 0.0
    %3170 = vmatprep.subr.mxu0 0.0
    %3171 = vmatpush1.msra.mxu0 0.0
    %3172 = vmatprep.subr.mxu0 0.0
    %3173 = vmatpush1.msra.mxu0 0.0
    %3174 = vmatprep.subr.mxu0 0.0
    %3175 = vmatpush1.msra.mxu0 0.0
    %3176 = vmatprep.subr.mxu0 0.0
    %3177 = vmatpush1.msra.mxu0 0.0
    %3178 = vmatprep.subr.mxu0 0.0
    %3179 = vmatpush1.msra.mxu0 0.0
    %3180 = vmatprep.subr.mxu0 0.0
    %3181 = vmatpush1.msra.mxu0 0.0
    %3182 = vmatprep.subr.mxu0 0.0
    %3183 = vmatpush1.msra.mxu0 0.0
    %3184 = vmatprep.subr.mxu0 0.0
    %3185 = vmatpush1.msra.mxu0 0.0
    %3186 = vmatprep.subr.mxu0 0.0
    %3187 = vmatpush1.msra.mxu0 0.0
    %3188 = vmatprep.subr.mxu0 0.0
    %3189 = vmatpush1.msra.mxu0 0.0
    %3190 = vmatprep.subr.mxu0 0.0
    %3191 = vmatpush1.msra.mxu0 0.0
    %3192 = vmatprep.subr.mxu0 0.0
    %3193 = vmatpush1.msra.mxu0 0.0
    %3194 = vmatprep.subr.mxu0 0.0
    %3195 = vmatpush1.msra.mxu0 0.0
    %3196 = vmatprep.subr.mxu0 0.0
    %3197 = vmatpush1.msra.mxu0 0.0
    %3198 = vmatprep.subr.mxu0 0.0
    %3199 = vmatpush1.msra.mxu0 0.0
    %3200 = vmatprep.subr.mxu0 0.0
    %3201 = vmatpush1.msra.mxu0 0.0
    %3202 = vmatprep.subr.mxu0 0.0
    %3203 = vmatpush1.msra.mxu0 0.0
    %3204 = vmatprep.subr.mxu0 0.0
    %3205 = vmatpush1.msra.mxu0 0.0
    %3206 = vmatprep.subr.mxu0 0.0
    %3207 = vmatpush1.msra.mxu0 0.0
    %3208 = vmatprep.subr.mxu0 0.0
    %3209 = vmatpush1.msra.mxu0 0.0
    %3210 = vmatprep.subr.mxu0 0.0
    %3211 = vmatpush1.msra.mxu0 0.0
    %3212 = vmatprep.subr.mxu0 0.0
    %3213 = vmatpush1.msra.mxu0 0.0
    %3214 = vmatprep.subr.mxu0 0.0
    %3215 = vmatpush1.msra.mxu0 0.0
    %3216 = vmatprep.subr.mxu0 0.0
    %3217 = vmatpush1.msra.mxu0 0.0
    %3218 = vmatprep.subr.mxu0 0.0
    %3219 = vmatpush1.msra.mxu0 0.0
    %3220 = vmatprep.subr.mxu0 0.0
    %3221 = vmatpush1.msra.mxu0 0.0
    %3222 = vmatprep.mubr.f32.mxu0 0.0
    %3223 = vmatmul.mubr.f32.gmra.mrb[0].mxu0 %v3156
    %v3224 = vpop.f32.mrb[0].mxu0
    %v3225 = vadd.f32 %v3153, %v3224
    %v3226 = vpop.f32.mrb[0].mxu0
    %3227 = vdwg.mxu0
    %vm3228 = vcmask 64512
    %3229 = vst.msk [vmem:[#allocation10] sm:$0xff] %vm3228, %v3225
    // Predicated region
    $region58: #{tpu_custom_call.1} parent=1 // pred_check
      _
    $region59: #{tpu_custom_call.1} parent=1 // pred_check_branch
      %3231 = sbr.rel (0) target = $region61
    $region60: #{tpu_custom_call.1} parent=1 // pred_region
      %s3233 = ssub.s32 128, 128
      %3234 = vsyncadd [#allocation7], %s3233
      %s3236 = sshll.u32 [#allocation10], 4
      %s3237 = int_to_ptr.vmem [resolvable:$true] %s3236
      %3239 = dma.vmem_to_hbm [thread:$0]  %s3237, 128, %s12, [#allocation7]
    $region61: #{tpu_custom_call.1} parent=1 // pred_fallthru
      _
    // Predicated region
    $region62: #{tpu_custom_call.1} parent=1 // pred_check
      _
    $region63: #{tpu_custom_call.1} parent=1 // pred_check_branch
      %3241 = sbr.rel (0) target = $region65
    $region64: #{tpu_custom_call.1} parent=1 // pred_region
      %3242 = dma.done [#allocation7], 128
    $region65: #{tpu_custom_call.1} parent=1 // pred_fallthru
      _
    %3243 = vsyncpa [#allocation6], 1
    %3244 = vsyncpa [#allocation9], 1
    %3245 = vsyncpa [#allocation7], 1

</llo_original>
